<compile_context>
chip_gen: v5e
topology: v5e:2x2
jax: 0.10.0
libtpu: 0.0.40
codegen_flags: <defaults>
</compile_context>

<pallas_src>
import functools

import jax
import jax.numpy as jnp
from jax.experimental import pallas as pl
from jax.experimental.pallas import tpu as pltpu


# Below this many elements XLA's fused elementwise loop (already at the HBM
# roofline for a single op) beats the pallas_call launch + pipeline overhead.
_SMALL_N = 256 * 1024
# Lane-dense reshape candidates for flat element streams.
_LANE_CANDIDATES = (1024, 512, 256, 128)
# Explicit scoped-VMEM request: well above the ~8-16 MiB resident footprint
# (in + out, double-buffered) and below physical VMEM on every generation.
_VMEM_LIMIT_BYTES = 32 * 1024 * 1024


def _block_byte_budget():
    """Per-buffer block byte target, generation aware."""
    try:
        kind = jax.devices()[0].device_kind.lower()
    except Exception:  # pragma: no cover - defensive, e.g. odd backends
        kind = ""
    if "v7" in kind:
        # 3.2 TB/s HBM: 2 MiB blocks spend ~25% of each step on fixed overhead;
        # 4 MiB halves that and (in+out, double-buffered ~16 MiB) still fits
        # comfortably under the 32 MiB scoped / 64 MiB physical VMEM.
        return 4 * 1024 * 1024
    # v5e/v6e: per-step DMA is already 3-5us so overhead is negligible; 2 MiB
    # keeps the resident footprint (~8 MiB) inside v5e's 16 MiB scoped default.
    return 2 * 1024 * 1024


def _sublane_multiple(in_dtype, out_dtype):
    """Minimum legal sublane tile for the narrower of the two dtypes."""
    m = 8
    for dt in (in_dtype, out_dtype):
        m = max(m, 32 // max(1, jnp.dtype(dt).itemsize))
    return m


def _round_tile(extent, unit, cap):
    """Largest multiple of `unit` <= min(extent, cap); falls back to the full
    extent when the extent is smaller than `unit` (full-dim blocks are legal
    even when not divisible by the (8,128) minimum)."""
    if extent <= unit:
        return extent
    return max(unit, min(extent, cap) // unit * unit)


def _engagement_kernel(chan_ref, out_ref, *, half_scale):
    # Load at native dtype, cast in-register (VPU filler; halves HBM read
    # traffic for bf16/int inputs), one folded constant multiply, then the
    # sigmoid on the EUP via tanh:
    #   sigmoid(2 * c * factor / rate) == 0.5 * tanh(c * factor / rate) + 0.5
    x = chan_ref[...].astype(jnp.float32) * jnp.float32(half_scale)
    y = jnp.float32(0.5) * jnp.tanh(x) + jnp.float32(0.5)
    out_ref[...] = y.astype(out_ref.dtype)


def _run_tiled(x2d, out_dtype, half_scale):
    """Run the elementwise kernel over a 2-D slab with a 2-D pipelined grid.

    Ragged extents are handled by partial boundary blocks (output writes are
    masked by Pallas); no padding or slicing passes over HBM.
    """
    rows, lanes = x2d.shape
    in_item = jnp.dtype(x2d.dtype).itemsize
    out_item = jnp.dtype(out_dtype).itemsize
    sub_mult = _sublane_multiple(x2d.dtype, out_dtype)

    # Element budget keyed off the wider of the two dtypes, so the larger of
    # the (input, output) VMEM buffers sits at ~budget bytes per block.
    budget_elems = max(sub_mult * 128,
                       _block_byte_budget() // max(in_item, out_item))

    # Lane tile: multiple of 128 (or the full ragged extent), capped so at
    # least one minimum sublane tile of rows still fits the budget.
    tile_lanes = _round_tile(lanes, 128, budget_elems // sub_mult)
    # Row tile: multiple of the dtype's sublane minimum (or the full extent),
    # using whatever element budget the lane tile left over.
    tile_rows = _round_tile(rows, sub_mult,
                            max(sub_mult, budget_elems // tile_lanes))

    grid = (pl.cdiv(rows, tile_rows), pl.cdiv(lanes, tile_lanes))

    n = rows * lanes
    cost = pl.CostEstimate(flops=3 * n, transcendentals=n,
                           bytes_accessed=n * (in_item + out_item))

    return pl.pallas_call(
        functools.partial(_engagement_kernel, half_scale=half_scale),
        out_shape=jax.ShapeDtypeStruct((rows, lanes), out_dtype),
        grid_spec=pltpu.PrefetchScalarGridSpec(
            num_scalar_prefetch=0,
            grid=grid,
            in_specs=[pl.BlockSpec((tile_rows, tile_lanes),
                                   lambda i, j: (i, j))],
            out_specs=pl.BlockSpec((tile_rows, tile_lanes),
                                   lambda i, j: (i, j)),
        ),
        compiler_params=pltpu.CompilerParams(
            # Independent elementwise tiles on both axes; lets megacore chips
            # shard the stream. TODO(synk): verify "parallel" actually splits
            # the grid across v7x's two TensorCores; switch the row axis to
            # pltpu.CORE_PARALLEL if it does not.
            dimension_semantics=("parallel", "parallel"),
            vmem_limit_bytes=_VMEM_LIMIT_BYTES,
        ),
        cost_estimate=cost,
    )(x2d)


def basic_engagement_forward(tensor, labels, batch_num, epoch, cum_batch_num,
                             ensemble_channel,
                             channel_engagement_factor=200,
                             engagement_rate=20):
    """Mirrors BasicEngagement.forward. Only ensemble_channel participates."""
    del tensor, labels, batch_num, epoch, cum_batch_num  # unused, as in PyTorch

    # Static Python hyperparameters folded into a single constant:
    # sigmoid(2 * c * factor / rate) = 0.5 * tanh(c * half_scale) + 0.5
    half_scale = float(channel_engagement_factor) / float(engagement_rate)

    chan = jnp.asarray(ensemble_channel)
    out_dtype = (chan.dtype if jnp.issubdtype(chan.dtype, jnp.floating)
                 else jnp.float32)
    n = chan.size

    # Small / mid-size inputs (including the module's usual per-channel index
    # vector): XLA's fused elementwise loop already hits the HBM roofline.
    if n < _SMALL_N:
        x = chan.astype(jnp.float32) * jnp.float32(2.0 * half_scale)
        return jax.nn.sigmoid(x).astype(out_dtype)

    orig_shape = chan.shape
    flat = chan.reshape(-1)  # metadata-only for a contiguous array

    lanes = next((l for l in _LANE_CANDIDATES if n % l == 0), None)
    if lanes is not None:
        # Widest lane-dense slab that divides evenly: unmasked vst's everywhere.
        out2d = _run_tiled(flat.reshape(-1, lanes), out_dtype, half_scale)
        return out2d.reshape(orig_shape)

    if chan.ndim >= 2:
        # Keep the trailing dim as lanes, collapse the rest into rows; ragged
        # tails are covered by partial boundary blocks (no pad, no slice).
        out2d = _run_tiled(chan.reshape(-1, chan.shape[-1]), out_dtype,
                           half_scale)
        return out2d.reshape(orig_shape)

    # Ragged 1-D stream with an awkward element count: a (1, N) slab would be
    # sublane-sparse, and XLA's fused loop is already bandwidth-optimal here.
    x = chan.astype(jnp.float32) * jnp.float32(2.0 * half_scale)
    return jax.nn.sigmoid(x).astype(out_dtype)


if __name__ == "__main__":
    key = jax.random.PRNGKey(0)
    k1, k2, k3, k4, k5, k6 = jax.random.split(key, 6)

    # Scheduler inputs that the forward ignores (shapes as the module implies).
    batch, seq, hidden = 2, 8, 32
    tensor = jax.random.normal(k1, (batch, seq, hidden), dtype=jnp.float32)
    labels = jax.random.randint(k2, (batch, seq), 0, hidden)
    batch_num = jnp.asarray(5, dtype=jnp.float32)
    epoch = jnp.asarray(1, dtype=jnp.float32)
    cum_batch_num = jnp.asarray(105, dtype=jnp.float32)

    def ref(c):
        return jax.nn.sigmoid(2.0 * c.astype(jnp.float32) * 200.0 / 20.0)

    def run(chan):
        return jax.block_until_ready(
            basic_engagement_forward(tensor, labels, batch_num, epoch,
                                     cum_batch_num, chan))

    # 1) Tiny per-channel index vector (original usage): fused-XLA path.
    chan_small = jnp.arange(8, dtype=jnp.float32)
    out_small = run(chan_small)
    assert out_small.shape == chan_small.shape
    assert jnp.allclose(out_small, ref(chan_small), atol=1e-4)

    # 2) Lane-aligned slab, Pallas path, exact tiling.
    chan_2d = jax.random.normal(k3, (512, 1024), dtype=jnp.float32)
    out_2d = run(chan_2d)
    assert out_2d.shape == chan_2d.shape
    assert jnp.allclose(out_2d, ref(chan_2d), atol=1e-4)

    # 3) Ragged row count: partial final row block, no pad/slice.
    chan_rows = jax.random.normal(k4, (1030, 1024), dtype=jnp.float32) * 0.1
    out_rows = run(chan_rows)
    assert out_rows.shape == chan_rows.shape
    assert jnp.allclose(out_rows, ref(chan_rows), atol=1e-4)

    # 4) Ragged lane count (no lane candidate divides): full-extent-style lane
    #    tiling with a masked partial lane block, still zero HBM glue passes.
    chan_ragged = jax.random.normal(k5, (520, 648), dtype=jnp.float32)
    out_ragged = run(chan_ragged)
    assert out_ragged.shape == chan_ragged.shape
    assert jnp.allclose(out_ragged, ref(chan_ragged), atol=1e-4)

    # 5) bf16 input/output: exercises the 16-sublane tile rounding.
    chan_bf16 = (jax.random.normal(k6, (512, 1024), dtype=jnp.float32)
                 ).astype(jnp.bfloat16)
    out_bf16 = run(chan_bf16)
    assert out_bf16.shape == chan_bf16.shape
    assert out_bf16.dtype == jnp.bfloat16
    assert jnp.allclose(out_bf16.astype(jnp.float32), ref(chan_bf16), atol=1e-2)

    print("KERNEL_OK")
</pallas_src>

<mosaic_0001>
module attributes {stable_mosaic.version = 11 : i64} {
  func.func @_engagement_kernel(%arg0: i32, %arg1: i32, %arg2: memref<512x1024xf32, #tpu.memory_space<vmem>>, %arg3: memref<512x1024xf32, #tpu.memory_space<vmem>>) attributes {dimension_semantics = [#tpu.dimension_semantics<parallel>, #tpu.dimension_semantics<parallel>], iteration_bounds = array<i64: 1, 1>, scalar_prefetch = 0 : i64, scratch_operands = 0 : i64, tpu.core_type = #tpu.core_type<tc>, window_params = [{transform_indices = @transform_0, window_bounds = array<i64: 512, 1024>}, {transform_indices = @transform_1, window_bounds = array<i64: 512, 1024>}]} {
    %c0 = arith.constant 0 : index
    %c0_0 = arith.constant 0 : index
    %0 = vector.load %arg2[%c0, %c0_0] : memref<512x1024xf32, #tpu.memory_space<vmem>>, vector<512x1024xf32>
    %cst = arith.constant 1.000000e+01 : f32
    %1 = vector.broadcast %cst : f32 to vector<512x1024xf32>
    %2 = arith.mulf %0, %1 : vector<512x1024xf32>
    %3 = math.tanh %2 : vector<512x1024xf32>
    %cst_1 = arith.constant 5.000000e-01 : f32
    %4 = vector.broadcast %cst_1 : f32 to vector<512x1024xf32>
    %5 = arith.mulf %4, %3 : vector<512x1024xf32>
    %cst_2 = arith.constant 5.000000e-01 : f32
    %6 = vector.broadcast %cst_2 : f32 to vector<512x1024xf32>
    %7 = arith.addf %5, %6 : vector<512x1024xf32>
    %c0_3 = arith.constant 0 : index
    %c0_4 = arith.constant 0 : index
    %8 = vector.load %arg3[%c0_3, %c0_4] : memref<512x1024xf32, #tpu.memory_space<vmem>>, vector<512x1024xf32>
    tpu.vector_store %arg3[%c0_3, %c0_4], %7 {strides = array<i32>} : memref<512x1024xf32, #tpu.memory_space<vmem>>, vector<512x1024xf32>,
    return
  }
  func.func @transform_0(%arg0: i32, %arg1: i32) -> (i32, i32) {
    %c0_i32 = arith.constant 0 : i32
    return %arg0, %arg1 : i32, i32
  }
  func.func @transform_1(%arg0: i32, %arg1: i32) -> (i32, i32) {
    %c0_i32 = arith.constant 0 : i32
    return %arg0, %arg1 : i32, i32
  }
}

</mosaic_0001>

<llo_original>
// kernel: tpu_custom_call.1
$region0: #{tpu_custom_call.1}
  #allocation0 [shape = 'u32[]', space=smem, size = 0x4, offset = 0x4, fixed_abs, tag = 'smem constant byte address 0x4 - core index']
  #allocation1 [shape = 'u32[72,128]{1,0:T(1,128)}', space=vmem, size = 0x9000, scoped, tag = 'internal scratch']
  %s0 = inlined_call_operand.hbm [shape: f32[512,1024], index: 0, kind: input, shape index: {}]
  %s1 = inlined_call_operand.hbm [shape: f32[512,1024], index: 1, kind: output, shape index: {}]
  %s2 = sld [smem:[#allocation0]]
  $region18: #{tpu_custom_call.1} parent=0
    _
  %s4 = ssub.s32 1, %s2
  %s5 = scalar_select 0, %s4, %s2
  $region1: #{tpu_custom_call.1} parent=0
    #allocation2 [shape = 'u8[2097152]{0}', space=vmem, size = 0x200000, scoped, tag = 'input window, operand 0, single buffered']
    #allocation3 [shape = 's32[1]{0}', space=sflag, size = 0x4, scoped, tag = 'scoped memory for tpu_custom_call.1']
    #allocation4 [shape = 's32[1]{0}', space=sflag, size = 0x4, scoped, tag = 'scoped memory for tpu_custom_call.1']
    #allocation5 [shape = 'u8[2097152]{0}', space=vmem, size = 0x200000, scoped, tag = 'output window, operand 0, single buffered']
    %6 = vsyncpa [#allocation3], 0
    %7 = vsyncpa [#allocation4], 0
    // Predicated region
    $region2: #{tpu_custom_call.1} parent=1 // pred_check
      _
    $region3: #{tpu_custom_call.1} parent=1 // pred_check_branch
      %9 = sbr.rel (0) target = $region5
    $region4: #{tpu_custom_call.1} parent=1 // pred_region
      %11 = vsyncadd [#allocation3], 0
      %s12 = sshll.u32 %s0, 4
      %s13 = int_to_ptr.hbm [resolvable:$true] %s12
      %s14 = sshll.u32 [#allocation2], 4
      %s15 = int_to_ptr.vmem [resolvable:$true] %s14
      %20 = dma.hbm_to_vmem [thread:$0]  %s13, 65536, %s15, [#allocation3], 1024, 1024, 64
    $region5: #{tpu_custom_call.1} parent=1 // pred_fallthru
      _
    // Predicated region
    $region6: #{tpu_custom_call.1} parent=1 // pred_check
      _
    $region7: #{tpu_custom_call.1} parent=1 // pred_check_branch
      %22 = sbr.rel (0) target = $region9
    $region8: #{tpu_custom_call.1} parent=1 // pred_region
      %24 = dma.done [#allocation3], 65536
    $region9: #{tpu_custom_call.1} parent=1 // pred_fallthru
      _
    %v25 = vld [vmem:[#allocation2] sm:$0xff]
    %v26 = vld [vmem:[#allocation2 + $0x8] sm:$0xff]
    %v27 = vld [vmem:[#allocation2 + $0x10] sm:$0xff]
    %v28 = vld [vmem:[#allocation2 + $0x18] sm:$0xff]
    %v29 = vld [vmem:[#allocation2 + $0x20] sm:$0xff]
    %v30 = vld [vmem:[#allocation2 + $0x28] sm:$0xff]
    %v31 = vld [vmem:[#allocation2 + $0x30] sm:$0xff]
    %v32 = vld [vmem:[#allocation2 + $0x38] sm:$0xff]
    %v33 = vld [vmem:[#allocation2 + $0x40] sm:$0xff]
    %v34 = vld [vmem:[#allocation2 + $0x48] sm:$0xff]
    %v35 = vld [vmem:[#allocation2 + $0x50] sm:$0xff]
    %v36 = vld [vmem:[#allocation2 + $0x58] sm:$0xff]
    %v37 = vld [vmem:[#allocation2 + $0x60] sm:$0xff]
    %v38 = vld [vmem:[#allocation2 + $0x68] sm:$0xff]
    %v39 = vld [vmem:[#allocation2 + $0x70] sm:$0xff]
    %v40 = vld [vmem:[#allocation2 + $0x78] sm:$0xff]
    %v41 = vld [vmem:[#allocation2 + $0x80] sm:$0xff]
    %v42 = vld [vmem:[#allocation2 + $0x88] sm:$0xff]
    %v43 = vld [vmem:[#allocation2 + $0x90] sm:$0xff]
    %v44 = vld [vmem:[#allocation2 + $0x98] sm:$0xff]
    %v45 = vld [vmem:[#allocation2 + $0xa0] sm:$0xff]
    %v46 = vld [vmem:[#allocation2 + $0xa8] sm:$0xff]
    %v47 = vld [vmem:[#allocation2 + $0xb0] sm:$0xff]
    %v48 = vld [vmem:[#allocation2 + $0xb8] sm:$0xff]
    %v49 = vld [vmem:[#allocation2 + $0xc0] sm:$0xff]
    %v50 = vld [vmem:[#allocation2 + $0xc8] sm:$0xff]
    %v51 = vld [vmem:[#allocation2 + $0xd0] sm:$0xff]
    %v52 = vld [vmem:[#allocation2 + $0xd8] sm:$0xff]
    %v53 = vld [vmem:[#allocation2 + $0xe0] sm:$0xff]
    %v54 = vld [vmem:[#allocation2 + $0xe8] sm:$0xff]
    %v55 = vld [vmem:[#allocation2 + $0xf0] sm:$0xff]
    %v56 = vld [vmem:[#allocation2 + $0xf8] sm:$0xff]
    %v57 = vld [vmem:[#allocation2 + $0x100] sm:$0xff]
    %v58 = vld [vmem:[#allocation2 + $0x108] sm:$0xff]
    %v59 = vld [vmem:[#allocation2 + $0x110] sm:$0xff]
    %v60 = vld [vmem:[#allocation2 + $0x118] sm:$0xff]
    %v61 = vld [vmem:[#allocation2 + $0x120] sm:$0xff]
    %v62 = vld [vmem:[#allocation2 + $0x128] sm:$0xff]
    %v63 = vld [vmem:[#allocation2 + $0x130] sm:$0xff]
    %v64 = vld [vmem:[#allocation2 + $0x138] sm:$0xff]
    %v65 = vld [vmem:[#allocation2 + $0x140] sm:$0xff]
    %v66 = vld [vmem:[#allocation2 + $0x148] sm:$0xff]
    %v67 = vld [vmem:[#allocation2 + $0x150] sm:$0xff]
    %v68 = vld [vmem:[#allocation2 + $0x158] sm:$0xff]
    %v69 = vld [vmem:[#allocation2 + $0x160] sm:$0xff]
    %v70 = vld [vmem:[#allocation2 + $0x168] sm:$0xff]
    %v71 = vld [vmem:[#allocation2 + $0x170] sm:$0xff]
    %v72 = vld [vmem:[#allocation2 + $0x178] sm:$0xff]
    %v73 = vld [vmem:[#allocation2 + $0x180] sm:$0xff]
    %v74 = vld [vmem:[#allocation2 + $0x188] sm:$0xff]
    %v75 = vld [vmem:[#allocation2 + $0x190] sm:$0xff]
    %v76 = vld [vmem:[#allocation2 + $0x198] sm:$0xff]
    %v77 = vld [vmem:[#allocation2 + $0x1a0] sm:$0xff]
    %v78 = vld [vmem:[#allocation2 + $0x1a8] sm:$0xff]
    %v79 = vld [vmem:[#allocation2 + $0x1b0] sm:$0xff]
    %v80 = vld [vmem:[#allocation2 + $0x1b8] sm:$0xff]
    %v81 = vld [vmem:[#allocation2 + $0x1c0] sm:$0xff]
    %v82 = vld [vmem:[#allocation2 + $0x1c8] sm:$0xff]
    %v83 = vld [vmem:[#allocation2 + $0x1d0] sm:$0xff]
    %v84 = vld [vmem:[#allocation2 + $0x1d8] sm:$0xff]
    %v85 = vld [vmem:[#allocation2 + $0x1e0] sm:$0xff]
    %v86 = vld [vmem:[#allocation2 + $0x1e8] sm:$0xff]
    %v87 = vld [vmem:[#allocation2 + $0x1f0] sm:$0xff]
    %v88 = vld [vmem:[#allocation2 + $0x1f8] sm:$0xff]
    %v89 = vld [vmem:[#allocation2 + $0x200] sm:$0xff]
    %v90 = vld [vmem:[#allocation2 + $0x208] sm:$0xff]
    %v91 = vld [vmem:[#allocation2 + $0x210] sm:$0xff]
    %v92 = vld [vmem:[#allocation2 + $0x218] sm:$0xff]
    %v93 = vld [vmem:[#allocation2 + $0x220] sm:$0xff]
    %v94 = vld [vmem:[#allocation2 + $0x228] sm:$0xff]
    %v95 = vld [vmem:[#allocation2 + $0x230] sm:$0xff]
    %v96 = vld [vmem:[#allocation2 + $0x238] sm:$0xff]
    %v97 = vld [vmem:[#allocation2 + $0x240] sm:$0xff]
    %v98 = vld [vmem:[#allocation2 + $0x248] sm:$0xff]
    %v99 = vld [vmem:[#allocation2 + $0x250] sm:$0xff]
    %v100 = vld [vmem:[#allocation2 + $0x258] sm:$0xff]
    %v101 = vld [vmem:[#allocation2 + $0x260] sm:$0xff]
    %v102 = vld [vmem:[#allocation2 + $0x268] sm:$0xff]
    %v103 = vld [vmem:[#allocation2 + $0x270] sm:$0xff]
    %v104 = vld [vmem:[#allocation2 + $0x278] sm:$0xff]
    %v105 = vld [vmem:[#allocation2 + $0x280] sm:$0xff]
    %v106 = vld [vmem:[#allocation2 + $0x288] sm:$0xff]
    %v107 = vld [vmem:[#allocation2 + $0x290] sm:$0xff]
    %v108 = vld [vmem:[#allocation2 + $0x298] sm:$0xff]
    %v109 = vld [vmem:[#allocation2 + $0x2a0] sm:$0xff]
    %v110 = vld [vmem:[#allocation2 + $0x2a8] sm:$0xff]
    %v111 = vld [vmem:[#allocation2 + $0x2b0] sm:$0xff]
    %v112 = vld [vmem:[#allocation2 + $0x2b8] sm:$0xff]
    %v113 = vld [vmem:[#allocation2 + $0x2c0] sm:$0xff]
    %v114 = vld [vmem:[#allocation2 + $0x2c8] sm:$0xff]
    %v115 = vld [vmem:[#allocation2 + $0x2d0] sm:$0xff]
    %v116 = vld [vmem:[#allocation2 + $0x2d8] sm:$0xff]
    %v117 = vld [vmem:[#allocation2 + $0x2e0] sm:$0xff]
    %v118 = vld [vmem:[#allocation2 + $0x2e8] sm:$0xff]
    %v119 = vld [vmem:[#allocation2 + $0x2f0] sm:$0xff]
    %v120 = vld [vmem:[#allocation2 + $0x2f8] sm:$0xff]
    %v121 = vld [vmem:[#allocation2 + $0x300] sm:$0xff]
    %v122 = vld [vmem:[#allocation2 + $0x308] sm:$0xff]
    %v123 = vld [vmem:[#allocation2 + $0x310] sm:$0xff]
    %v124 = vld [vmem:[#allocation2 + $0x318] sm:$0xff]
    %v125 = vld [vmem:[#allocation2 + $0x320] sm:$0xff]
    %v126 = vld [vmem:[#allocation2 + $0x328] sm:$0xff]
    %v127 = vld [vmem:[#allocation2 + $0x330] sm:$0xff]
    %v128 = vld [vmem:[#allocation2 + $0x338] sm:$0xff]
    %v129 = vld [vmem:[#allocation2 + $0x340] sm:$0xff]
    %v130 = vld [vmem:[#allocation2 + $0x348] sm:$0xff]
    %v131 = vld [vmem:[#allocation2 + $0x350] sm:$0xff]
    %v132 = vld [vmem:[#allocation2 + $0x358] sm:$0xff]
    %v133 = vld [vmem:[#allocation2 + $0x360] sm:$0xff]
    %v134 = vld [vmem:[#allocation2 + $0x368] sm:$0xff]
    %v135 = vld [vmem:[#allocation2 + $0x370] sm:$0xff]
    %v136 = vld [vmem:[#allocation2 + $0x378] sm:$0xff]
    %v137 = vld [vmem:[#allocation2 + $0x380] sm:$0xff]
    %v138 = vld [vmem:[#allocation2 + $0x388] sm:$0xff]
    %v139 = vld [vmem:[#allocation2 + $0x390] sm:$0xff]
    %v140 = vld [vmem:[#allocation2 + $0x398] sm:$0xff]
    %v141 = vld [vmem:[#allocation2 + $0x3a0] sm:$0xff]
    %v142 = vld [vmem:[#allocation2 + $0x3a8] sm:$0xff]
    %v143 = vld [vmem:[#allocation2 + $0x3b0] sm:$0xff]
    %v144 = vld [vmem:[#allocation2 + $0x3b8] sm:$0xff]
    %v145 = vld [vmem:[#allocation2 + $0x3c0] sm:$0xff]
    %v146 = vld [vmem:[#allocation2 + $0x3c8] sm:$0xff]
    %v147 = vld [vmem:[#allocation2 + $0x3d0] sm:$0xff]
    %v148 = vld [vmem:[#allocation2 + $0x3d8] sm:$0xff]
    %v149 = vld [vmem:[#allocation2 + $0x3e0] sm:$0xff]
    %v150 = vld [vmem:[#allocation2 + $0x3e8] sm:$0xff]
    %v151 = vld [vmem:[#allocation2 + $0x3f0] sm:$0xff]
    %v152 = vld [vmem:[#allocation2 + $0x3f8] sm:$0xff]
    %v153 = vld [vmem:[#allocation2 + $0x400] sm:$0xff]
    %v154 = vld [vmem:[#allocation2 + $0x408] sm:$0xff]
    %v155 = vld [vmem:[#allocation2 + $0x410] sm:$0xff]
    %v156 = vld [vmem:[#allocation2 + $0x418] sm:$0xff]
    %v157 = vld [vmem:[#allocation2 + $0x420] sm:$0xff]
    %v158 = vld [vmem:[#allocation2 + $0x428] sm:$0xff]
    %v159 = vld [vmem:[#allocation2 + $0x430] sm:$0xff]
    %v160 = vld [vmem:[#allocation2 + $0x438] sm:$0xff]
    %v161 = vld [vmem:[#allocation2 + $0x440] sm:$0xff]
    %v162 = vld [vmem:[#allocation2 + $0x448] sm:$0xff]
    %v163 = vld [vmem:[#allocation2 + $0x450] sm:$0xff]
    %v164 = vld [vmem:[#allocation2 + $0x458] sm:$0xff]
    %v165 = vld [vmem:[#allocation2 + $0x460] sm:$0xff]
    %v166 = vld [vmem:[#allocation2 + $0x468] sm:$0xff]
    %v167 = vld [vmem:[#allocation2 + $0x470] sm:$0xff]
    %v168 = vld [vmem:[#allocation2 + $0x478] sm:$0xff]
    %v169 = vld [vmem:[#allocation2 + $0x480] sm:$0xff]
    %v170 = vld [vmem:[#allocation2 + $0x488] sm:$0xff]
    %v171 = vld [vmem:[#allocation2 + $0x490] sm:$0xff]
    %v172 = vld [vmem:[#allocation2 + $0x498] sm:$0xff]
    %v173 = vld [vmem:[#allocation2 + $0x4a0] sm:$0xff]
    %v174 = vld [vmem:[#allocation2 + $0x4a8] sm:$0xff]
    %v175 = vld [vmem:[#allocation2 + $0x4b0] sm:$0xff]
    %v176 = vld [vmem:[#allocation2 + $0x4b8] sm:$0xff]
    %v177 = vld [vmem:[#allocation2 + $0x4c0] sm:$0xff]
    %v178 = vld [vmem:[#allocation2 + $0x4c8] sm:$0xff]
    %v179 = vld [vmem:[#allocation2 + $0x4d0] sm:$0xff]
    %v180 = vld [vmem:[#allocation2 + $0x4d8] sm:$0xff]
    %v181 = vld [vmem:[#allocation2 + $0x4e0] sm:$0xff]
    %v182 = vld [vmem:[#allocation2 + $0x4e8] sm:$0xff]
    %v183 = vld [vmem:[#allocation2 + $0x4f0] sm:$0xff]
    %v184 = vld [vmem:[#allocation2 + $0x4f8] sm:$0xff]
    %v185 = vld [vmem:[#allocation2 + $0x500] sm:$0xff]
    %v186 = vld [vmem:[#allocation2 + $0x508] sm:$0xff]
    %v187 = vld [vmem:[#allocation2 + $0x510] sm:$0xff]
    %v188 = vld [vmem:[#allocation2 + $0x518] sm:$0xff]
    %v189 = vld [vmem:[#allocation2 + $0x520] sm:$0xff]
    %v190 = vld [vmem:[#allocation2 + $0x528] sm:$0xff]
    %v191 = vld [vmem:[#allocation2 + $0x530] sm:$0xff]
    %v192 = vld [vmem:[#allocation2 + $0x538] sm:$0xff]
    %v193 = vld [vmem:[#allocation2 + $0x540] sm:$0xff]
    %v194 = vld [vmem:[#allocation2 + $0x548] sm:$0xff]
    %v195 = vld [vmem:[#allocation2 + $0x550] sm:$0xff]
    %v196 = vld [vmem:[#allocation2 + $0x558] sm:$0xff]
    %v197 = vld [vmem:[#allocation2 + $0x560] sm:$0xff]
    %v198 = vld [vmem:[#allocation2 + $0x568] sm:$0xff]
    %v199 = vld [vmem:[#allocation2 + $0x570] sm:$0xff]
    %v200 = vld [vmem:[#allocation2 + $0x578] sm:$0xff]
    %v201 = vld [vmem:[#allocation2 + $0x580] sm:$0xff]
    %v202 = vld [vmem:[#allocation2 + $0x588] sm:$0xff]
    %v203 = vld [vmem:[#allocation2 + $0x590] sm:$0xff]
    %v204 = vld [vmem:[#allocation2 + $0x598] sm:$0xff]
    %v205 = vld [vmem:[#allocation2 + $0x5a0] sm:$0xff]
    %v206 = vld [vmem:[#allocation2 + $0x5a8] sm:$0xff]
    %v207 = vld [vmem:[#allocation2 + $0x5b0] sm:$0xff]
    %v208 = vld [vmem:[#allocation2 + $0x5b8] sm:$0xff]
    %v209 = vld [vmem:[#allocation2 + $0x5c0] sm:$0xff]
    %v210 = vld [vmem:[#allocation2 + $0x5c8] sm:$0xff]
    %v211 = vld [vmem:[#allocation2 + $0x5d0] sm:$0xff]
    %v212 = vld [vmem:[#allocation2 + $0x5d8] sm:$0xff]
    %v213 = vld [vmem:[#allocation2 + $0x5e0] sm:$0xff]
    %v214 = vld [vmem:[#allocation2 + $0x5e8] sm:$0xff]
    %v215 = vld [vmem:[#allocation2 + $0x5f0] sm:$0xff]
    %v216 = vld [vmem:[#allocation2 + $0x5f8] sm:$0xff]
    %v217 = vld [vmem:[#allocation2 + $0x600] sm:$0xff]
    %v218 = vld [vmem:[#allocation2 + $0x608] sm:$0xff]
    %v219 = vld [vmem:[#allocation2 + $0x610] sm:$0xff]
    %v220 = vld [vmem:[#allocation2 + $0x618] sm:$0xff]
    %v221 = vld [vmem:[#allocation2 + $0x620] sm:$0xff]
    %v222 = vld [vmem:[#allocation2 + $0x628] sm:$0xff]
    %v223 = vld [vmem:[#allocation2 + $0x630] sm:$0xff]
    %v224 = vld [vmem:[#allocation2 + $0x638] sm:$0xff]
    %v225 = vld [vmem:[#allocation2 + $0x640] sm:$0xff]
    %v226 = vld [vmem:[#allocation2 + $0x648] sm:$0xff]
    %v227 = vld [vmem:[#allocation2 + $0x650] sm:$0xff]
    %v228 = vld [vmem:[#allocation2 + $0x658] sm:$0xff]
    %v229 = vld [vmem:[#allocation2 + $0x660] sm:$0xff]
    %v230 = vld [vmem:[#allocation2 + $0x668] sm:$0xff]
    %v231 = vld [vmem:[#allocation2 + $0x670] sm:$0xff]
    %v232 = vld [vmem:[#allocation2 + $0x678] sm:$0xff]
    %v233 = vld [vmem:[#allocation2 + $0x680] sm:$0xff]
    %v234 = vld [vmem:[#allocation2 + $0x688] sm:$0xff]
    %v235 = vld [vmem:[#allocation2 + $0x690] sm:$0xff]
    %v236 = vld [vmem:[#allocation2 + $0x698] sm:$0xff]
    %v237 = vld [vmem:[#allocation2 + $0x6a0] sm:$0xff]
    %v238 = vld [vmem:[#allocation2 + $0x6a8] sm:$0xff]
    %v239 = vld [vmem:[#allocation2 + $0x6b0] sm:$0xff]
    %v240 = vld [vmem:[#allocation2 + $0x6b8] sm:$0xff]
    %v241 = vld [vmem:[#allocation2 + $0x6c0] sm:$0xff]
    %v242 = vld [vmem:[#allocation2 + $0x6c8] sm:$0xff]
    %v243 = vld [vmem:[#allocation2 + $0x6d0] sm:$0xff]
    %v244 = vld [vmem:[#allocation2 + $0x6d8] sm:$0xff]
    %v245 = vld [vmem:[#allocation2 + $0x6e0] sm:$0xff]
    %v246 = vld [vmem:[#allocation2 + $0x6e8] sm:$0xff]
    %v247 = vld [vmem:[#allocation2 + $0x6f0] sm:$0xff]
    %v248 = vld [vmem:[#allocation2 + $0x6f8] sm:$0xff]
    %v249 = vld [vmem:[#allocation2 + $0x700] sm:$0xff]
    %v250 = vld [vmem:[#allocation2 + $0x708] sm:$0xff]
    %v251 = vld [vmem:[#allocation2 + $0x710] sm:$0xff]
    %v252 = vld [vmem:[#allocation2 + $0x718] sm:$0xff]
    %v253 = vld [vmem:[#allocation2 + $0x720] sm:$0xff]
    %v254 = vld [vmem:[#allocation2 + $0x728] sm:$0xff]
    %v255 = vld [vmem:[#allocation2 + $0x730] sm:$0xff]
    %v256 = vld [vmem:[#allocation2 + $0x738] sm:$0xff]
    %v257 = vld [vmem:[#allocation2 + $0x740] sm:$0xff]
    %v258 = vld [vmem:[#allocation2 + $0x748] sm:$0xff]
    %v259 = vld [vmem:[#allocation2 + $0x750] sm:$0xff]
    %v260 = vld [vmem:[#allocation2 + $0x758] sm:$0xff]
    %v261 = vld [vmem:[#allocation2 + $0x760] sm:$0xff]
    %v262 = vld [vmem:[#allocation2 + $0x768] sm:$0xff]
    %v263 = vld [vmem:[#allocation2 + $0x770] sm:$0xff]
    %v264 = vld [vmem:[#allocation2 + $0x778] sm:$0xff]
    %v265 = vld [vmem:[#allocation2 + $0x780] sm:$0xff]
    %v266 = vld [vmem:[#allocation2 + $0x788] sm:$0xff]
    %v267 = vld [vmem:[#allocation2 + $0x790] sm:$0xff]
    %v268 = vld [vmem:[#allocation2 + $0x798] sm:$0xff]
    %v269 = vld [vmem:[#allocation2 + $0x7a0] sm:$0xff]
    %v270 = vld [vmem:[#allocation2 + $0x7a8] sm:$0xff]
    %v271 = vld [vmem:[#allocation2 + $0x7b0] sm:$0xff]
    %v272 = vld [vmem:[#allocation2 + $0x7b8] sm:$0xff]
    %v273 = vld [vmem:[#allocation2 + $0x7c0] sm:$0xff]
    %v274 = vld [vmem:[#allocation2 + $0x7c8] sm:$0xff]
    %v275 = vld [vmem:[#allocation2 + $0x7d0] sm:$0xff]
    %v276 = vld [vmem:[#allocation2 + $0x7d8] sm:$0xff]
    %v277 = vld [vmem:[#allocation2 + $0x7e0] sm:$0xff]
    %v278 = vld [vmem:[#allocation2 + $0x7e8] sm:$0xff]
    %v279 = vld [vmem:[#allocation2 + $0x7f0] sm:$0xff]
    %v280 = vld [vmem:[#allocation2 + $0x7f8] sm:$0xff]
    %v281 = vld [vmem:[#allocation2 + $0x800] sm:$0xff]
    %v282 = vld [vmem:[#allocation2 + $0x808] sm:$0xff]
    %v283 = vld [vmem:[#allocation2 + $0x810] sm:$0xff]
    %v284 = vld [vmem:[#allocation2 + $0x818] sm:$0xff]
    %v285 = vld [vmem:[#allocation2 + $0x820] sm:$0xff]
    %v286 = vld [vmem:[#allocation2 + $0x828] sm:$0xff]
    %v287 = vld [vmem:[#allocation2 + $0x830] sm:$0xff]
    %v288 = vld [vmem:[#allocation2 + $0x838] sm:$0xff]
    %v289 = vld [vmem:[#allocation2 + $0x840] sm:$0xff]
    %v290 = vld [vmem:[#allocation2 + $0x848] sm:$0xff]
    %v291 = vld [vmem:[#allocation2 + $0x850] sm:$0xff]
    %v292 = vld [vmem:[#allocation2 + $0x858] sm:$0xff]
    %v293 = vld [vmem:[#allocation2 + $0x860] sm:$0xff]
    %v294 = vld [vmem:[#allocation2 + $0x868] sm:$0xff]
    %v295 = vld [vmem:[#allocation2 + $0x870] sm:$0xff]
    %v296 = vld [vmem:[#allocation2 + $0x878] sm:$0xff]
    %v297 = vld [vmem:[#allocation2 + $0x880] sm:$0xff]
    %v298 = vld [vmem:[#allocation2 + $0x888] sm:$0xff]
    %v299 = vld [vmem:[#allocation2 + $0x890] sm:$0xff]
    %v300 = vld [vmem:[#allocation2 + $0x898] sm:$0xff]
    %v301 = vld [vmem:[#allocation2 + $0x8a0] sm:$0xff]
    %v302 = vld [vmem:[#allocation2 + $0x8a8] sm:$0xff]
    %v303 = vld [vmem:[#allocation2 + $0x8b0] sm:$0xff]
    %v304 = vld [vmem:[#allocation2 + $0x8b8] sm:$0xff]
    %v305 = vld [vmem:[#allocation2 + $0x8c0] sm:$0xff]
    %v306 = vld [vmem:[#allocation2 + $0x8c8] sm:$0xff]
    %v307 = vld [vmem:[#allocation2 + $0x8d0] sm:$0xff]
    %v308 = vld [vmem:[#allocation2 + $0x8d8] sm:$0xff]
    %v309 = vld [vmem:[#allocation2 + $0x8e0] sm:$0xff]
    %v310 = vld [vmem:[#allocation2 + $0x8e8] sm:$0xff]
    %v311 = vld [vmem:[#allocation2 + $0x8f0] sm:$0xff]
    %v312 = vld [vmem:[#allocation2 + $0x8f8] sm:$0xff]
    %v313 = vld [vmem:[#allocation2 + $0x900] sm:$0xff]
    %v314 = vld [vmem:[#allocation2 + $0x908] sm:$0xff]
    %v315 = vld [vmem:[#allocation2 + $0x910] sm:$0xff]
    %v316 = vld [vmem:[#allocation2 + $0x918] sm:$0xff]
    %v317 = vld [vmem:[#allocation2 + $0x920] sm:$0xff]
    %v318 = vld [vmem:[#allocation2 + $0x928] sm:$0xff]
    %v319 = vld [vmem:[#allocation2 + $0x930] sm:$0xff]
    %v320 = vld [vmem:[#allocation2 + $0x938] sm:$0xff]
    %v321 = vld [vmem:[#allocation2 + $0x940] sm:$0xff]
    %v322 = vld [vmem:[#allocation2 + $0x948] sm:$0xff]
    %v323 = vld [vmem:[#allocation2 + $0x950] sm:$0xff]
    %v324 = vld [vmem:[#allocation2 + $0x958] sm:$0xff]
    %v325 = vld [vmem:[#allocation2 + $0x960] sm:$0xff]
    %v326 = vld [vmem:[#allocation2 + $0x968] sm:$0xff]
    %v327 = vld [vmem:[#allocation2 + $0x970] sm:$0xff]
    %v328 = vld [vmem:[#allocation2 + $0x978] sm:$0xff]
    %v329 = vld [vmem:[#allocation2 + $0x980] sm:$0xff]
    %v330 = vld [vmem:[#allocation2 + $0x988] sm:$0xff]
    %v331 = vld [vmem:[#allocation2 + $0x990] sm:$0xff]
    %v332 = vld [vmem:[#allocation2 + $0x998] sm:$0xff]
    %v333 = vld [vmem:[#allocation2 + $0x9a0] sm:$0xff]
    %v334 = vld [vmem:[#allocation2 + $0x9a8] sm:$0xff]
    %v335 = vld [vmem:[#allocation2 + $0x9b0] sm:$0xff]
    %v336 = vld [vmem:[#allocation2 + $0x9b8] sm:$0xff]
    %v337 = vld [vmem:[#allocation2 + $0x9c0] sm:$0xff]
    %v338 = vld [vmem:[#allocation2 + $0x9c8] sm:$0xff]
    %v339 = vld [vmem:[#allocation2 + $0x9d0] sm:$0xff]
    %v340 = vld [vmem:[#allocation2 + $0x9d8] sm:$0xff]
    %v341 = vld [vmem:[#allocation2 + $0x9e0] sm:$0xff]
    %v342 = vld [vmem:[#allocation2 + $0x9e8] sm:$0xff]
    %v343 = vld [vmem:[#allocation2 + $0x9f0] sm:$0xff]
    %v344 = vld [vmem:[#allocation2 + $0x9f8] sm:$0xff]
    %v345 = vld [vmem:[#allocation2 + $0xa00] sm:$0xff]
    %v346 = vld [vmem:[#allocation2 + $0xa08] sm:$0xff]
    %v347 = vld [vmem:[#allocation2 + $0xa10] sm:$0xff]
    %v348 = vld [vmem:[#allocation2 + $0xa18] sm:$0xff]
    %v349 = vld [vmem:[#allocation2 + $0xa20] sm:$0xff]
    %v350 = vld [vmem:[#allocation2 + $0xa28] sm:$0xff]
    %v351 = vld [vmem:[#allocation2 + $0xa30] sm:$0xff]
    %v352 = vld [vmem:[#allocation2 + $0xa38] sm:$0xff]
    %v353 = vld [vmem:[#allocation2 + $0xa40] sm:$0xff]
    %v354 = vld [vmem:[#allocation2 + $0xa48] sm:$0xff]
    %v355 = vld [vmem:[#allocation2 + $0xa50] sm:$0xff]
    %v356 = vld [vmem:[#allocation2 + $0xa58] sm:$0xff]
    %v357 = vld [vmem:[#allocation2 + $0xa60] sm:$0xff]
    %v358 = vld [vmem:[#allocation2 + $0xa68] sm:$0xff]
    %v359 = vld [vmem:[#allocation2 + $0xa70] sm:$0xff]
    %v360 = vld [vmem:[#allocation2 + $0xa78] sm:$0xff]
    %v361 = vld [vmem:[#allocation2 + $0xa80] sm:$0xff]
    %v362 = vld [vmem:[#allocation2 + $0xa88] sm:$0xff]
    %v363 = vld [vmem:[#allocation2 + $0xa90] sm:$0xff]
    %v364 = vld [vmem:[#allocation2 + $0xa98] sm:$0xff]
    %v365 = vld [vmem:[#allocation2 + $0xaa0] sm:$0xff]
    %v366 = vld [vmem:[#allocation2 + $0xaa8] sm:$0xff]
    %v367 = vld [vmem:[#allocation2 + $0xab0] sm:$0xff]
    %v368 = vld [vmem:[#allocation2 + $0xab8] sm:$0xff]
    %v369 = vld [vmem:[#allocation2 + $0xac0] sm:$0xff]
    %v370 = vld [vmem:[#allocation2 + $0xac8] sm:$0xff]
    %v371 = vld [vmem:[#allocation2 + $0xad0] sm:$0xff]
    %v372 = vld [vmem:[#allocation2 + $0xad8] sm:$0xff]
    %v373 = vld [vmem:[#allocation2 + $0xae0] sm:$0xff]
    %v374 = vld [vmem:[#allocation2 + $0xae8] sm:$0xff]
    %v375 = vld [vmem:[#allocation2 + $0xaf0] sm:$0xff]
    %v376 = vld [vmem:[#allocation2 + $0xaf8] sm:$0xff]
    %v377 = vld [vmem:[#allocation2 + $0xb00] sm:$0xff]
    %v378 = vld [vmem:[#allocation2 + $0xb08] sm:$0xff]
    %v379 = vld [vmem:[#allocation2 + $0xb10] sm:$0xff]
    %v380 = vld [vmem:[#allocation2 + $0xb18] sm:$0xff]
    %v381 = vld [vmem:[#allocation2 + $0xb20] sm:$0xff]
    %v382 = vld [vmem:[#allocation2 + $0xb28] sm:$0xff]
    %v383 = vld [vmem:[#allocation2 + $0xb30] sm:$0xff]
    %v384 = vld [vmem:[#allocation2 + $0xb38] sm:$0xff]
    %v385 = vld [vmem:[#allocation2 + $0xb40] sm:$0xff]
    %v386 = vld [vmem:[#allocation2 + $0xb48] sm:$0xff]
    %v387 = vld [vmem:[#allocation2 + $0xb50] sm:$0xff]
    %v388 = vld [vmem:[#allocation2 + $0xb58] sm:$0xff]
    %v389 = vld [vmem:[#allocation2 + $0xb60] sm:$0xff]
    %v390 = vld [vmem:[#allocation2 + $0xb68] sm:$0xff]
    %v391 = vld [vmem:[#allocation2 + $0xb70] sm:$0xff]
    %v392 = vld [vmem:[#allocation2 + $0xb78] sm:$0xff]
    %v393 = vld [vmem:[#allocation2 + $0xb80] sm:$0xff]
    %v394 = vld [vmem:[#allocation2 + $0xb88] sm:$0xff]
    %v395 = vld [vmem:[#allocation2 + $0xb90] sm:$0xff]
    %v396 = vld [vmem:[#allocation2 + $0xb98] sm:$0xff]
    %v397 = vld [vmem:[#allocation2 + $0xba0] sm:$0xff]
    %v398 = vld [vmem:[#allocation2 + $0xba8] sm:$0xff]
    %v399 = vld [vmem:[#allocation2 + $0xbb0] sm:$0xff]
    %v400 = vld [vmem:[#allocation2 + $0xbb8] sm:$0xff]
    %v401 = vld [vmem:[#allocation2 + $0xbc0] sm:$0xff]
    %v402 = vld [vmem:[#allocation2 + $0xbc8] sm:$0xff]
    %v403 = vld [vmem:[#allocation2 + $0xbd0] sm:$0xff]
    %v404 = vld [vmem:[#allocation2 + $0xbd8] sm:$0xff]
    %v405 = vld [vmem:[#allocation2 + $0xbe0] sm:$0xff]
    %v406 = vld [vmem:[#allocation2 + $0xbe8] sm:$0xff]
    %v407 = vld [vmem:[#allocation2 + $0xbf0] sm:$0xff]
    %v408 = vld [vmem:[#allocation2 + $0xbf8] sm:$0xff]
    %v409 = vld [vmem:[#allocation2 + $0xc00] sm:$0xff]
    %v410 = vld [vmem:[#allocation2 + $0xc08] sm:$0xff]
    %v411 = vld [vmem:[#allocation2 + $0xc10] sm:$0xff]
    %v412 = vld [vmem:[#allocation2 + $0xc18] sm:$0xff]
    %v413 = vld [vmem:[#allocation2 + $0xc20] sm:$0xff]
    %v414 = vld [vmem:[#allocation2 + $0xc28] sm:$0xff]
    %v415 = vld [vmem:[#allocation2 + $0xc30] sm:$0xff]
    %v416 = vld [vmem:[#allocation2 + $0xc38] sm:$0xff]
    %v417 = vld [vmem:[#allocation2 + $0xc40] sm:$0xff]
    %v418 = vld [vmem:[#allocation2 + $0xc48] sm:$0xff]
    %v419 = vld [vmem:[#allocation2 + $0xc50] sm:$0xff]
    %v420 = vld [vmem:[#allocation2 + $0xc58] sm:$0xff]
    %v421 = vld [vmem:[#allocation2 + $0xc60] sm:$0xff]
    %v422 = vld [vmem:[#allocation2 + $0xc68] sm:$0xff]
    %v423 = vld [vmem:[#allocation2 + $0xc70] sm:$0xff]
    %v424 = vld [vmem:[#allocation2 + $0xc78] sm:$0xff]
    %v425 = vld [vmem:[#allocation2 + $0xc80] sm:$0xff]
    %v426 = vld [vmem:[#allocation2 + $0xc88] sm:$0xff]
    %v427 = vld [vmem:[#allocation2 + $0xc90] sm:$0xff]
    %v428 = vld [vmem:[#allocation2 + $0xc98] sm:$0xff]
    %v429 = vld [vmem:[#allocation2 + $0xca0] sm:$0xff]
    %v430 = vld [vmem:[#allocation2 + $0xca8] sm:$0xff]
    %v431 = vld [vmem:[#allocation2 + $0xcb0] sm:$0xff]
    %v432 = vld [vmem:[#allocation2 + $0xcb8] sm:$0xff]
    %v433 = vld [vmem:[#allocation2 + $0xcc0] sm:$0xff]
    %v434 = vld [vmem:[#allocation2 + $0xcc8] sm:$0xff]
    %v435 = vld [vmem:[#allocation2 + $0xcd0] sm:$0xff]
    %v436 = vld [vmem:[#allocation2 + $0xcd8] sm:$0xff]
    %v437 = vld [vmem:[#allocation2 + $0xce0] sm:$0xff]
    %v438 = vld [vmem:[#allocation2 + $0xce8] sm:$0xff]
    %v439 = vld [vmem:[#allocation2 + $0xcf0] sm:$0xff]
    %v440 = vld [vmem:[#allocation2 + $0xcf8] sm:$0xff]
    %v441 = vld [vmem:[#allocation2 + $0xd00] sm:$0xff]
    %v442 = vld [vmem:[#allocation2 + $0xd08] sm:$0xff]
    %v443 = vld [vmem:[#allocation2 + $0xd10] sm:$0xff]
    %v444 = vld [vmem:[#allocation2 + $0xd18] sm:$0xff]
    %v445 = vld [vmem:[#allocation2 + $0xd20] sm:$0xff]
    %v446 = vld [vmem:[#allocation2 + $0xd28] sm:$0xff]
    %v447 = vld [vmem:[#allocation2 + $0xd30] sm:$0xff]
    %v448 = vld [vmem:[#allocation2 + $0xd38] sm:$0xff]
    %v449 = vld [vmem:[#allocation2 + $0xd40] sm:$0xff]
    %v450 = vld [vmem:[#allocation2 + $0xd48] sm:$0xff]
    %v451 = vld [vmem:[#allocation2 + $0xd50] sm:$0xff]
    %v452 = vld [vmem:[#allocation2 + $0xd58] sm:$0xff]
    %v453 = vld [vmem:[#allocation2 + $0xd60] sm:$0xff]
    %v454 = vld [vmem:[#allocation2 + $0xd68] sm:$0xff]
    %v455 = vld [vmem:[#allocation2 + $0xd70] sm:$0xff]
    %v456 = vld [vmem:[#allocation2 + $0xd78] sm:$0xff]
    %v457 = vld [vmem:[#allocation2 + $0xd80] sm:$0xff]
    %v458 = vld [vmem:[#allocation2 + $0xd88] sm:$0xff]
    %v459 = vld [vmem:[#allocation2 + $0xd90] sm:$0xff]
    %v460 = vld [vmem:[#allocation2 + $0xd98] sm:$0xff]
    %v461 = vld [vmem:[#allocation2 + $0xda0] sm:$0xff]
    %v462 = vld [vmem:[#allocation2 + $0xda8] sm:$0xff]
    %v463 = vld [vmem:[#allocation2 + $0xdb0] sm:$0xff]
    %v464 = vld [vmem:[#allocation2 + $0xdb8] sm:$0xff]
    %v465 = vld [vmem:[#allocation2 + $0xdc0] sm:$0xff]
    %v466 = vld [vmem:[#allocation2 + $0xdc8] sm:$0xff]
    %v467 = vld [vmem:[#allocation2 + $0xdd0] sm:$0xff]
    %v468 = vld [vmem:[#allocation2 + $0xdd8] sm:$0xff]
    %v469 = vld [vmem:[#allocation2 + $0xde0] sm:$0xff]
    %v470 = vld [vmem:[#allocation2 + $0xde8] sm:$0xff]
    %v471 = vld [vmem:[#allocation2 + $0xdf0] sm:$0xff]
    %v472 = vld [vmem:[#allocation2 + $0xdf8] sm:$0xff]
    %v473 = vld [vmem:[#allocation2 + $0xe00] sm:$0xff]
    %v474 = vld [vmem:[#allocation2 + $0xe08] sm:$0xff]
    %v475 = vld [vmem:[#allocation2 + $0xe10] sm:$0xff]
    %v476 = vld [vmem:[#allocation2 + $0xe18] sm:$0xff]
    %v477 = vld [vmem:[#allocation2 + $0xe20] sm:$0xff]
    %v478 = vld [vmem:[#allocation2 + $0xe28] sm:$0xff]
    %v479 = vld [vmem:[#allocation2 + $0xe30] sm:$0xff]
    %v480 = vld [vmem:[#allocation2 + $0xe38] sm:$0xff]
    %v481 = vld [vmem:[#allocation2 + $0xe40] sm:$0xff]
    %v482 = vld [vmem:[#allocation2 + $0xe48] sm:$0xff]
    %v483 = vld [vmem:[#allocation2 + $0xe50] sm:$0xff]
    %v484 = vld [vmem:[#allocation2 + $0xe58] sm:$0xff]
    %v485 = vld [vmem:[#allocation2 + $0xe60] sm:$0xff]
    %v486 = vld [vmem:[#allocation2 + $0xe68] sm:$0xff]
    %v487 = vld [vmem:[#allocation2 + $0xe70] sm:$0xff]
    %v488 = vld [vmem:[#allocation2 + $0xe78] sm:$0xff]
    %v489 = vld [vmem:[#allocation2 + $0xe80] sm:$0xff]
    %v490 = vld [vmem:[#allocation2 + $0xe88] sm:$0xff]
    %v491 = vld [vmem:[#allocation2 + $0xe90] sm:$0xff]
    %v492 = vld [vmem:[#allocation2 + $0xe98] sm:$0xff]
    %v493 = vld [vmem:[#allocation2 + $0xea0] sm:$0xff]
    %v494 = vld [vmem:[#allocation2 + $0xea8] sm:$0xff]
    %v495 = vld [vmem:[#allocation2 + $0xeb0] sm:$0xff]
    %v496 = vld [vmem:[#allocation2 + $0xeb8] sm:$0xff]
    %v497 = vld [vmem:[#allocation2 + $0xec0] sm:$0xff]
    %v498 = vld [vmem:[#allocation2 + $0xec8] sm:$0xff]
    %v499 = vld [vmem:[#allocation2 + $0xed0] sm:$0xff]
    %v500 = vld [vmem:[#allocation2 + $0xed8] sm:$0xff]
    %v501 = vld [vmem:[#allocation2 + $0xee0] sm:$0xff]
    %v502 = vld [vmem:[#allocation2 + $0xee8] sm:$0xff]
    %v503 = vld [vmem:[#allocation2 + $0xef0] sm:$0xff]
    %v504 = vld [vmem:[#allocation2 + $0xef8] sm:$0xff]
    %v505 = vld [vmem:[#allocation2 + $0xf00] sm:$0xff]
    %v506 = vld [vmem:[#allocation2 + $0xf08] sm:$0xff]
    %v507 = vld [vmem:[#allocation2 + $0xf10] sm:$0xff]
    %v508 = vld [vmem:[#allocation2 + $0xf18] sm:$0xff]
    %v509 = vld [vmem:[#allocation2 + $0xf20] sm:$0xff]
    %v510 = vld [vmem:[#allocation2 + $0xf28] sm:$0xff]
    %v511 = vld [vmem:[#allocation2 + $0xf30] sm:$0xff]
    %v512 = vld [vmem:[#allocation2 + $0xf38] sm:$0xff]
    %v513 = vld [vmem:[#allocation2 + $0xf40] sm:$0xff]
    %v514 = vld [vmem:[#allocation2 + $0xf48] sm:$0xff]
    %v515 = vld [vmem:[#allocation2 + $0xf50] sm:$0xff]
    %v516 = vld [vmem:[#allocation2 + $0xf58] sm:$0xff]
    %v517 = vld [vmem:[#allocation2 + $0xf60] sm:$0xff]
    %v518 = vld [vmem:[#allocation2 + $0xf68] sm:$0xff]
    %v519 = vld [vmem:[#allocation2 + $0xf70] sm:$0xff]
    %v520 = vld [vmem:[#allocation2 + $0xf78] sm:$0xff]
    %v521 = vld [vmem:[#allocation2 + $0xf80] sm:$0xff]
    %v522 = vld [vmem:[#allocation2 + $0xf88] sm:$0xff]
    %v523 = vld [vmem:[#allocation2 + $0xf90] sm:$0xff]
    %v524 = vld [vmem:[#allocation2 + $0xf98] sm:$0xff]
    %v525 = vld [vmem:[#allocation2 + $0xfa0] sm:$0xff]
    %v526 = vld [vmem:[#allocation2 + $0xfa8] sm:$0xff]
    %v527 = vld [vmem:[#allocation2 + $0xfb0] sm:$0xff]
    %v528 = vld [vmem:[#allocation2 + $0xfb8] sm:$0xff]
    %v529 = vld [vmem:[#allocation2 + $0xfc0] sm:$0xff]
    %v530 = vld [vmem:[#allocation2 + $0xfc8] sm:$0xff]
    %v531 = vld [vmem:[#allocation2 + $0xfd0] sm:$0xff]
    %v532 = vld [vmem:[#allocation2 + $0xfd8] sm:$0xff]
    %v533 = vld [vmem:[#allocation2 + $0xfe0] sm:$0xff]
    %v534 = vld [vmem:[#allocation2 + $0xfe8] sm:$0xff]
    %v535 = vld [vmem:[#allocation2 + $0xff0] sm:$0xff]
    %v536 = vld [vmem:[#allocation2 + $0xff8] sm:$0xff]
    %v537 = vmul.f32 %v25, 10.0
    %v538 = vmul.f32 %v26, 10.0
    %v539 = vmul.f32 %v27, 10.0
    %v540 = vmul.f32 %v28, 10.0
    %v541 = vmul.f32 %v29, 10.0
    %v542 = vmul.f32 %v30, 10.0
    %v543 = vmul.f32 %v31, 10.0
    %v544 = vmul.f32 %v32, 10.0
    %v545 = vmul.f32 %v33, 10.0
    %v546 = vmul.f32 %v34, 10.0
    %v547 = vmul.f32 %v35, 10.0
    %v548 = vmul.f32 %v36, 10.0
    %v549 = vmul.f32 %v37, 10.0
    %v550 = vmul.f32 %v38, 10.0
    %v551 = vmul.f32 %v39, 10.0
    %v552 = vmul.f32 %v40, 10.0
    %v553 = vmul.f32 %v41, 10.0
    %v554 = vmul.f32 %v42, 10.0
    %v555 = vmul.f32 %v43, 10.0
    %v556 = vmul.f32 %v44, 10.0
    %v557 = vmul.f32 %v45, 10.0
    %v558 = vmul.f32 %v46, 10.0
    %v559 = vmul.f32 %v47, 10.0
    %v560 = vmul.f32 %v48, 10.0
    %v561 = vmul.f32 %v49, 10.0
    %v562 = vmul.f32 %v50, 10.0
    %v563 = vmul.f32 %v51, 10.0
    %v564 = vmul.f32 %v52, 10.0
    %v565 = vmul.f32 %v53, 10.0
    %v566 = vmul.f32 %v54, 10.0
    %v567 = vmul.f32 %v55, 10.0
    %v568 = vmul.f32 %v56, 10.0
    %v569 = vmul.f32 %v57, 10.0
    %v570 = vmul.f32 %v58, 10.0
    %v571 = vmul.f32 %v59, 10.0
    %v572 = vmul.f32 %v60, 10.0
    %v573 = vmul.f32 %v61, 10.0
    %v574 = vmul.f32 %v62, 10.0
    %v575 = vmul.f32 %v63, 10.0
    %v576 = vmul.f32 %v64, 10.0
    %v577 = vmul.f32 %v65, 10.0
    %v578 = vmul.f32 %v66, 10.0
    %v579 = vmul.f32 %v67, 10.0
    %v580 = vmul.f32 %v68, 10.0
    %v581 = vmul.f32 %v69, 10.0
    %v582 = vmul.f32 %v70, 10.0
    %v583 = vmul.f32 %v71, 10.0
    %v584 = vmul.f32 %v72, 10.0
    %v585 = vmul.f32 %v73, 10.0
    %v586 = vmul.f32 %v74, 10.0
    %v587 = vmul.f32 %v75, 10.0
    %v588 = vmul.f32 %v76, 10.0
    %v589 = vmul.f32 %v77, 10.0
    %v590 = vmul.f32 %v78, 10.0
    %v591 = vmul.f32 %v79, 10.0
    %v592 = vmul.f32 %v80, 10.0
    %v593 = vmul.f32 %v81, 10.0
    %v594 = vmul.f32 %v82, 10.0
    %v595 = vmul.f32 %v83, 10.0
    %v596 = vmul.f32 %v84, 10.0
    %v597 = vmul.f32 %v85, 10.0
    %v598 = vmul.f32 %v86, 10.0
    %v599 = vmul.f32 %v87, 10.0
    %v600 = vmul.f32 %v88, 10.0
    %v601 = vmul.f32 %v89, 10.0
    %v602 = vmul.f32 %v90, 10.0
    %v603 = vmul.f32 %v91, 10.0
    %v604 = vmul.f32 %v92, 10.0
    %v605 = vmul.f32 %v93, 10.0
    %v606 = vmul.f32 %v94, 10.0
    %v607 = vmul.f32 %v95, 10.0
    %v608 = vmul.f32 %v96, 10.0
    %v609 = vmul.f32 %v97, 10.0
    %v610 = vmul.f32 %v98, 10.0
    %v611 = vmul.f32 %v99, 10.0
    %v612 = vmul.f32 %v100, 10.0
    %v613 = vmul.f32 %v101, 10.0
    %v614 = vmul.f32 %v102, 10.0
    %v615 = vmul.f32 %v103, 10.0
    %v616 = vmul.f32 %v104, 10.0
    %v617 = vmul.f32 %v105, 10.0
    %v618 = vmul.f32 %v106, 10.0
    %v619 = vmul.f32 %v107, 10.0
    %v620 = vmul.f32 %v108, 10.0
    %v621 = vmul.f32 %v109, 10.0
    %v622 = vmul.f32 %v110, 10.0
    %v623 = vmul.f32 %v111, 10.0
    %v624 = vmul.f32 %v112, 10.0
    %v625 = vmul.f32 %v113, 10.0
    %v626 = vmul.f32 %v114, 10.0
    %v627 = vmul.f32 %v115, 10.0
    %v628 = vmul.f32 %v116, 10.0
    %v629 = vmul.f32 %v117, 10.0
    %v630 = vmul.f32 %v118, 10.0
    %v631 = vmul.f32 %v119, 10.0
    %v632 = vmul.f32 %v120, 10.0
    %v633 = vmul.f32 %v121, 10.0
    %v634 = vmul.f32 %v122, 10.0
    %v635 = vmul.f32 %v123, 10.0
    %v636 = vmul.f32 %v124, 10.0
    %v637 = vmul.f32 %v125, 10.0
    %v638 = vmul.f32 %v126, 10.0
    %v639 = vmul.f32 %v127, 10.0
    %v640 = vmul.f32 %v128, 10.0
    %v641 = vmul.f32 %v129, 10.0
    %v642 = vmul.f32 %v130, 10.0
    %v643 = vmul.f32 %v131, 10.0
    %v644 = vmul.f32 %v132, 10.0
    %v645 = vmul.f32 %v133, 10.0
    %v646 = vmul.f32 %v134, 10.0
    %v647 = vmul.f32 %v135, 10.0
    %v648 = vmul.f32 %v136, 10.0
    %v649 = vmul.f32 %v137, 10.0
    %v650 = vmul.f32 %v138, 10.0
    %v651 = vmul.f32 %v139, 10.0
    %v652 = vmul.f32 %v140, 10.0
    %v653 = vmul.f32 %v141, 10.0
    %v654 = vmul.f32 %v142, 10.0
    %v655 = vmul.f32 %v143, 10.0
    %v656 = vmul.f32 %v144, 10.0
    %v657 = vmul.f32 %v145, 10.0
    %v658 = vmul.f32 %v146, 10.0
    %v659 = vmul.f32 %v147, 10.0
    %v660 = vmul.f32 %v148, 10.0
    %v661 = vmul.f32 %v149, 10.0
    %v662 = vmul.f32 %v150, 10.0
    %v663 = vmul.f32 %v151, 10.0
    %v664 = vmul.f32 %v152, 10.0
    %v665 = vmul.f32 %v153, 10.0
    %v666 = vmul.f32 %v154, 10.0
    %v667 = vmul.f32 %v155, 10.0
    %v668 = vmul.f32 %v156, 10.0
    %v669 = vmul.f32 %v157, 10.0
    %v670 = vmul.f32 %v158, 10.0
    %v671 = vmul.f32 %v159, 10.0
    %v672 = vmul.f32 %v160, 10.0
    %v673 = vmul.f32 %v161, 10.0
    %v674 = vmul.f32 %v162, 10.0
    %v675 = vmul.f32 %v163, 10.0
    %v676 = vmul.f32 %v164, 10.0
    %v677 = vmul.f32 %v165, 10.0
    %v678 = vmul.f32 %v166, 10.0
    %v679 = vmul.f32 %v167, 10.0
    %v680 = vmul.f32 %v168, 10.0
    %v681 = vmul.f32 %v169, 10.0
    %v682 = vmul.f32 %v170, 10.0
    %v683 = vmul.f32 %v171, 10.0
    %v684 = vmul.f32 %v172, 10.0
    %v685 = vmul.f32 %v173, 10.0
    %v686 = vmul.f32 %v174, 10.0
    %v687 = vmul.f32 %v175, 10.0
    %v688 = vmul.f32 %v176, 10.0
    %v689 = vmul.f32 %v177, 10.0
    %v690 = vmul.f32 %v178, 10.0
    %v691 = vmul.f32 %v179, 10.0
    %v692 = vmul.f32 %v180, 10.0
    %v693 = vmul.f32 %v181, 10.0
    %v694 = vmul.f32 %v182, 10.0
    %v695 = vmul.f32 %v183, 10.0
    %v696 = vmul.f32 %v184, 10.0
    %v697 = vmul.f32 %v185, 10.0
    %v698 = vmul.f32 %v186, 10.0
    %v699 = vmul.f32 %v187, 10.0
    %v700 = vmul.f32 %v188, 10.0
    %v701 = vmul.f32 %v189, 10.0
    %v702 = vmul.f32 %v190, 10.0
    %v703 = vmul.f32 %v191, 10.0
    %v704 = vmul.f32 %v192, 10.0
    %v705 = vmul.f32 %v193, 10.0
    %v706 = vmul.f32 %v194, 10.0
    %v707 = vmul.f32 %v195, 10.0
    %v708 = vmul.f32 %v196, 10.0
    %v709 = vmul.f32 %v197, 10.0
    %v710 = vmul.f32 %v198, 10.0
    %v711 = vmul.f32 %v199, 10.0
    %v712 = vmul.f32 %v200, 10.0
    %v713 = vmul.f32 %v201, 10.0
    %v714 = vmul.f32 %v202, 10.0
    %v715 = vmul.f32 %v203, 10.0
    %v716 = vmul.f32 %v204, 10.0
    %v717 = vmul.f32 %v205, 10.0
    %v718 = vmul.f32 %v206, 10.0
    %v719 = vmul.f32 %v207, 10.0
    %v720 = vmul.f32 %v208, 10.0
    %v721 = vmul.f32 %v209, 10.0
    %v722 = vmul.f32 %v210, 10.0
    %v723 = vmul.f32 %v211, 10.0
    %v724 = vmul.f32 %v212, 10.0
    %v725 = vmul.f32 %v213, 10.0
    %v726 = vmul.f32 %v214, 10.0
    %v727 = vmul.f32 %v215, 10.0
    %v728 = vmul.f32 %v216, 10.0
    %v729 = vmul.f32 %v217, 10.0
    %v730 = vmul.f32 %v218, 10.0
    %v731 = vmul.f32 %v219, 10.0
    %v732 = vmul.f32 %v220, 10.0
    %v733 = vmul.f32 %v221, 10.0
    %v734 = vmul.f32 %v222, 10.0
    %v735 = vmul.f32 %v223, 10.0
    %v736 = vmul.f32 %v224, 10.0
    %v737 = vmul.f32 %v225, 10.0
    %v738 = vmul.f32 %v226, 10.0
    %v739 = vmul.f32 %v227, 10.0
    %v740 = vmul.f32 %v228, 10.0
    %v741 = vmul.f32 %v229, 10.0
    %v742 = vmul.f32 %v230, 10.0
    %v743 = vmul.f32 %v231, 10.0
    %v744 = vmul.f32 %v232, 10.0
    %v745 = vmul.f32 %v233, 10.0
    %v746 = vmul.f32 %v234, 10.0
    %v747 = vmul.f32 %v235, 10.0
    %v748 = vmul.f32 %v236, 10.0
    %v749 = vmul.f32 %v237, 10.0
    %v750 = vmul.f32 %v238, 10.0
    %v751 = vmul.f32 %v239, 10.0
    %v752 = vmul.f32 %v240, 10.0
    %v753 = vmul.f32 %v241, 10.0
    %v754 = vmul.f32 %v242, 10.0
    %v755 = vmul.f32 %v243, 10.0
    %v756 = vmul.f32 %v244, 10.0
    %v757 = vmul.f32 %v245, 10.0
    %v758 = vmul.f32 %v246, 10.0
    %v759 = vmul.f32 %v247, 10.0
    %v760 = vmul.f32 %v248, 10.0
    %v761 = vmul.f32 %v249, 10.0
    %v762 = vmul.f32 %v250, 10.0
    %v763 = vmul.f32 %v251, 10.0
    %v764 = vmul.f32 %v252, 10.0
    %v765 = vmul.f32 %v253, 10.0
    %v766 = vmul.f32 %v254, 10.0
    %v767 = vmul.f32 %v255, 10.0
    %v768 = vmul.f32 %v256, 10.0
    %v769 = vmul.f32 %v257, 10.0
    %v770 = vmul.f32 %v258, 10.0
    %v771 = vmul.f32 %v259, 10.0
    %v772 = vmul.f32 %v260, 10.0
    %v773 = vmul.f32 %v261, 10.0
    %v774 = vmul.f32 %v262, 10.0
    %v775 = vmul.f32 %v263, 10.0
    %v776 = vmul.f32 %v264, 10.0
    %v777 = vmul.f32 %v265, 10.0
    %v778 = vmul.f32 %v266, 10.0
    %v779 = vmul.f32 %v267, 10.0
    %v780 = vmul.f32 %v268, 10.0
    %v781 = vmul.f32 %v269, 10.0
    %v782 = vmul.f32 %v270, 10.0
    %v783 = vmul.f32 %v271, 10.0
    %v784 = vmul.f32 %v272, 10.0
    %v785 = vmul.f32 %v273, 10.0
    %v786 = vmul.f32 %v274, 10.0
    %v787 = vmul.f32 %v275, 10.0
    %v788 = vmul.f32 %v276, 10.0
    %v789 = vmul.f32 %v277, 10.0
    %v790 = vmul.f32 %v278, 10.0
    %v791 = vmul.f32 %v279, 10.0
    %v792 = vmul.f32 %v280, 10.0
    %v793 = vmul.f32 %v281, 10.0
    %v794 = vmul.f32 %v282, 10.0
    %v795 = vmul.f32 %v283, 10.0
    %v796 = vmul.f32 %v284, 10.0
    %v797 = vmul.f32 %v285, 10.0
    %v798 = vmul.f32 %v286, 10.0
    %v799 = vmul.f32 %v287, 10.0
    %v800 = vmul.f32 %v288, 10.0
    %v801 = vmul.f32 %v289, 10.0
    %v802 = vmul.f32 %v290, 10.0
    %v803 = vmul.f32 %v291, 10.0
    %v804 = vmul.f32 %v292, 10.0
    %v805 = vmul.f32 %v293, 10.0
    %v806 = vmul.f32 %v294, 10.0
    %v807 = vmul.f32 %v295, 10.0
    %v808 = vmul.f32 %v296, 10.0
    %v809 = vmul.f32 %v297, 10.0
    %v810 = vmul.f32 %v298, 10.0
    %v811 = vmul.f32 %v299, 10.0
    %v812 = vmul.f32 %v300, 10.0
    %v813 = vmul.f32 %v301, 10.0
    %v814 = vmul.f32 %v302, 10.0
    %v815 = vmul.f32 %v303, 10.0
    %v816 = vmul.f32 %v304, 10.0
    %v817 = vmul.f32 %v305, 10.0
    %v818 = vmul.f32 %v306, 10.0
    %v819 = vmul.f32 %v307, 10.0
    %v820 = vmul.f32 %v308, 10.0
    %v821 = vmul.f32 %v309, 10.0
    %v822 = vmul.f32 %v310, 10.0
    %v823 = vmul.f32 %v311, 10.0
    %v824 = vmul.f32 %v312, 10.0
    %v825 = vmul.f32 %v313, 10.0
    %v826 = vmul.f32 %v314, 10.0
    %v827 = vmul.f32 %v315, 10.0
    %v828 = vmul.f32 %v316, 10.0
    %v829 = vmul.f32 %v317, 10.0
    %v830 = vmul.f32 %v318, 10.0
    %v831 = vmul.f32 %v319, 10.0
    %v832 = vmul.f32 %v320, 10.0
    %v833 = vmul.f32 %v321, 10.0
    %v834 = vmul.f32 %v322, 10.0
    %v835 = vmul.f32 %v323, 10.0
    %v836 = vmul.f32 %v324, 10.0
    %v837 = vmul.f32 %v325, 10.0
    %v838 = vmul.f32 %v326, 10.0
    %v839 = vmul.f32 %v327, 10.0
    %v840 = vmul.f32 %v328, 10.0
    %v841 = vmul.f32 %v329, 10.0
    %v842 = vmul.f32 %v330, 10.0
    %v843 = vmul.f32 %v331, 10.0
    %v844 = vmul.f32 %v332, 10.0
    %v845 = vmul.f32 %v333, 10.0
    %v846 = vmul.f32 %v334, 10.0
    %v847 = vmul.f32 %v335, 10.0
    %v848 = vmul.f32 %v336, 10.0
    %v849 = vmul.f32 %v337, 10.0
    %v850 = vmul.f32 %v338, 10.0
    %v851 = vmul.f32 %v339, 10.0
    %v852 = vmul.f32 %v340, 10.0
    %v853 = vmul.f32 %v341, 10.0
    %v854 = vmul.f32 %v342, 10.0
    %v855 = vmul.f32 %v343, 10.0
    %v856 = vmul.f32 %v344, 10.0
    %v857 = vmul.f32 %v345, 10.0
    %v858 = vmul.f32 %v346, 10.0
    %v859 = vmul.f32 %v347, 10.0
    %v860 = vmul.f32 %v348, 10.0
    %v861 = vmul.f32 %v349, 10.0
    %v862 = vmul.f32 %v350, 10.0
    %v863 = vmul.f32 %v351, 10.0
    %v864 = vmul.f32 %v352, 10.0
    %v865 = vmul.f32 %v353, 10.0
    %v866 = vmul.f32 %v354, 10.0
    %v867 = vmul.f32 %v355, 10.0
    %v868 = vmul.f32 %v356, 10.0
    %v869 = vmul.f32 %v357, 10.0
    %v870 = vmul.f32 %v358, 10.0
    %v871 = vmul.f32 %v359, 10.0
    %v872 = vmul.f32 %v360, 10.0
    %v873 = vmul.f32 %v361, 10.0
    %v874 = vmul.f32 %v362, 10.0
    %v875 = vmul.f32 %v363, 10.0
    %v876 = vmul.f32 %v364, 10.0
    %v877 = vmul.f32 %v365, 10.0
    %v878 = vmul.f32 %v366, 10.0
    %v879 = vmul.f32 %v367, 10.0
    %v880 = vmul.f32 %v368, 10.0
    %v881 = vmul.f32 %v369, 10.0
    %v882 = vmul.f32 %v370, 10.0
    %v883 = vmul.f32 %v371, 10.0
    %v884 = vmul.f32 %v372, 10.0
    %v885 = vmul.f32 %v373, 10.0
    %v886 = vmul.f32 %v374, 10.0
    %v887 = vmul.f32 %v375, 10.0
    %v888 = vmul.f32 %v376, 10.0
    %v889 = vmul.f32 %v377, 10.0
    %v890 = vmul.f32 %v378, 10.0
    %v891 = vmul.f32 %v379, 10.0
    %v892 = vmul.f32 %v380, 10.0
    %v893 = vmul.f32 %v381, 10.0
    %v894 = vmul.f32 %v382, 10.0
    %v895 = vmul.f32 %v383, 10.0
    %v896 = vmul.f32 %v384, 10.0
    %v897 = vmul.f32 %v385, 10.0
    %v898 = vmul.f32 %v386, 10.0
    %v899 = vmul.f32 %v387, 10.0
    %v900 = vmul.f32 %v388, 10.0
    %v901 = vmul.f32 %v389, 10.0
    %v902 = vmul.f32 %v390, 10.0
    %v903 = vmul.f32 %v391, 10.0
    %v904 = vmul.f32 %v392, 10.0
    %v905 = vmul.f32 %v393, 10.0
    %v906 = vmul.f32 %v394, 10.0
    %v907 = vmul.f32 %v395, 10.0
    %v908 = vmul.f32 %v396, 10.0
    %v909 = vmul.f32 %v397, 10.0
    %v910 = vmul.f32 %v398, 10.0
    %v911 = vmul.f32 %v399, 10.0
    %v912 = vmul.f32 %v400, 10.0
    %v913 = vmul.f32 %v401, 10.0
    %v914 = vmul.f32 %v402, 10.0
    %v915 = vmul.f32 %v403, 10.0
    %v916 = vmul.f32 %v404, 10.0
    %v917 = vmul.f32 %v405, 10.0
    %v918 = vmul.f32 %v406, 10.0
    %v919 = vmul.f32 %v407, 10.0
    %v920 = vmul.f32 %v408, 10.0
    %v921 = vmul.f32 %v409, 10.0
    %v922 = vmul.f32 %v410, 10.0
    %v923 = vmul.f32 %v411, 10.0
    %v924 = vmul.f32 %v412, 10.0
    %v925 = vmul.f32 %v413, 10.0
    %v926 = vmul.f32 %v414, 10.0
    %v927 = vmul.f32 %v415, 10.0
    %v928 = vmul.f32 %v416, 10.0
    %v929 = vmul.f32 %v417, 10.0
    %v930 = vmul.f32 %v418, 10.0
    %v931 = vmul.f32 %v419, 10.0
    %v932 = vmul.f32 %v420, 10.0
    %v933 = vmul.f32 %v421, 10.0
    %v934 = vmul.f32 %v422, 10.0
    %v935 = vmul.f32 %v423, 10.0
    %v936 = vmul.f32 %v424, 10.0
    %v937 = vmul.f32 %v425, 10.0
    %v938 = vmul.f32 %v426, 10.0
    %v939 = vmul.f32 %v427, 10.0
    %v940 = vmul.f32 %v428, 10.0
    %v941 = vmul.f32 %v429, 10.0
    %v942 = vmul.f32 %v430, 10.0
    %v943 = vmul.f32 %v431, 10.0
    %v944 = vmul.f32 %v432, 10.0
    %v945 = vmul.f32 %v433, 10.0
    %v946 = vmul.f32 %v434, 10.0
    %v947 = vmul.f32 %v435, 10.0
    %v948 = vmul.f32 %v436, 10.0
    %v949 = vmul.f32 %v437, 10.0
    %v950 = vmul.f32 %v438, 10.0
    %v951 = vmul.f32 %v439, 10.0
    %v952 = vmul.f32 %v440, 10.0
    %v953 = vmul.f32 %v441, 10.0
    %v954 = vmul.f32 %v442, 10.0
    %v955 = vmul.f32 %v443, 10.0
    %v956 = vmul.f32 %v444, 10.0
    %v957 = vmul.f32 %v445, 10.0
    %v958 = vmul.f32 %v446, 10.0
    %v959 = vmul.f32 %v447, 10.0
    %v960 = vmul.f32 %v448, 10.0
    %v961 = vmul.f32 %v449, 10.0
    %v962 = vmul.f32 %v450, 10.0
    %v963 = vmul.f32 %v451, 10.0
    %v964 = vmul.f32 %v452, 10.0
    %v965 = vmul.f32 %v453, 10.0
    %v966 = vmul.f32 %v454, 10.0
    %v967 = vmul.f32 %v455, 10.0
    %v968 = vmul.f32 %v456, 10.0
    %v969 = vmul.f32 %v457, 10.0
    %v970 = vmul.f32 %v458, 10.0
    %v971 = vmul.f32 %v459, 10.0
    %v972 = vmul.f32 %v460, 10.0
    %v973 = vmul.f32 %v461, 10.0
    %v974 = vmul.f32 %v462, 10.0
    %v975 = vmul.f32 %v463, 10.0
    %v976 = vmul.f32 %v464, 10.0
    %v977 = vmul.f32 %v465, 10.0
    %v978 = vmul.f32 %v466, 10.0
    %v979 = vmul.f32 %v467, 10.0
    %v980 = vmul.f32 %v468, 10.0
    %v981 = vmul.f32 %v469, 10.0
    %v982 = vmul.f32 %v470, 10.0
    %v983 = vmul.f32 %v471, 10.0
    %v984 = vmul.f32 %v472, 10.0
    %v985 = vmul.f32 %v473, 10.0
    %v986 = vmul.f32 %v474, 10.0
    %v987 = vmul.f32 %v475, 10.0
    %v988 = vmul.f32 %v476, 10.0
    %v989 = vmul.f32 %v477, 10.0
    %v990 = vmul.f32 %v478, 10.0
    %v991 = vmul.f32 %v479, 10.0
    %v992 = vmul.f32 %v480, 10.0
    %v993 = vmul.f32 %v481, 10.0
    %v994 = vmul.f32 %v482, 10.0
    %v995 = vmul.f32 %v483, 10.0
    %v996 = vmul.f32 %v484, 10.0
    %v997 = vmul.f32 %v485, 10.0
    %v998 = vmul.f32 %v486, 10.0
    %v999 = vmul.f32 %v487, 10.0
    %v1000 = vmul.f32 %v488, 10.0
    %v1001 = vmul.f32 %v489, 10.0
    %v1002 = vmul.f32 %v490, 10.0
    %v1003 = vmul.f32 %v491, 10.0
    %v1004 = vmul.f32 %v492, 10.0
    %v1005 = vmul.f32 %v493, 10.0
    %v1006 = vmul.f32 %v494, 10.0
    %v1007 = vmul.f32 %v495, 10.0
    %v1008 = vmul.f32 %v496, 10.0
    %v1009 = vmul.f32 %v497, 10.0
    %v1010 = vmul.f32 %v498, 10.0
    %v1011 = vmul.f32 %v499, 10.0
    %v1012 = vmul.f32 %v500, 10.0
    %v1013 = vmul.f32 %v501, 10.0
    %v1014 = vmul.f32 %v502, 10.0
    %v1015 = vmul.f32 %v503, 10.0
    %v1016 = vmul.f32 %v504, 10.0
    %v1017 = vmul.f32 %v505, 10.0
    %v1018 = vmul.f32 %v506, 10.0
    %v1019 = vmul.f32 %v507, 10.0
    %v1020 = vmul.f32 %v508, 10.0
    %v1021 = vmul.f32 %v509, 10.0
    %v1022 = vmul.f32 %v510, 10.0
    %v1023 = vmul.f32 %v511, 10.0
    %v1024 = vmul.f32 %v512, 10.0
    %v1025 = vmul.f32 %v513, 10.0
    %v1026 = vmul.f32 %v514, 10.0
    %v1027 = vmul.f32 %v515, 10.0
    %v1028 = vmul.f32 %v516, 10.0
    %v1029 = vmul.f32 %v517, 10.0
    %v1030 = vmul.f32 %v518, 10.0
    %v1031 = vmul.f32 %v519, 10.0
    %v1032 = vmul.f32 %v520, 10.0
    %v1033 = vmul.f32 %v521, 10.0
    %v1034 = vmul.f32 %v522, 10.0
    %v1035 = vmul.f32 %v523, 10.0
    %v1036 = vmul.f32 %v524, 10.0
    %v1037 = vmul.f32 %v525, 10.0
    %v1038 = vmul.f32 %v526, 10.0
    %v1039 = vmul.f32 %v527, 10.0
    %v1040 = vmul.f32 %v528, 10.0
    %v1041 = vmul.f32 %v529, 10.0
    %v1042 = vmul.f32 %v530, 10.0
    %v1043 = vmul.f32 %v531, 10.0
    %v1044 = vmul.f32 %v532, 10.0
    %v1045 = vmul.f32 %v533, 10.0
    %v1046 = vmul.f32 %v534, 10.0
    %v1047 = vmul.f32 %v535, 10.0
    %v1048 = vmul.f32 %v536, 10.0
    %v1049 = vtanh.pop %v537
    %v1050 = vtanh.pop %v538
    %v1051 = vtanh.pop %v539
    %v1052 = vtanh.pop %v540
    %v1053 = vtanh.pop %v541
    %v1054 = vtanh.pop %v542
    %v1055 = vtanh.pop %v543
    %v1056 = vtanh.pop %v544
    %v1057 = vtanh.pop %v545
    %v1058 = vtanh.pop %v546
    %v1059 = vtanh.pop %v547
    %v1060 = vtanh.pop %v548
    %v1061 = vtanh.pop %v549
    %v1062 = vtanh.pop %v550
    %v1063 = vtanh.pop %v551
    %v1064 = vtanh.pop %v552
    %v1065 = vtanh.pop %v553
    %v1066 = vtanh.pop %v554
    %v1067 = vtanh.pop %v555
    %v1068 = vtanh.pop %v556
    %v1069 = vtanh.pop %v557
    %v1070 = vtanh.pop %v558
    %v1071 = vtanh.pop %v559
    %v1072 = vtanh.pop %v560
    %v1073 = vtanh.pop %v561
    %v1074 = vtanh.pop %v562
    %v1075 = vtanh.pop %v563
    %v1076 = vtanh.pop %v564
    %v1077 = vtanh.pop %v565
    %v1078 = vtanh.pop %v566
    %v1079 = vtanh.pop %v567
    %v1080 = vtanh.pop %v568
    %v1081 = vtanh.pop %v569
    %v1082 = vtanh.pop %v570
    %v1083 = vtanh.pop %v571
    %v1084 = vtanh.pop %v572
    %v1085 = vtanh.pop %v573
    %v1086 = vtanh.pop %v574
    %v1087 = vtanh.pop %v575
    %v1088 = vtanh.pop %v576
    %v1089 = vtanh.pop %v577
    %v1090 = vtanh.pop %v578
    %v1091 = vtanh.pop %v579
    %v1092 = vtanh.pop %v580
    %v1093 = vtanh.pop %v581
    %v1094 = vtanh.pop %v582
    %v1095 = vtanh.pop %v583
    %v1096 = vtanh.pop %v584
    %v1097 = vtanh.pop %v585
    %v1098 = vtanh.pop %v586
    %v1099 = vtanh.pop %v587
    %v1100 = vtanh.pop %v588
    %v1101 = vtanh.pop %v589
    %v1102 = vtanh.pop %v590
    %v1103 = vtanh.pop %v591
    %v1104 = vtanh.pop %v592
    %v1105 = vtanh.pop %v593
    %v1106 = vtanh.pop %v594
    %v1107 = vtanh.pop %v595
    %v1108 = vtanh.pop %v596
    %v1109 = vtanh.pop %v597
    %v1110 = vtanh.pop %v598
    %v1111 = vtanh.pop %v599
    %v1112 = vtanh.pop %v600
    %v1113 = vtanh.pop %v601
    %v1114 = vtanh.pop %v602
    %v1115 = vtanh.pop %v603
    %v1116 = vtanh.pop %v604
    %v1117 = vtanh.pop %v605
    %v1118 = vtanh.pop %v606
    %v1119 = vtanh.pop %v607
    %v1120 = vtanh.pop %v608
    %v1121 = vtanh.pop %v609
    %v1122 = vtanh.pop %v610
    %v1123 = vtanh.pop %v611
    %v1124 = vtanh.pop %v612
    %v1125 = vtanh.pop %v613
    %v1126 = vtanh.pop %v614
    %v1127 = vtanh.pop %v615
    %v1128 = vtanh.pop %v616
    %v1129 = vtanh.pop %v617
    %v1130 = vtanh.pop %v618
    %v1131 = vtanh.pop %v619
    %v1132 = vtanh.pop %v620
    %v1133 = vtanh.pop %v621
    %v1134 = vtanh.pop %v622
    %v1135 = vtanh.pop %v623
    %v1136 = vtanh.pop %v624
    %v1137 = vtanh.pop %v625
    %v1138 = vtanh.pop %v626
    %v1139 = vtanh.pop %v627
    %v1140 = vtanh.pop %v628
    %v1141 = vtanh.pop %v629
    %v1142 = vtanh.pop %v630
    %v1143 = vtanh.pop %v631
    %v1144 = vtanh.pop %v632
    %v1145 = vtanh.pop %v633
    %v1146 = vtanh.pop %v634
    %v1147 = vtanh.pop %v635
    %v1148 = vtanh.pop %v636
    %v1149 = vtanh.pop %v637
    %v1150 = vtanh.pop %v638
    %v1151 = vtanh.pop %v639
    %v1152 = vtanh.pop %v640
    %v1153 = vtanh.pop %v641
    %v1154 = vtanh.pop %v642
    %v1155 = vtanh.pop %v643
    %v1156 = vtanh.pop %v644
    %v1157 = vtanh.pop %v645
    %v1158 = vtanh.pop %v646
    %v1159 = vtanh.pop %v647
    %v1160 = vtanh.pop %v648
    %v1161 = vtanh.pop %v649
    %v1162 = vtanh.pop %v650
    %v1163 = vtanh.pop %v651
    %v1164 = vtanh.pop %v652
    %v1165 = vtanh.pop %v653
    %v1166 = vtanh.pop %v654
    %v1167 = vtanh.pop %v655
    %v1168 = vtanh.pop %v656
    %v1169 = vtanh.pop %v657
    %v1170 = vtanh.pop %v658
    %v1171 = vtanh.pop %v659
    %v1172 = vtanh.pop %v660
    %v1173 = vtanh.pop %v661
    %v1174 = vtanh.pop %v662
    %v1175 = vtanh.pop %v663
    %v1176 = vtanh.pop %v664
    %v1177 = vtanh.pop %v665
    %v1178 = vtanh.pop %v666
    %v1179 = vtanh.pop %v667
    %v1180 = vtanh.pop %v668
    %v1181 = vtanh.pop %v669
    %v1182 = vtanh.pop %v670
    %v1183 = vtanh.pop %v671
    %v1184 = vtanh.pop %v672
    %v1185 = vtanh.pop %v673
    %v1186 = vtanh.pop %v674
    %v1187 = vtanh.pop %v675
    %v1188 = vtanh.pop %v676
    %v1189 = vtanh.pop %v677
    %v1190 = vtanh.pop %v678
    %v1191 = vtanh.pop %v679
    %v1192 = vtanh.pop %v680
    %v1193 = vtanh.pop %v681
    %v1194 = vtanh.pop %v682
    %v1195 = vtanh.pop %v683
    %v1196 = vtanh.pop %v684
    %v1197 = vtanh.pop %v685
    %v1198 = vtanh.pop %v686
    %v1199 = vtanh.pop %v687
    %v1200 = vtanh.pop %v688
    %v1201 = vtanh.pop %v689
    %v1202 = vtanh.pop %v690
    %v1203 = vtanh.pop %v691
    %v1204 = vtanh.pop %v692
    %v1205 = vtanh.pop %v693
    %v1206 = vtanh.pop %v694
    %v1207 = vtanh.pop %v695
    %v1208 = vtanh.pop %v696
    %v1209 = vtanh.pop %v697
    %v1210 = vtanh.pop %v698
    %v1211 = vtanh.pop %v699
    %v1212 = vtanh.pop %v700
    %v1213 = vtanh.pop %v701
    %v1214 = vtanh.pop %v702
    %v1215 = vtanh.pop %v703
    %v1216 = vtanh.pop %v704
    %v1217 = vtanh.pop %v705
    %v1218 = vtanh.pop %v706
    %v1219 = vtanh.pop %v707
    %v1220 = vtanh.pop %v708
    %v1221 = vtanh.pop %v709
    %v1222 = vtanh.pop %v710
    %v1223 = vtanh.pop %v711
    %v1224 = vtanh.pop %v712
    %v1225 = vtanh.pop %v713
    %v1226 = vtanh.pop %v714
    %v1227 = vtanh.pop %v715
    %v1228 = vtanh.pop %v716
    %v1229 = vtanh.pop %v717
    %v1230 = vtanh.pop %v718
    %v1231 = vtanh.pop %v719
    %v1232 = vtanh.pop %v720
    %v1233 = vtanh.pop %v721
    %v1234 = vtanh.pop %v722
    %v1235 = vtanh.pop %v723
    %v1236 = vtanh.pop %v724
    %v1237 = vtanh.pop %v725
    %v1238 = vtanh.pop %v726
    %v1239 = vtanh.pop %v727
    %v1240 = vtanh.pop %v728
    %v1241 = vtanh.pop %v729
    %v1242 = vtanh.pop %v730
    %v1243 = vtanh.pop %v731
    %v1244 = vtanh.pop %v732
    %v1245 = vtanh.pop %v733
    %v1246 = vtanh.pop %v734
    %v1247 = vtanh.pop %v735
    %v1248 = vtanh.pop %v736
    %v1249 = vtanh.pop %v737
    %v1250 = vtanh.pop %v738
    %v1251 = vtanh.pop %v739
    %v1252 = vtanh.pop %v740
    %v1253 = vtanh.pop %v741
    %v1254 = vtanh.pop %v742
    %v1255 = vtanh.pop %v743
    %v1256 = vtanh.pop %v744
    %v1257 = vtanh.pop %v745
    %v1258 = vtanh.pop %v746
    %v1259 = vtanh.pop %v747
    %v1260 = vtanh.pop %v748
    %v1261 = vtanh.pop %v749
    %v1262 = vtanh.pop %v750
    %v1263 = vtanh.pop %v751
    %v1264 = vtanh.pop %v752
    %v1265 = vtanh.pop %v753
    %v1266 = vtanh.pop %v754
    %v1267 = vtanh.pop %v755
    %v1268 = vtanh.pop %v756
    %v1269 = vtanh.pop %v757
    %v1270 = vtanh.pop %v758
    %v1271 = vtanh.pop %v759
    %v1272 = vtanh.pop %v760
    %v1273 = vtanh.pop %v761
    %v1274 = vtanh.pop %v762
    %v1275 = vtanh.pop %v763
    %v1276 = vtanh.pop %v764
    %v1277 = vtanh.pop %v765
    %v1278 = vtanh.pop %v766
    %v1279 = vtanh.pop %v767
    %v1280 = vtanh.pop %v768
    %v1281 = vtanh.pop %v769
    %v1282 = vtanh.pop %v770
    %v1283 = vtanh.pop %v771
    %v1284 = vtanh.pop %v772
    %v1285 = vtanh.pop %v773
    %v1286 = vtanh.pop %v774
    %v1287 = vtanh.pop %v775
    %v1288 = vtanh.pop %v776
    %v1289 = vtanh.pop %v777
    %v1290 = vtanh.pop %v778
    %v1291 = vtanh.pop %v779
    %v1292 = vtanh.pop %v780
    %v1293 = vtanh.pop %v781
    %v1294 = vtanh.pop %v782
    %v1295 = vtanh.pop %v783
    %v1296 = vtanh.pop %v784
    %v1297 = vtanh.pop %v785
    %v1298 = vtanh.pop %v786
    %v1299 = vtanh.pop %v787
    %v1300 = vtanh.pop %v788
    %v1301 = vtanh.pop %v789
    %v1302 = vtanh.pop %v790
    %v1303 = vtanh.pop %v791
    %v1304 = vtanh.pop %v792
    %v1305 = vtanh.pop %v793
    %v1306 = vtanh.pop %v794
    %v1307 = vtanh.pop %v795
    %v1308 = vtanh.pop %v796
    %v1309 = vtanh.pop %v797
    %v1310 = vtanh.pop %v798
    %v1311 = vtanh.pop %v799
    %v1312 = vtanh.pop %v800
    %v1313 = vtanh.pop %v801
    %v1314 = vtanh.pop %v802
    %v1315 = vtanh.pop %v803
    %v1316 = vtanh.pop %v804
    %v1317 = vtanh.pop %v805
    %v1318 = vtanh.pop %v806
    %v1319 = vtanh.pop %v807
    %v1320 = vtanh.pop %v808
    %v1321 = vtanh.pop %v809
    %v1322 = vtanh.pop %v810
    %v1323 = vtanh.pop %v811
    %v1324 = vtanh.pop %v812
    %v1325 = vtanh.pop %v813
    %v1326 = vtanh.pop %v814
    %v1327 = vtanh.pop %v815
    %v1328 = vtanh.pop %v816
    %v1329 = vtanh.pop %v817
    %v1330 = vtanh.pop %v818
    %v1331 = vtanh.pop %v819
    %v1332 = vtanh.pop %v820
    %v1333 = vtanh.pop %v821
    %v1334 = vtanh.pop %v822
    %v1335 = vtanh.pop %v823
    %v1336 = vtanh.pop %v824
    %v1337 = vtanh.pop %v825
    %v1338 = vtanh.pop %v826
    %v1339 = vtanh.pop %v827
    %v1340 = vtanh.pop %v828
    %v1341 = vtanh.pop %v829
    %v1342 = vtanh.pop %v830
    %v1343 = vtanh.pop %v831
    %v1344 = vtanh.pop %v832
    %v1345 = vtanh.pop %v833
    %v1346 = vtanh.pop %v834
    %v1347 = vtanh.pop %v835
    %v1348 = vtanh.pop %v836
    %v1349 = vtanh.pop %v837
    %v1350 = vtanh.pop %v838
    %v1351 = vtanh.pop %v839
    %v1352 = vtanh.pop %v840
    %v1353 = vtanh.pop %v841
    %v1354 = vtanh.pop %v842
    %v1355 = vtanh.pop %v843
    %v1356 = vtanh.pop %v844
    %v1357 = vtanh.pop %v845
    %v1358 = vtanh.pop %v846
    %v1359 = vtanh.pop %v847
    %v1360 = vtanh.pop %v848
    %v1361 = vtanh.pop %v849
    %v1362 = vtanh.pop %v850
    %v1363 = vtanh.pop %v851
    %v1364 = vtanh.pop %v852
    %v1365 = vtanh.pop %v853
    %v1366 = vtanh.pop %v854
    %v1367 = vtanh.pop %v855
    %v1368 = vtanh.pop %v856
    %v1369 = vtanh.pop %v857
    %v1370 = vtanh.pop %v858
    %v1371 = vtanh.pop %v859
    %v1372 = vtanh.pop %v860
    %v1373 = vtanh.pop %v861
    %v1374 = vtanh.pop %v862
    %v1375 = vtanh.pop %v863
    %v1376 = vtanh.pop %v864
    %v1377 = vtanh.pop %v865
    %v1378 = vtanh.pop %v866
    %v1379 = vtanh.pop %v867
    %v1380 = vtanh.pop %v868
    %v1381 = vtanh.pop %v869
    %v1382 = vtanh.pop %v870
    %v1383 = vtanh.pop %v871
    %v1384 = vtanh.pop %v872
    %v1385 = vtanh.pop %v873
    %v1386 = vtanh.pop %v874
    %v1387 = vtanh.pop %v875
    %v1388 = vtanh.pop %v876
    %v1389 = vtanh.pop %v877
    %v1390 = vtanh.pop %v878
    %v1391 = vtanh.pop %v879
    %v1392 = vtanh.pop %v880
    %v1393 = vtanh.pop %v881
    %v1394 = vtanh.pop %v882
    %v1395 = vtanh.pop %v883
    %v1396 = vtanh.pop %v884
    %v1397 = vtanh.pop %v885
    %v1398 = vtanh.pop %v886
    %v1399 = vtanh.pop %v887
    %v1400 = vtanh.pop %v888
    %v1401 = vtanh.pop %v889
    %v1402 = vtanh.pop %v890
    %v1403 = vtanh.pop %v891
    %v1404 = vtanh.pop %v892
    %v1405 = vtanh.pop %v893
    %v1406 = vtanh.pop %v894
    %v1407 = vtanh.pop %v895
    %v1408 = vtanh.pop %v896
    %v1409 = vtanh.pop %v897
    %v1410 = vtanh.pop %v898
    %v1411 = vtanh.pop %v899
    %v1412 = vtanh.pop %v900
    %v1413 = vtanh.pop %v901
    %v1414 = vtanh.pop %v902
    %v1415 = vtanh.pop %v903
    %v1416 = vtanh.pop %v904
    %v1417 = vtanh.pop %v905
    %v1418 = vtanh.pop %v906
    %v1419 = vtanh.pop %v907
    %v1420 = vtanh.pop %v908
    %v1421 = vtanh.pop %v909
    %v1422 = vtanh.pop %v910
    %v1423 = vtanh.pop %v911
    %v1424 = vtanh.pop %v912
    %v1425 = vtanh.pop %v913
    %v1426 = vtanh.pop %v914
    %v1427 = vtanh.pop %v915
    %v1428 = vtanh.pop %v916
    %v1429 = vtanh.pop %v917
    %v1430 = vtanh.pop %v918
    %v1431 = vtanh.pop %v919
    %v1432 = vtanh.pop %v920
    %v1433 = vtanh.pop %v921
    %v1434 = vtanh.pop %v922
    %v1435 = vtanh.pop %v923
    %v1436 = vtanh.pop %v924
    %v1437 = vtanh.pop %v925
    %v1438 = vtanh.pop %v926
    %v1439 = vtanh.pop %v927
    %v1440 = vtanh.pop %v928
    %v1441 = vtanh.pop %v929
    %v1442 = vtanh.pop %v930
    %v1443 = vtanh.pop %v931
    %v1444 = vtanh.pop %v932
    %v1445 = vtanh.pop %v933
    %v1446 = vtanh.pop %v934
    %v1447 = vtanh.pop %v935
    %v1448 = vtanh.pop %v936
    %v1449 = vtanh.pop %v937
    %v1450 = vtanh.pop %v938
    %v1451 = vtanh.pop %v939
    %v1452 = vtanh.pop %v940
    %v1453 = vtanh.pop %v941
    %v1454 = vtanh.pop %v942
    %v1455 = vtanh.pop %v943
    %v1456 = vtanh.pop %v944
    %v1457 = vtanh.pop %v945
    %v1458 = vtanh.pop %v946
    %v1459 = vtanh.pop %v947
    %v1460 = vtanh.pop %v948
    %v1461 = vtanh.pop %v949
    %v1462 = vtanh.pop %v950
    %v1463 = vtanh.pop %v951
    %v1464 = vtanh.pop %v952
    %v1465 = vtanh.pop %v953
    %v1466 = vtanh.pop %v954
    %v1467 = vtanh.pop %v955
    %v1468 = vtanh.pop %v956
    %v1469 = vtanh.pop %v957
    %v1470 = vtanh.pop %v958
    %v1471 = vtanh.pop %v959
    %v1472 = vtanh.pop %v960
    %v1473 = vtanh.pop %v961
    %v1474 = vtanh.pop %v962
    %v1475 = vtanh.pop %v963
    %v1476 = vtanh.pop %v964
    %v1477 = vtanh.pop %v965
    %v1478 = vtanh.pop %v966
    %v1479 = vtanh.pop %v967
    %v1480 = vtanh.pop %v968
    %v1481 = vtanh.pop %v969
    %v1482 = vtanh.pop %v970
    %v1483 = vtanh.pop %v971
    %v1484 = vtanh.pop %v972
    %v1485 = vtanh.pop %v973
    %v1486 = vtanh.pop %v974
    %v1487 = vtanh.pop %v975
    %v1488 = vtanh.pop %v976
    %v1489 = vtanh.pop %v977
    %v1490 = vtanh.pop %v978
    %v1491 = vtanh.pop %v979
    %v1492 = vtanh.pop %v980
    %v1493 = vtanh.pop %v981
    %v1494 = vtanh.pop %v982
    %v1495 = vtanh.pop %v983
    %v1496 = vtanh.pop %v984
    %v1497 = vtanh.pop %v985
    %v1498 = vtanh.pop %v986
    %v1499 = vtanh.pop %v987
    %v1500 = vtanh.pop %v988
    %v1501 = vtanh.pop %v989
    %v1502 = vtanh.pop %v990
    %v1503 = vtanh.pop %v991
    %v1504 = vtanh.pop %v992
    %v1505 = vtanh.pop %v993
    %v1506 = vtanh.pop %v994
    %v1507 = vtanh.pop %v995
    %v1508 = vtanh.pop %v996
    %v1509 = vtanh.pop %v997
    %v1510 = vtanh.pop %v998
    %v1511 = vtanh.pop %v999
    %v1512 = vtanh.pop %v1000
    %v1513 = vtanh.pop %v1001
    %v1514 = vtanh.pop %v1002
    %v1515 = vtanh.pop %v1003
    %v1516 = vtanh.pop %v1004
    %v1517 = vtanh.pop %v1005
    %v1518 = vtanh.pop %v1006
    %v1519 = vtanh.pop %v1007
    %v1520 = vtanh.pop %v1008
    %v1521 = vtanh.pop %v1009
    %v1522 = vtanh.pop %v1010
    %v1523 = vtanh.pop %v1011
    %v1524 = vtanh.pop %v1012
    %v1525 = vtanh.pop %v1013
    %v1526 = vtanh.pop %v1014
    %v1527 = vtanh.pop %v1015
    %v1528 = vtanh.pop %v1016
    %v1529 = vtanh.pop %v1017
    %v1530 = vtanh.pop %v1018
    %v1531 = vtanh.pop %v1019
    %v1532 = vtanh.pop %v1020
    %v1533 = vtanh.pop %v1021
    %v1534 = vtanh.pop %v1022
    %v1535 = vtanh.pop %v1023
    %v1536 = vtanh.pop %v1024
    %v1537 = vtanh.pop %v1025
    %v1538 = vtanh.pop %v1026
    %v1539 = vtanh.pop %v1027
    %v1540 = vtanh.pop %v1028
    %v1541 = vtanh.pop %v1029
    %v1542 = vtanh.pop %v1030
    %v1543 = vtanh.pop %v1031
    %v1544 = vtanh.pop %v1032
    %v1545 = vtanh.pop %v1033
    %v1546 = vtanh.pop %v1034
    %v1547 = vtanh.pop %v1035
    %v1548 = vtanh.pop %v1036
    %v1549 = vtanh.pop %v1037
    %v1550 = vtanh.pop %v1038
    %v1551 = vtanh.pop %v1039
    %v1552 = vtanh.pop %v1040
    %v1553 = vtanh.pop %v1041
    %v1554 = vtanh.pop %v1042
    %v1555 = vtanh.pop %v1043
    %v1556 = vtanh.pop %v1044
    %v1557 = vtanh.pop %v1045
    %v1558 = vtanh.pop %v1046
    %v1559 = vtanh.pop %v1047
    %v1560 = vtanh.pop %v1048
    %v1561 = vmul.f32 %v1049, 0.5
    %v1562 = vmul.f32 %v1050, 0.5
    %v1563 = vmul.f32 %v1051, 0.5
    %v1564 = vmul.f32 %v1052, 0.5
    %v1565 = vmul.f32 %v1053, 0.5
    %v1566 = vmul.f32 %v1054, 0.5
    %v1567 = vmul.f32 %v1055, 0.5
    %v1568 = vmul.f32 %v1056, 0.5
    %v1569 = vmul.f32 %v1057, 0.5
    %v1570 = vmul.f32 %v1058, 0.5
    %v1571 = vmul.f32 %v1059, 0.5
    %v1572 = vmul.f32 %v1060, 0.5
    %v1573 = vmul.f32 %v1061, 0.5
    %v1574 = vmul.f32 %v1062, 0.5
    %v1575 = vmul.f32 %v1063, 0.5
    %v1576 = vmul.f32 %v1064, 0.5
    %v1577 = vmul.f32 %v1065, 0.5
    %v1578 = vmul.f32 %v1066, 0.5
    %v1579 = vmul.f32 %v1067, 0.5
    %v1580 = vmul.f32 %v1068, 0.5
    %v1581 = vmul.f32 %v1069, 0.5
    %v1582 = vmul.f32 %v1070, 0.5
    %v1583 = vmul.f32 %v1071, 0.5
    %v1584 = vmul.f32 %v1072, 0.5
    %v1585 = vmul.f32 %v1073, 0.5
    %v1586 = vmul.f32 %v1074, 0.5
    %v1587 = vmul.f32 %v1075, 0.5
    %v1588 = vmul.f32 %v1076, 0.5
    %v1589 = vmul.f32 %v1077, 0.5
    %v1590 = vmul.f32 %v1078, 0.5
    %v1591 = vmul.f32 %v1079, 0.5
    %v1592 = vmul.f32 %v1080, 0.5
    %v1593 = vmul.f32 %v1081, 0.5
    %v1594 = vmul.f32 %v1082, 0.5
    %v1595 = vmul.f32 %v1083, 0.5
    %v1596 = vmul.f32 %v1084, 0.5
    %v1597 = vmul.f32 %v1085, 0.5
    %v1598 = vmul.f32 %v1086, 0.5
    %v1599 = vmul.f32 %v1087, 0.5
    %v1600 = vmul.f32 %v1088, 0.5
    %v1601 = vmul.f32 %v1089, 0.5
    %v1602 = vmul.f32 %v1090, 0.5
    %v1603 = vmul.f32 %v1091, 0.5
    %v1604 = vmul.f32 %v1092, 0.5
    %v1605 = vmul.f32 %v1093, 0.5
    %v1606 = vmul.f32 %v1094, 0.5
    %v1607 = vmul.f32 %v1095, 0.5
    %v1608 = vmul.f32 %v1096, 0.5
    %v1609 = vmul.f32 %v1097, 0.5
    %v1610 = vmul.f32 %v1098, 0.5
    %v1611 = vmul.f32 %v1099, 0.5
    %v1612 = vmul.f32 %v1100, 0.5
    %v1613 = vmul.f32 %v1101, 0.5
    %v1614 = vmul.f32 %v1102, 0.5
    %v1615 = vmul.f32 %v1103, 0.5
    %v1616 = vmul.f32 %v1104, 0.5
    %v1617 = vmul.f32 %v1105, 0.5
    %v1618 = vmul.f32 %v1106, 0.5
    %v1619 = vmul.f32 %v1107, 0.5
    %v1620 = vmul.f32 %v1108, 0.5
    %v1621 = vmul.f32 %v1109, 0.5
    %v1622 = vmul.f32 %v1110, 0.5
    %v1623 = vmul.f32 %v1111, 0.5
    %v1624 = vmul.f32 %v1112, 0.5
    %v1625 = vmul.f32 %v1113, 0.5
    %v1626 = vmul.f32 %v1114, 0.5
    %v1627 = vmul.f32 %v1115, 0.5
    %v1628 = vmul.f32 %v1116, 0.5
    %v1629 = vmul.f32 %v1117, 0.5
    %v1630 = vmul.f32 %v1118, 0.5
    %v1631 = vmul.f32 %v1119, 0.5
    %v1632 = vmul.f32 %v1120, 0.5
    %v1633 = vmul.f32 %v1121, 0.5
    %v1634 = vmul.f32 %v1122, 0.5
    %v1635 = vmul.f32 %v1123, 0.5
    %v1636 = vmul.f32 %v1124, 0.5
    %v1637 = vmul.f32 %v1125, 0.5
    %v1638 = vmul.f32 %v1126, 0.5
    %v1639 = vmul.f32 %v1127, 0.5
    %v1640 = vmul.f32 %v1128, 0.5
    %v1641 = vmul.f32 %v1129, 0.5
    %v1642 = vmul.f32 %v1130, 0.5
    %v1643 = vmul.f32 %v1131, 0.5
    %v1644 = vmul.f32 %v1132, 0.5
    %v1645 = vmul.f32 %v1133, 0.5
    %v1646 = vmul.f32 %v1134, 0.5
    %v1647 = vmul.f32 %v1135, 0.5
    %v1648 = vmul.f32 %v1136, 0.5
    %v1649 = vmul.f32 %v1137, 0.5
    %v1650 = vmul.f32 %v1138, 0.5
    %v1651 = vmul.f32 %v1139, 0.5
    %v1652 = vmul.f32 %v1140, 0.5
    %v1653 = vmul.f32 %v1141, 0.5
    %v1654 = vmul.f32 %v1142, 0.5
    %v1655 = vmul.f32 %v1143, 0.5
    %v1656 = vmul.f32 %v1144, 0.5
    %v1657 = vmul.f32 %v1145, 0.5
    %v1658 = vmul.f32 %v1146, 0.5
    %v1659 = vmul.f32 %v1147, 0.5
    %v1660 = vmul.f32 %v1148, 0.5
    %v1661 = vmul.f32 %v1149, 0.5
    %v1662 = vmul.f32 %v1150, 0.5
    %v1663 = vmul.f32 %v1151, 0.5
    %v1664 = vmul.f32 %v1152, 0.5
    %v1665 = vmul.f32 %v1153, 0.5
    %v1666 = vmul.f32 %v1154, 0.5
    %v1667 = vmul.f32 %v1155, 0.5
    %v1668 = vmul.f32 %v1156, 0.5
    %v1669 = vmul.f32 %v1157, 0.5
    %v1670 = vmul.f32 %v1158, 0.5
    %v1671 = vmul.f32 %v1159, 0.5
    %v1672 = vmul.f32 %v1160, 0.5
    %v1673 = vmul.f32 %v1161, 0.5
    %v1674 = vmul.f32 %v1162, 0.5
    %v1675 = vmul.f32 %v1163, 0.5
    %v1676 = vmul.f32 %v1164, 0.5
    %v1677 = vmul.f32 %v1165, 0.5
    %v1678 = vmul.f32 %v1166, 0.5
    %v1679 = vmul.f32 %v1167, 0.5
    %v1680 = vmul.f32 %v1168, 0.5
    %v1681 = vmul.f32 %v1169, 0.5
    %v1682 = vmul.f32 %v1170, 0.5
    %v1683 = vmul.f32 %v1171, 0.5
    %v1684 = vmul.f32 %v1172, 0.5
    %v1685 = vmul.f32 %v1173, 0.5
    %v1686 = vmul.f32 %v1174, 0.5
    %v1687 = vmul.f32 %v1175, 0.5
    %v1688 = vmul.f32 %v1176, 0.5
    %v1689 = vmul.f32 %v1177, 0.5
    %v1690 = vmul.f32 %v1178, 0.5
    %v1691 = vmul.f32 %v1179, 0.5
    %v1692 = vmul.f32 %v1180, 0.5
    %v1693 = vmul.f32 %v1181, 0.5
    %v1694 = vmul.f32 %v1182, 0.5
    %v1695 = vmul.f32 %v1183, 0.5
    %v1696 = vmul.f32 %v1184, 0.5
    %v1697 = vmul.f32 %v1185, 0.5
    %v1698 = vmul.f32 %v1186, 0.5
    %v1699 = vmul.f32 %v1187, 0.5
    %v1700 = vmul.f32 %v1188, 0.5
    %v1701 = vmul.f32 %v1189, 0.5
    %v1702 = vmul.f32 %v1190, 0.5
    %v1703 = vmul.f32 %v1191, 0.5
    %v1704 = vmul.f32 %v1192, 0.5
    %v1705 = vmul.f32 %v1193, 0.5
    %v1706 = vmul.f32 %v1194, 0.5
    %v1707 = vmul.f32 %v1195, 0.5
    %v1708 = vmul.f32 %v1196, 0.5
    %v1709 = vmul.f32 %v1197, 0.5
    %v1710 = vmul.f32 %v1198, 0.5
    %v1711 = vmul.f32 %v1199, 0.5
    %v1712 = vmul.f32 %v1200, 0.5
    %v1713 = vmul.f32 %v1201, 0.5
    %v1714 = vmul.f32 %v1202, 0.5
    %v1715 = vmul.f32 %v1203, 0.5
    %v1716 = vmul.f32 %v1204, 0.5
    %v1717 = vmul.f32 %v1205, 0.5
    %v1718 = vmul.f32 %v1206, 0.5
    %v1719 = vmul.f32 %v1207, 0.5
    %v1720 = vmul.f32 %v1208, 0.5
    %v1721 = vmul.f32 %v1209, 0.5
    %v1722 = vmul.f32 %v1210, 0.5
    %v1723 = vmul.f32 %v1211, 0.5
    %v1724 = vmul.f32 %v1212, 0.5
    %v1725 = vmul.f32 %v1213, 0.5
    %v1726 = vmul.f32 %v1214, 0.5
    %v1727 = vmul.f32 %v1215, 0.5
    %v1728 = vmul.f32 %v1216, 0.5
    %v1729 = vmul.f32 %v1217, 0.5
    %v1730 = vmul.f32 %v1218, 0.5
    %v1731 = vmul.f32 %v1219, 0.5
    %v1732 = vmul.f32 %v1220, 0.5
    %v1733 = vmul.f32 %v1221, 0.5
    %v1734 = vmul.f32 %v1222, 0.5
    %v1735 = vmul.f32 %v1223, 0.5
    %v1736 = vmul.f32 %v1224, 0.5
    %v1737 = vmul.f32 %v1225, 0.5
    %v1738 = vmul.f32 %v1226, 0.5
    %v1739 = vmul.f32 %v1227, 0.5
    %v1740 = vmul.f32 %v1228, 0.5
    %v1741 = vmul.f32 %v1229, 0.5
    %v1742 = vmul.f32 %v1230, 0.5
    %v1743 = vmul.f32 %v1231, 0.5
    %v1744 = vmul.f32 %v1232, 0.5
    %v1745 = vmul.f32 %v1233, 0.5
    %v1746 = vmul.f32 %v1234, 0.5
    %v1747 = vmul.f32 %v1235, 0.5
    %v1748 = vmul.f32 %v1236, 0.5
    %v1749 = vmul.f32 %v1237, 0.5
    %v1750 = vmul.f32 %v1238, 0.5
    %v1751 = vmul.f32 %v1239, 0.5
    %v1752 = vmul.f32 %v1240, 0.5
    %v1753 = vmul.f32 %v1241, 0.5
    %v1754 = vmul.f32 %v1242, 0.5
    %v1755 = vmul.f32 %v1243, 0.5
    %v1756 = vmul.f32 %v1244, 0.5
    %v1757 = vmul.f32 %v1245, 0.5
    %v1758 = vmul.f32 %v1246, 0.5
    %v1759 = vmul.f32 %v1247, 0.5
    %v1760 = vmul.f32 %v1248, 0.5
    %v1761 = vmul.f32 %v1249, 0.5
    %v1762 = vmul.f32 %v1250, 0.5
    %v1763 = vmul.f32 %v1251, 0.5
    %v1764 = vmul.f32 %v1252, 0.5
    %v1765 = vmul.f32 %v1253, 0.5
    %v1766 = vmul.f32 %v1254, 0.5
    %v1767 = vmul.f32 %v1255, 0.5
    %v1768 = vmul.f32 %v1256, 0.5
    %v1769 = vmul.f32 %v1257, 0.5
    %v1770 = vmul.f32 %v1258, 0.5
    %v1771 = vmul.f32 %v1259, 0.5
    %v1772 = vmul.f32 %v1260, 0.5
    %v1773 = vmul.f32 %v1261, 0.5
    %v1774 = vmul.f32 %v1262, 0.5
    %v1775 = vmul.f32 %v1263, 0.5
    %v1776 = vmul.f32 %v1264, 0.5
    %v1777 = vmul.f32 %v1265, 0.5
    %v1778 = vmul.f32 %v1266, 0.5
    %v1779 = vmul.f32 %v1267, 0.5
    %v1780 = vmul.f32 %v1268, 0.5
    %v1781 = vmul.f32 %v1269, 0.5
    %v1782 = vmul.f32 %v1270, 0.5
    %v1783 = vmul.f32 %v1271, 0.5
    %v1784 = vmul.f32 %v1272, 0.5
    %v1785 = vmul.f32 %v1273, 0.5
    %v1786 = vmul.f32 %v1274, 0.5
    %v1787 = vmul.f32 %v1275, 0.5
    %v1788 = vmul.f32 %v1276, 0.5
    %v1789 = vmul.f32 %v1277, 0.5
    %v1790 = vmul.f32 %v1278, 0.5
    %v1791 = vmul.f32 %v1279, 0.5
    %v1792 = vmul.f32 %v1280, 0.5
    %v1793 = vmul.f32 %v1281, 0.5
    %v1794 = vmul.f32 %v1282, 0.5
    %v1795 = vmul.f32 %v1283, 0.5
    %v1796 = vmul.f32 %v1284, 0.5
    %v1797 = vmul.f32 %v1285, 0.5
    %v1798 = vmul.f32 %v1286, 0.5
    %v1799 = vmul.f32 %v1287, 0.5
    %v1800 = vmul.f32 %v1288, 0.5
    %v1801 = vmul.f32 %v1289, 0.5
    %v1802 = vmul.f32 %v1290, 0.5
    %v1803 = vmul.f32 %v1291, 0.5
    %v1804 = vmul.f32 %v1292, 0.5
    %v1805 = vmul.f32 %v1293, 0.5
    %v1806 = vmul.f32 %v1294, 0.5
    %v1807 = vmul.f32 %v1295, 0.5
    %v1808 = vmul.f32 %v1296, 0.5
    %v1809 = vmul.f32 %v1297, 0.5
    %v1810 = vmul.f32 %v1298, 0.5
    %v1811 = vmul.f32 %v1299, 0.5
    %v1812 = vmul.f32 %v1300, 0.5
    %v1813 = vmul.f32 %v1301, 0.5
    %v1814 = vmul.f32 %v1302, 0.5
    %v1815 = vmul.f32 %v1303, 0.5
    %v1816 = vmul.f32 %v1304, 0.5
    %v1817 = vmul.f32 %v1305, 0.5
    %v1818 = vmul.f32 %v1306, 0.5
    %v1819 = vmul.f32 %v1307, 0.5
    %v1820 = vmul.f32 %v1308, 0.5
    %v1821 = vmul.f32 %v1309, 0.5
    %v1822 = vmul.f32 %v1310, 0.5
    %v1823 = vmul.f32 %v1311, 0.5
    %v1824 = vmul.f32 %v1312, 0.5
    %v1825 = vmul.f32 %v1313, 0.5
    %v1826 = vmul.f32 %v1314, 0.5
    %v1827 = vmul.f32 %v1315, 0.5
    %v1828 = vmul.f32 %v1316, 0.5
    %v1829 = vmul.f32 %v1317, 0.5
    %v1830 = vmul.f32 %v1318, 0.5
    %v1831 = vmul.f32 %v1319, 0.5
    %v1832 = vmul.f32 %v1320, 0.5
    %v1833 = vmul.f32 %v1321, 0.5
    %v1834 = vmul.f32 %v1322, 0.5
    %v1835 = vmul.f32 %v1323, 0.5
    %v1836 = vmul.f32 %v1324, 0.5
    %v1837 = vmul.f32 %v1325, 0.5
    %v1838 = vmul.f32 %v1326, 0.5
    %v1839 = vmul.f32 %v1327, 0.5
    %v1840 = vmul.f32 %v1328, 0.5
    %v1841 = vmul.f32 %v1329, 0.5
    %v1842 = vmul.f32 %v1330, 0.5
    %v1843 = vmul.f32 %v1331, 0.5
    %v1844 = vmul.f32 %v1332, 0.5
    %v1845 = vmul.f32 %v1333, 0.5
    %v1846 = vmul.f32 %v1334, 0.5
    %v1847 = vmul.f32 %v1335, 0.5
    %v1848 = vmul.f32 %v1336, 0.5
    %v1849 = vmul.f32 %v1337, 0.5
    %v1850 = vmul.f32 %v1338, 0.5
    %v1851 = vmul.f32 %v1339, 0.5
    %v1852 = vmul.f32 %v1340, 0.5
    %v1853 = vmul.f32 %v1341, 0.5
    %v1854 = vmul.f32 %v1342, 0.5
    %v1855 = vmul.f32 %v1343, 0.5
    %v1856 = vmul.f32 %v1344, 0.5
    %v1857 = vmul.f32 %v1345, 0.5
    %v1858 = vmul.f32 %v1346, 0.5
    %v1859 = vmul.f32 %v1347, 0.5
    %v1860 = vmul.f32 %v1348, 0.5
    %v1861 = vmul.f32 %v1349, 0.5
    %v1862 = vmul.f32 %v1350, 0.5
    %v1863 = vmul.f32 %v1351, 0.5
    %v1864 = vmul.f32 %v1352, 0.5
    %v1865 = vmul.f32 %v1353, 0.5
    %v1866 = vmul.f32 %v1354, 0.5
    %v1867 = vmul.f32 %v1355, 0.5
    %v1868 = vmul.f32 %v1356, 0.5
    %v1869 = vmul.f32 %v1357, 0.5
    %v1870 = vmul.f32 %v1358, 0.5
    %v1871 = vmul.f32 %v1359, 0.5
    %v1872 = vmul.f32 %v1360, 0.5
    %v1873 = vmul.f32 %v1361, 0.5
    %v1874 = vmul.f32 %v1362, 0.5
    %v1875 = vmul.f32 %v1363, 0.5
    %v1876 = vmul.f32 %v1364, 0.5
    %v1877 = vmul.f32 %v1365, 0.5
    %v1878 = vmul.f32 %v1366, 0.5
    %v1879 = vmul.f32 %v1367, 0.5
    %v1880 = vmul.f32 %v1368, 0.5
    %v1881 = vmul.f32 %v1369, 0.5
    %v1882 = vmul.f32 %v1370, 0.5
    %v1883 = vmul.f32 %v1371, 0.5
    %v1884 = vmul.f32 %v1372, 0.5
    %v1885 = vmul.f32 %v1373, 0.5
    %v1886 = vmul.f32 %v1374, 0.5
    %v1887 = vmul.f32 %v1375, 0.5
    %v1888 = vmul.f32 %v1376, 0.5
    %v1889 = vmul.f32 %v1377, 0.5
    %v1890 = vmul.f32 %v1378, 0.5
    %v1891 = vmul.f32 %v1379, 0.5
    %v1892 = vmul.f32 %v1380, 0.5
    %v1893 = vmul.f32 %v1381, 0.5
    %v1894 = vmul.f32 %v1382, 0.5
    %v1895 = vmul.f32 %v1383, 0.5
    %v1896 = vmul.f32 %v1384, 0.5
    %v1897 = vmul.f32 %v1385, 0.5
    %v1898 = vmul.f32 %v1386, 0.5
    %v1899 = vmul.f32 %v1387, 0.5
    %v1900 = vmul.f32 %v1388, 0.5
    %v1901 = vmul.f32 %v1389, 0.5
    %v1902 = vmul.f32 %v1390, 0.5
    %v1903 = vmul.f32 %v1391, 0.5
    %v1904 = vmul.f32 %v1392, 0.5
    %v1905 = vmul.f32 %v1393, 0.5
    %v1906 = vmul.f32 %v1394, 0.5
    %v1907 = vmul.f32 %v1395, 0.5
    %v1908 = vmul.f32 %v1396, 0.5
    %v1909 = vmul.f32 %v1397, 0.5
    %v1910 = vmul.f32 %v1398, 0.5
    %v1911 = vmul.f32 %v1399, 0.5
    %v1912 = vmul.f32 %v1400, 0.5
    %v1913 = vmul.f32 %v1401, 0.5
    %v1914 = vmul.f32 %v1402, 0.5
    %v1915 = vmul.f32 %v1403, 0.5
    %v1916 = vmul.f32 %v1404, 0.5
    %v1917 = vmul.f32 %v1405, 0.5
    %v1918 = vmul.f32 %v1406, 0.5
    %v1919 = vmul.f32 %v1407, 0.5
    %v1920 = vmul.f32 %v1408, 0.5
    %v1921 = vmul.f32 %v1409, 0.5
    %v1922 = vmul.f32 %v1410, 0.5
    %v1923 = vmul.f32 %v1411, 0.5
    %v1924 = vmul.f32 %v1412, 0.5
    %v1925 = vmul.f32 %v1413, 0.5
    %v1926 = vmul.f32 %v1414, 0.5
    %v1927 = vmul.f32 %v1415, 0.5
    %v1928 = vmul.f32 %v1416, 0.5
    %v1929 = vmul.f32 %v1417, 0.5
    %v1930 = vmul.f32 %v1418, 0.5
    %v1931 = vmul.f32 %v1419, 0.5
    %v1932 = vmul.f32 %v1420, 0.5
    %v1933 = vmul.f32 %v1421, 0.5
    %v1934 = vmul.f32 %v1422, 0.5
    %v1935 = vmul.f32 %v1423, 0.5
    %v1936 = vmul.f32 %v1424, 0.5
    %v1937 = vmul.f32 %v1425, 0.5
    %v1938 = vmul.f32 %v1426, 0.5
    %v1939 = vmul.f32 %v1427, 0.5
    %v1940 = vmul.f32 %v1428, 0.5
    %v1941 = vmul.f32 %v1429, 0.5
    %v1942 = vmul.f32 %v1430, 0.5
    %v1943 = vmul.f32 %v1431, 0.5
    %v1944 = vmul.f32 %v1432, 0.5
    %v1945 = vmul.f32 %v1433, 0.5
    %v1946 = vmul.f32 %v1434, 0.5
    %v1947 = vmul.f32 %v1435, 0.5
    %v1948 = vmul.f32 %v1436, 0.5
    %v1949 = vmul.f32 %v1437, 0.5
    %v1950 = vmul.f32 %v1438, 0.5
    %v1951 = vmul.f32 %v1439, 0.5
    %v1952 = vmul.f32 %v1440, 0.5
    %v1953 = vmul.f32 %v1441, 0.5
    %v1954 = vmul.f32 %v1442, 0.5
    %v1955 = vmul.f32 %v1443, 0.5
    %v1956 = vmul.f32 %v1444, 0.5
    %v1957 = vmul.f32 %v1445, 0.5
    %v1958 = vmul.f32 %v1446, 0.5
    %v1959 = vmul.f32 %v1447, 0.5
    %v1960 = vmul.f32 %v1448, 0.5
    %v1961 = vmul.f32 %v1449, 0.5
    %v1962 = vmul.f32 %v1450, 0.5
    %v1963 = vmul.f32 %v1451, 0.5
    %v1964 = vmul.f32 %v1452, 0.5
    %v1965 = vmul.f32 %v1453, 0.5
    %v1966 = vmul.f32 %v1454, 0.5
    %v1967 = vmul.f32 %v1455, 0.5
    %v1968 = vmul.f32 %v1456, 0.5
    %v1969 = vmul.f32 %v1457, 0.5
    %v1970 = vmul.f32 %v1458, 0.5
    %v1971 = vmul.f32 %v1459, 0.5
    %v1972 = vmul.f32 %v1460, 0.5
    %v1973 = vmul.f32 %v1461, 0.5
    %v1974 = vmul.f32 %v1462, 0.5
    %v1975 = vmul.f32 %v1463, 0.5
    %v1976 = vmul.f32 %v1464, 0.5
    %v1977 = vmul.f32 %v1465, 0.5
    %v1978 = vmul.f32 %v1466, 0.5
    %v1979 = vmul.f32 %v1467, 0.5
    %v1980 = vmul.f32 %v1468, 0.5
    %v1981 = vmul.f32 %v1469, 0.5
    %v1982 = vmul.f32 %v1470, 0.5
    %v1983 = vmul.f32 %v1471, 0.5
    %v1984 = vmul.f32 %v1472, 0.5
    %v1985 = vmul.f32 %v1473, 0.5
    %v1986 = vmul.f32 %v1474, 0.5
    %v1987 = vmul.f32 %v1475, 0.5
    %v1988 = vmul.f32 %v1476, 0.5
    %v1989 = vmul.f32 %v1477, 0.5
    %v1990 = vmul.f32 %v1478, 0.5
    %v1991 = vmul.f32 %v1479, 0.5
    %v1992 = vmul.f32 %v1480, 0.5
    %v1993 = vmul.f32 %v1481, 0.5
    %v1994 = vmul.f32 %v1482, 0.5
    %v1995 = vmul.f32 %v1483, 0.5
    %v1996 = vmul.f32 %v1484, 0.5
    %v1997 = vmul.f32 %v1485, 0.5
    %v1998 = vmul.f32 %v1486, 0.5
    %v1999 = vmul.f32 %v1487, 0.5
    %v2000 = vmul.f32 %v1488, 0.5
    %v2001 = vmul.f32 %v1489, 0.5
    %v2002 = vmul.f32 %v1490, 0.5
    %v2003 = vmul.f32 %v1491, 0.5
    %v2004 = vmul.f32 %v1492, 0.5
    %v2005 = vmul.f32 %v1493, 0.5
    %v2006 = vmul.f32 %v1494, 0.5
    %v2007 = vmul.f32 %v1495, 0.5
    %v2008 = vmul.f32 %v1496, 0.5
    %v2009 = vmul.f32 %v1497, 0.5
    %v2010 = vmul.f32 %v1498, 0.5
    %v2011 = vmul.f32 %v1499, 0.5
    %v2012 = vmul.f32 %v1500, 0.5
    %v2013 = vmul.f32 %v1501, 0.5
    %v2014 = vmul.f32 %v1502, 0.5
    %v2015 = vmul.f32 %v1503, 0.5
    %v2016 = vmul.f32 %v1504, 0.5
    %v2017 = vmul.f32 %v1505, 0.5
    %v2018 = vmul.f32 %v1506, 0.5
    %v2019 = vmul.f32 %v1507, 0.5
    %v2020 = vmul.f32 %v1508, 0.5
    %v2021 = vmul.f32 %v1509, 0.5
    %v2022 = vmul.f32 %v1510, 0.5
    %v2023 = vmul.f32 %v1511, 0.5
    %v2024 = vmul.f32 %v1512, 0.5
    %v2025 = vmul.f32 %v1513, 0.5
    %v2026 = vmul.f32 %v1514, 0.5
    %v2027 = vmul.f32 %v1515, 0.5
    %v2028 = vmul.f32 %v1516, 0.5
    %v2029 = vmul.f32 %v1517, 0.5
    %v2030 = vmul.f32 %v1518, 0.5
    %v2031 = vmul.f32 %v1519, 0.5
    %v2032 = vmul.f32 %v1520, 0.5
    %v2033 = vmul.f32 %v1521, 0.5
    %v2034 = vmul.f32 %v1522, 0.5
    %v2035 = vmul.f32 %v1523, 0.5
    %v2036 = vmul.f32 %v1524, 0.5
    %v2037 = vmul.f32 %v1525, 0.5
    %v2038 = vmul.f32 %v1526, 0.5
    %v2039 = vmul.f32 %v1527, 0.5
    %v2040 = vmul.f32 %v1528, 0.5
    %v2041 = vmul.f32 %v1529, 0.5
    %v2042 = vmul.f32 %v1530, 0.5
    %v2043 = vmul.f32 %v1531, 0.5
    %v2044 = vmul.f32 %v1532, 0.5
    %v2045 = vmul.f32 %v1533, 0.5
    %v2046 = vmul.f32 %v1534, 0.5
    %v2047 = vmul.f32 %v1535, 0.5
    %v2048 = vmul.f32 %v1536, 0.5
    %v2049 = vmul.f32 %v1537, 0.5
    %v2050 = vmul.f32 %v1538, 0.5
    %v2051 = vmul.f32 %v1539, 0.5
    %v2052 = vmul.f32 %v1540, 0.5
    %v2053 = vmul.f32 %v1541, 0.5
    %v2054 = vmul.f32 %v1542, 0.5
    %v2055 = vmul.f32 %v1543, 0.5
    %v2056 = vmul.f32 %v1544, 0.5
    %v2057 = vmul.f32 %v1545, 0.5
    %v2058 = vmul.f32 %v1546, 0.5
    %v2059 = vmul.f32 %v1547, 0.5
    %v2060 = vmul.f32 %v1548, 0.5
    %v2061 = vmul.f32 %v1549, 0.5
    %v2062 = vmul.f32 %v1550, 0.5
    %v2063 = vmul.f32 %v1551, 0.5
    %v2064 = vmul.f32 %v1552, 0.5
    %v2065 = vmul.f32 %v1553, 0.5
    %v2066 = vmul.f32 %v1554, 0.5
    %v2067 = vmul.f32 %v1555, 0.5
    %v2068 = vmul.f32 %v1556, 0.5
    %v2069 = vmul.f32 %v1557, 0.5
    %v2070 = vmul.f32 %v1558, 0.5
    %v2071 = vmul.f32 %v1559, 0.5
    %v2072 = vmul.f32 %v1560, 0.5
    %v2073 = vadd.f32 %v1561, 0.5
    %v2074 = vadd.f32 %v1562, 0.5
    %v2075 = vadd.f32 %v1563, 0.5
    %v2076 = vadd.f32 %v1564, 0.5
    %v2077 = vadd.f32 %v1565, 0.5
    %v2078 = vadd.f32 %v1566, 0.5
    %v2079 = vadd.f32 %v1567, 0.5
    %v2080 = vadd.f32 %v1568, 0.5
    %v2081 = vadd.f32 %v1569, 0.5
    %v2082 = vadd.f32 %v1570, 0.5
    %v2083 = vadd.f32 %v1571, 0.5
    %v2084 = vadd.f32 %v1572, 0.5
    %v2085 = vadd.f32 %v1573, 0.5
    %v2086 = vadd.f32 %v1574, 0.5
    %v2087 = vadd.f32 %v1575, 0.5
    %v2088 = vadd.f32 %v1576, 0.5
    %v2089 = vadd.f32 %v1577, 0.5
    %v2090 = vadd.f32 %v1578, 0.5
    %v2091 = vadd.f32 %v1579, 0.5
    %v2092 = vadd.f32 %v1580, 0.5
    %v2093 = vadd.f32 %v1581, 0.5
    %v2094 = vadd.f32 %v1582, 0.5
    %v2095 = vadd.f32 %v1583, 0.5
    %v2096 = vadd.f32 %v1584, 0.5
    %v2097 = vadd.f32 %v1585, 0.5
    %v2098 = vadd.f32 %v1586, 0.5
    %v2099 = vadd.f32 %v1587, 0.5
    %v2100 = vadd.f32 %v1588, 0.5
    %v2101 = vadd.f32 %v1589, 0.5
    %v2102 = vadd.f32 %v1590, 0.5
    %v2103 = vadd.f32 %v1591, 0.5
    %v2104 = vadd.f32 %v1592, 0.5
    %v2105 = vadd.f32 %v1593, 0.5
    %v2106 = vadd.f32 %v1594, 0.5
    %v2107 = vadd.f32 %v1595, 0.5
    %v2108 = vadd.f32 %v1596, 0.5
    %v2109 = vadd.f32 %v1597, 0.5
    %v2110 = vadd.f32 %v1598, 0.5
    %v2111 = vadd.f32 %v1599, 0.5
    %v2112 = vadd.f32 %v1600, 0.5
    %v2113 = vadd.f32 %v1601, 0.5
    %v2114 = vadd.f32 %v1602, 0.5
    %v2115 = vadd.f32 %v1603, 0.5
    %v2116 = vadd.f32 %v1604, 0.5
    %v2117 = vadd.f32 %v1605, 0.5
    %v2118 = vadd.f32 %v1606, 0.5
    %v2119 = vadd.f32 %v1607, 0.5
    %v2120 = vadd.f32 %v1608, 0.5
    %v2121 = vadd.f32 %v1609, 0.5
    %v2122 = vadd.f32 %v1610, 0.5
    %v2123 = vadd.f32 %v1611, 0.5
    %v2124 = vadd.f32 %v1612, 0.5
    %v2125 = vadd.f32 %v1613, 0.5
    %v2126 = vadd.f32 %v1614, 0.5
    %v2127 = vadd.f32 %v1615, 0.5
    %v2128 = vadd.f32 %v1616, 0.5
    %v2129 = vadd.f32 %v1617, 0.5
    %v2130 = vadd.f32 %v1618, 0.5
    %v2131 = vadd.f32 %v1619, 0.5
    %v2132 = vadd.f32 %v1620, 0.5
    %v2133 = vadd.f32 %v1621, 0.5
    %v2134 = vadd.f32 %v1622, 0.5
    %v2135 = vadd.f32 %v1623, 0.5
    %v2136 = vadd.f32 %v1624, 0.5
    %v2137 = vadd.f32 %v1625, 0.5
    %v2138 = vadd.f32 %v1626, 0.5
    %v2139 = vadd.f32 %v1627, 0.5
    %v2140 = vadd.f32 %v1628, 0.5
    %v2141 = vadd.f32 %v1629, 0.5
    %v2142 = vadd.f32 %v1630, 0.5
    %v2143 = vadd.f32 %v1631, 0.5
    %v2144 = vadd.f32 %v1632, 0.5
    %v2145 = vadd.f32 %v1633, 0.5
    %v2146 = vadd.f32 %v1634, 0.5
    %v2147 = vadd.f32 %v1635, 0.5
    %v2148 = vadd.f32 %v1636, 0.5
    %v2149 = vadd.f32 %v1637, 0.5
    %v2150 = vadd.f32 %v1638, 0.5
    %v2151 = vadd.f32 %v1639, 0.5
    %v2152 = vadd.f32 %v1640, 0.5
    %v2153 = vadd.f32 %v1641, 0.5
    %v2154 = vadd.f32 %v1642, 0.5
    %v2155 = vadd.f32 %v1643, 0.5
    %v2156 = vadd.f32 %v1644, 0.5
    %v2157 = vadd.f32 %v1645, 0.5
    %v2158 = vadd.f32 %v1646, 0.5
    %v2159 = vadd.f32 %v1647, 0.5
    %v2160 = vadd.f32 %v1648, 0.5
    %v2161 = vadd.f32 %v1649, 0.5
    %v2162 = vadd.f32 %v1650, 0.5
    %v2163 = vadd.f32 %v1651, 0.5
    %v2164 = vadd.f32 %v1652, 0.5
    %v2165 = vadd.f32 %v1653, 0.5
    %v2166 = vadd.f32 %v1654, 0.5
    %v2167 = vadd.f32 %v1655, 0.5
    %v2168 = vadd.f32 %v1656, 0.5
    %v2169 = vadd.f32 %v1657, 0.5
    %v2170 = vadd.f32 %v1658, 0.5
    %v2171 = vadd.f32 %v1659, 0.5
    %v2172 = vadd.f32 %v1660, 0.5
    %v2173 = vadd.f32 %v1661, 0.5
    %v2174 = vadd.f32 %v1662, 0.5
    %v2175 = vadd.f32 %v1663, 0.5
    %v2176 = vadd.f32 %v1664, 0.5
    %v2177 = vadd.f32 %v1665, 0.5
    %v2178 = vadd.f32 %v1666, 0.5
    %v2179 = vadd.f32 %v1667, 0.5
    %v2180 = vadd.f32 %v1668, 0.5
    %v2181 = vadd.f32 %v1669, 0.5
    %v2182 = vadd.f32 %v1670, 0.5
    %v2183 = vadd.f32 %v1671, 0.5
    %v2184 = vadd.f32 %v1672, 0.5
    %v2185 = vadd.f32 %v1673, 0.5
    %v2186 = vadd.f32 %v1674, 0.5
    %v2187 = vadd.f32 %v1675, 0.5
    %v2188 = vadd.f32 %v1676, 0.5
    %v2189 = vadd.f32 %v1677, 0.5
    %v2190 = vadd.f32 %v1678, 0.5
    %v2191 = vadd.f32 %v1679, 0.5
    %v2192 = vadd.f32 %v1680, 0.5
    %v2193 = vadd.f32 %v1681, 0.5
    %v2194 = vadd.f32 %v1682, 0.5
    %v2195 = vadd.f32 %v1683, 0.5
    %v2196 = vadd.f32 %v1684, 0.5
    %v2197 = vadd.f32 %v1685, 0.5
    %v2198 = vadd.f32 %v1686, 0.5
    %v2199 = vadd.f32 %v1687, 0.5
    %v2200 = vadd.f32 %v1688, 0.5
    %v2201 = vadd.f32 %v1689, 0.5
    %v2202 = vadd.f32 %v1690, 0.5
    %v2203 = vadd.f32 %v1691, 0.5
    %v2204 = vadd.f32 %v1692, 0.5
    %v2205 = vadd.f32 %v1693, 0.5
    %v2206 = vadd.f32 %v1694, 0.5
    %v2207 = vadd.f32 %v1695, 0.5
    %v2208 = vadd.f32 %v1696, 0.5
    %v2209 = vadd.f32 %v1697, 0.5
    %v2210 = vadd.f32 %v1698, 0.5
    %v2211 = vadd.f32 %v1699, 0.5
    %v2212 = vadd.f32 %v1700, 0.5
    %v2213 = vadd.f32 %v1701, 0.5
    %v2214 = vadd.f32 %v1702, 0.5
    %v2215 = vadd.f32 %v1703, 0.5
    %v2216 = vadd.f32 %v1704, 0.5
    %v2217 = vadd.f32 %v1705, 0.5
    %v2218 = vadd.f32 %v1706, 0.5
    %v2219 = vadd.f32 %v1707, 0.5
    %v2220 = vadd.f32 %v1708, 0.5
    %v2221 = vadd.f32 %v1709, 0.5
    %v2222 = vadd.f32 %v1710, 0.5
    %v2223 = vadd.f32 %v1711, 0.5
    %v2224 = vadd.f32 %v1712, 0.5
    %v2225 = vadd.f32 %v1713, 0.5
    %v2226 = vadd.f32 %v1714, 0.5
    %v2227 = vadd.f32 %v1715, 0.5
    %v2228 = vadd.f32 %v1716, 0.5
    %v2229 = vadd.f32 %v1717, 0.5
    %v2230 = vadd.f32 %v1718, 0.5
    %v2231 = vadd.f32 %v1719, 0.5
    %v2232 = vadd.f32 %v1720, 0.5
    %v2233 = vadd.f32 %v1721, 0.5
    %v2234 = vadd.f32 %v1722, 0.5
    %v2235 = vadd.f32 %v1723, 0.5
    %v2236 = vadd.f32 %v1724, 0.5
    %v2237 = vadd.f32 %v1725, 0.5
    %v2238 = vadd.f32 %v1726, 0.5
    %v2239 = vadd.f32 %v1727, 0.5
    %v2240 = vadd.f32 %v1728, 0.5
    %v2241 = vadd.f32 %v1729, 0.5
    %v2242 = vadd.f32 %v1730, 0.5
    %v2243 = vadd.f32 %v1731, 0.5
    %v2244 = vadd.f32 %v1732, 0.5
    %v2245 = vadd.f32 %v1733, 0.5
    %v2246 = vadd.f32 %v1734, 0.5
    %v2247 = vadd.f32 %v1735, 0.5
    %v2248 = vadd.f32 %v1736, 0.5
    %v2249 = vadd.f32 %v1737, 0.5
    %v2250 = vadd.f32 %v1738, 0.5
    %v2251 = vadd.f32 %v1739, 0.5
    %v2252 = vadd.f32 %v1740, 0.5
    %v2253 = vadd.f32 %v1741, 0.5
    %v2254 = vadd.f32 %v1742, 0.5
    %v2255 = vadd.f32 %v1743, 0.5
    %v2256 = vadd.f32 %v1744, 0.5
    %v2257 = vadd.f32 %v1745, 0.5
    %v2258 = vadd.f32 %v1746, 0.5
    %v2259 = vadd.f32 %v1747, 0.5
    %v2260 = vadd.f32 %v1748, 0.5
    %v2261 = vadd.f32 %v1749, 0.5
    %v2262 = vadd.f32 %v1750, 0.5
    %v2263 = vadd.f32 %v1751, 0.5
    %v2264 = vadd.f32 %v1752, 0.5
    %v2265 = vadd.f32 %v1753, 0.5
    %v2266 = vadd.f32 %v1754, 0.5
    %v2267 = vadd.f32 %v1755, 0.5
    %v2268 = vadd.f32 %v1756, 0.5
    %v2269 = vadd.f32 %v1757, 0.5
    %v2270 = vadd.f32 %v1758, 0.5
    %v2271 = vadd.f32 %v1759, 0.5
    %v2272 = vadd.f32 %v1760, 0.5
    %v2273 = vadd.f32 %v1761, 0.5
    %v2274 = vadd.f32 %v1762, 0.5
    %v2275 = vadd.f32 %v1763, 0.5
    %v2276 = vadd.f32 %v1764, 0.5
    %v2277 = vadd.f32 %v1765, 0.5
    %v2278 = vadd.f32 %v1766, 0.5
    %v2279 = vadd.f32 %v1767, 0.5
    %v2280 = vadd.f32 %v1768, 0.5
    %v2281 = vadd.f32 %v1769, 0.5
    %v2282 = vadd.f32 %v1770, 0.5
    %v2283 = vadd.f32 %v1771, 0.5
    %v2284 = vadd.f32 %v1772, 0.5
    %v2285 = vadd.f32 %v1773, 0.5
    %v2286 = vadd.f32 %v1774, 0.5
    %v2287 = vadd.f32 %v1775, 0.5
    %v2288 = vadd.f32 %v1776, 0.5
    %v2289 = vadd.f32 %v1777, 0.5
    %v2290 = vadd.f32 %v1778, 0.5
    %v2291 = vadd.f32 %v1779, 0.5
    %v2292 = vadd.f32 %v1780, 0.5
    %v2293 = vadd.f32 %v1781, 0.5
    %v2294 = vadd.f32 %v1782, 0.5
    %v2295 = vadd.f32 %v1783, 0.5
    %v2296 = vadd.f32 %v1784, 0.5
    %v2297 = vadd.f32 %v1785, 0.5
    %v2298 = vadd.f32 %v1786, 0.5
    %v2299 = vadd.f32 %v1787, 0.5
    %v2300 = vadd.f32 %v1788, 0.5
    %v2301 = vadd.f32 %v1789, 0.5
    %v2302 = vadd.f32 %v1790, 0.5
    %v2303 = vadd.f32 %v1791, 0.5
    %v2304 = vadd.f32 %v1792, 0.5
    %v2305 = vadd.f32 %v1793, 0.5
    %v2306 = vadd.f32 %v1794, 0.5
    %v2307 = vadd.f32 %v1795, 0.5
    %v2308 = vadd.f32 %v1796, 0.5
    %v2309 = vadd.f32 %v1797, 0.5
    %v2310 = vadd.f32 %v1798, 0.5
    %v2311 = vadd.f32 %v1799, 0.5
    %v2312 = vadd.f32 %v1800, 0.5
    %v2313 = vadd.f32 %v1801, 0.5
    %v2314 = vadd.f32 %v1802, 0.5
    %v2315 = vadd.f32 %v1803, 0.5
    %v2316 = vadd.f32 %v1804, 0.5
    %v2317 = vadd.f32 %v1805, 0.5
    %v2318 = vadd.f32 %v1806, 0.5
    %v2319 = vadd.f32 %v1807, 0.5
    %v2320 = vadd.f32 %v1808, 0.5
    %v2321 = vadd.f32 %v1809, 0.5
    %v2322 = vadd.f32 %v1810, 0.5
    %v2323 = vadd.f32 %v1811, 0.5
    %v2324 = vadd.f32 %v1812, 0.5
    %v2325 = vadd.f32 %v1813, 0.5
    %v2326 = vadd.f32 %v1814, 0.5
    %v2327 = vadd.f32 %v1815, 0.5
    %v2328 = vadd.f32 %v1816, 0.5
    %v2329 = vadd.f32 %v1817, 0.5
    %v2330 = vadd.f32 %v1818, 0.5
    %v2331 = vadd.f32 %v1819, 0.5
    %v2332 = vadd.f32 %v1820, 0.5
    %v2333 = vadd.f32 %v1821, 0.5
    %v2334 = vadd.f32 %v1822, 0.5
    %v2335 = vadd.f32 %v1823, 0.5
    %v2336 = vadd.f32 %v1824, 0.5
    %v2337 = vadd.f32 %v1825, 0.5
    %v2338 = vadd.f32 %v1826, 0.5
    %v2339 = vadd.f32 %v1827, 0.5
    %v2340 = vadd.f32 %v1828, 0.5
    %v2341 = vadd.f32 %v1829, 0.5
    %v2342 = vadd.f32 %v1830, 0.5
    %v2343 = vadd.f32 %v1831, 0.5
    %v2344 = vadd.f32 %v1832, 0.5
    %v2345 = vadd.f32 %v1833, 0.5
    %v2346 = vadd.f32 %v1834, 0.5
    %v2347 = vadd.f32 %v1835, 0.5
    %v2348 = vadd.f32 %v1836, 0.5
    %v2349 = vadd.f32 %v1837, 0.5
    %v2350 = vadd.f32 %v1838, 0.5
    %v2351 = vadd.f32 %v1839, 0.5
    %v2352 = vadd.f32 %v1840, 0.5
    %v2353 = vadd.f32 %v1841, 0.5
    %v2354 = vadd.f32 %v1842, 0.5
    %v2355 = vadd.f32 %v1843, 0.5
    %v2356 = vadd.f32 %v1844, 0.5
    %v2357 = vadd.f32 %v1845, 0.5
    %v2358 = vadd.f32 %v1846, 0.5
    %v2359 = vadd.f32 %v1847, 0.5
    %v2360 = vadd.f32 %v1848, 0.5
    %v2361 = vadd.f32 %v1849, 0.5
    %v2362 = vadd.f32 %v1850, 0.5
    %v2363 = vadd.f32 %v1851, 0.5
    %v2364 = vadd.f32 %v1852, 0.5
    %v2365 = vadd.f32 %v1853, 0.5
    %v2366 = vadd.f32 %v1854, 0.5
    %v2367 = vadd.f32 %v1855, 0.5
    %v2368 = vadd.f32 %v1856, 0.5
    %v2369 = vadd.f32 %v1857, 0.5
    %v2370 = vadd.f32 %v1858, 0.5
    %v2371 = vadd.f32 %v1859, 0.5
    %v2372 = vadd.f32 %v1860, 0.5
    %v2373 = vadd.f32 %v1861, 0.5
    %v2374 = vadd.f32 %v1862, 0.5
    %v2375 = vadd.f32 %v1863, 0.5
    %v2376 = vadd.f32 %v1864, 0.5
    %v2377 = vadd.f32 %v1865, 0.5
    %v2378 = vadd.f32 %v1866, 0.5
    %v2379 = vadd.f32 %v1867, 0.5
    %v2380 = vadd.f32 %v1868, 0.5
    %v2381 = vadd.f32 %v1869, 0.5
    %v2382 = vadd.f32 %v1870, 0.5
    %v2383 = vadd.f32 %v1871, 0.5
    %v2384 = vadd.f32 %v1872, 0.5
    %v2385 = vadd.f32 %v1873, 0.5
    %v2386 = vadd.f32 %v1874, 0.5
    %v2387 = vadd.f32 %v1875, 0.5
    %v2388 = vadd.f32 %v1876, 0.5
    %v2389 = vadd.f32 %v1877, 0.5
    %v2390 = vadd.f32 %v1878, 0.5
    %v2391 = vadd.f32 %v1879, 0.5
    %v2392 = vadd.f32 %v1880, 0.5
    %v2393 = vadd.f32 %v1881, 0.5
    %v2394 = vadd.f32 %v1882, 0.5
    %v2395 = vadd.f32 %v1883, 0.5
    %v2396 = vadd.f32 %v1884, 0.5
    %v2397 = vadd.f32 %v1885, 0.5
    %v2398 = vadd.f32 %v1886, 0.5
    %v2399 = vadd.f32 %v1887, 0.5
    %v2400 = vadd.f32 %v1888, 0.5
    %v2401 = vadd.f32 %v1889, 0.5
    %v2402 = vadd.f32 %v1890, 0.5
    %v2403 = vadd.f32 %v1891, 0.5
    %v2404 = vadd.f32 %v1892, 0.5
    %v2405 = vadd.f32 %v1893, 0.5
    %v2406 = vadd.f32 %v1894, 0.5
    %v2407 = vadd.f32 %v1895, 0.5
    %v2408 = vadd.f32 %v1896, 0.5
    %v2409 = vadd.f32 %v1897, 0.5
    %v2410 = vadd.f32 %v1898, 0.5
    %v2411 = vadd.f32 %v1899, 0.5
    %v2412 = vadd.f32 %v1900, 0.5
    %v2413 = vadd.f32 %v1901, 0.5
    %v2414 = vadd.f32 %v1902, 0.5
    %v2415 = vadd.f32 %v1903, 0.5
    %v2416 = vadd.f32 %v1904, 0.5
    %v2417 = vadd.f32 %v1905, 0.5
    %v2418 = vadd.f32 %v1906, 0.5
    %v2419 = vadd.f32 %v1907, 0.5
    %v2420 = vadd.f32 %v1908, 0.5
    %v2421 = vadd.f32 %v1909, 0.5
    %v2422 = vadd.f32 %v1910, 0.5
    %v2423 = vadd.f32 %v1911, 0.5
    %v2424 = vadd.f32 %v1912, 0.5
    %v2425 = vadd.f32 %v1913, 0.5
    %v2426 = vadd.f32 %v1914, 0.5
    %v2427 = vadd.f32 %v1915, 0.5
    %v2428 = vadd.f32 %v1916, 0.5
    %v2429 = vadd.f32 %v1917, 0.5
    %v2430 = vadd.f32 %v1918, 0.5
    %v2431 = vadd.f32 %v1919, 0.5
    %v2432 = vadd.f32 %v1920, 0.5
    %v2433 = vadd.f32 %v1921, 0.5
    %v2434 = vadd.f32 %v1922, 0.5
    %v2435 = vadd.f32 %v1923, 0.5
    %v2436 = vadd.f32 %v1924, 0.5
    %v2437 = vadd.f32 %v1925, 0.5
    %v2438 = vadd.f32 %v1926, 0.5
    %v2439 = vadd.f32 %v1927, 0.5
    %v2440 = vadd.f32 %v1928, 0.5
    %v2441 = vadd.f32 %v1929, 0.5
    %v2442 = vadd.f32 %v1930, 0.5
    %v2443 = vadd.f32 %v1931, 0.5
    %v2444 = vadd.f32 %v1932, 0.5
    %v2445 = vadd.f32 %v1933, 0.5
    %v2446 = vadd.f32 %v1934, 0.5
    %v2447 = vadd.f32 %v1935, 0.5
    %v2448 = vadd.f32 %v1936, 0.5
    %v2449 = vadd.f32 %v1937, 0.5
    %v2450 = vadd.f32 %v1938, 0.5
    %v2451 = vadd.f32 %v1939, 0.5
    %v2452 = vadd.f32 %v1940, 0.5
    %v2453 = vadd.f32 %v1941, 0.5
    %v2454 = vadd.f32 %v1942, 0.5
    %v2455 = vadd.f32 %v1943, 0.5
    %v2456 = vadd.f32 %v1944, 0.5
    %v2457 = vadd.f32 %v1945, 0.5
    %v2458 = vadd.f32 %v1946, 0.5
    %v2459 = vadd.f32 %v1947, 0.5
    %v2460 = vadd.f32 %v1948, 0.5
    %v2461 = vadd.f32 %v1949, 0.5
    %v2462 = vadd.f32 %v1950, 0.5
    %v2463 = vadd.f32 %v1951, 0.5
    %v2464 = vadd.f32 %v1952, 0.5
    %v2465 = vadd.f32 %v1953, 0.5
    %v2466 = vadd.f32 %v1954, 0.5
    %v2467 = vadd.f32 %v1955, 0.5
    %v2468 = vadd.f32 %v1956, 0.5
    %v2469 = vadd.f32 %v1957, 0.5
    %v2470 = vadd.f32 %v1958, 0.5
    %v2471 = vadd.f32 %v1959, 0.5
    %v2472 = vadd.f32 %v1960, 0.5
    %v2473 = vadd.f32 %v1961, 0.5
    %v2474 = vadd.f32 %v1962, 0.5
    %v2475 = vadd.f32 %v1963, 0.5
    %v2476 = vadd.f32 %v1964, 0.5
    %v2477 = vadd.f32 %v1965, 0.5
    %v2478 = vadd.f32 %v1966, 0.5
    %v2479 = vadd.f32 %v1967, 0.5
    %v2480 = vadd.f32 %v1968, 0.5
    %v2481 = vadd.f32 %v1969, 0.5
    %v2482 = vadd.f32 %v1970, 0.5
    %v2483 = vadd.f32 %v1971, 0.5
    %v2484 = vadd.f32 %v1972, 0.5
    %v2485 = vadd.f32 %v1973, 0.5
    %v2486 = vadd.f32 %v1974, 0.5
    %v2487 = vadd.f32 %v1975, 0.5
    %v2488 = vadd.f32 %v1976, 0.5
    %v2489 = vadd.f32 %v1977, 0.5
    %v2490 = vadd.f32 %v1978, 0.5
    %v2491 = vadd.f32 %v1979, 0.5
    %v2492 = vadd.f32 %v1980, 0.5
    %v2493 = vadd.f32 %v1981, 0.5
    %v2494 = vadd.f32 %v1982, 0.5
    %v2495 = vadd.f32 %v1983, 0.5
    %v2496 = vadd.f32 %v1984, 0.5
    %v2497 = vadd.f32 %v1985, 0.5
    %v2498 = vadd.f32 %v1986, 0.5
    %v2499 = vadd.f32 %v1987, 0.5
    %v2500 = vadd.f32 %v1988, 0.5
    %v2501 = vadd.f32 %v1989, 0.5
    %v2502 = vadd.f32 %v1990, 0.5
    %v2503 = vadd.f32 %v1991, 0.5
    %v2504 = vadd.f32 %v1992, 0.5
    %v2505 = vadd.f32 %v1993, 0.5
    %v2506 = vadd.f32 %v1994, 0.5
    %v2507 = vadd.f32 %v1995, 0.5
    %v2508 = vadd.f32 %v1996, 0.5
    %v2509 = vadd.f32 %v1997, 0.5
    %v2510 = vadd.f32 %v1998, 0.5
    %v2511 = vadd.f32 %v1999, 0.5
    %v2512 = vadd.f32 %v2000, 0.5
    %v2513 = vadd.f32 %v2001, 0.5
    %v2514 = vadd.f32 %v2002, 0.5
    %v2515 = vadd.f32 %v2003, 0.5
    %v2516 = vadd.f32 %v2004, 0.5
    %v2517 = vadd.f32 %v2005, 0.5
    %v2518 = vadd.f32 %v2006, 0.5
    %v2519 = vadd.f32 %v2007, 0.5
    %v2520 = vadd.f32 %v2008, 0.5
    %v2521 = vadd.f32 %v2009, 0.5
    %v2522 = vadd.f32 %v2010, 0.5
    %v2523 = vadd.f32 %v2011, 0.5
    %v2524 = vadd.f32 %v2012, 0.5
    %v2525 = vadd.f32 %v2013, 0.5
    %v2526 = vadd.f32 %v2014, 0.5
    %v2527 = vadd.f32 %v2015, 0.5
    %v2528 = vadd.f32 %v2016, 0.5
    %v2529 = vadd.f32 %v2017, 0.5
    %v2530 = vadd.f32 %v2018, 0.5
    %v2531 = vadd.f32 %v2019, 0.5
    %v2532 = vadd.f32 %v2020, 0.5
    %v2533 = vadd.f32 %v2021, 0.5
    %v2534 = vadd.f32 %v2022, 0.5
    %v2535 = vadd.f32 %v2023, 0.5
    %v2536 = vadd.f32 %v2024, 0.5
    %v2537 = vadd.f32 %v2025, 0.5
    %v2538 = vadd.f32 %v2026, 0.5
    %v2539 = vadd.f32 %v2027, 0.5
    %v2540 = vadd.f32 %v2028, 0.5
    %v2541 = vadd.f32 %v2029, 0.5
    %v2542 = vadd.f32 %v2030, 0.5
    %v2543 = vadd.f32 %v2031, 0.5
    %v2544 = vadd.f32 %v2032, 0.5
    %v2545 = vadd.f32 %v2033, 0.5
    %v2546 = vadd.f32 %v2034, 0.5
    %v2547 = vadd.f32 %v2035, 0.5
    %v2548 = vadd.f32 %v2036, 0.5
    %v2549 = vadd.f32 %v2037, 0.5
    %v2550 = vadd.f32 %v2038, 0.5
    %v2551 = vadd.f32 %v2039, 0.5
    %v2552 = vadd.f32 %v2040, 0.5
    %v2553 = vadd.f32 %v2041, 0.5
    %v2554 = vadd.f32 %v2042, 0.5
    %v2555 = vadd.f32 %v2043, 0.5
    %v2556 = vadd.f32 %v2044, 0.5
    %v2557 = vadd.f32 %v2045, 0.5
    %v2558 = vadd.f32 %v2046, 0.5
    %v2559 = vadd.f32 %v2047, 0.5
    %v2560 = vadd.f32 %v2048, 0.5
    %v2561 = vadd.f32 %v2049, 0.5
    %v2562 = vadd.f32 %v2050, 0.5
    %v2563 = vadd.f32 %v2051, 0.5
    %v2564 = vadd.f32 %v2052, 0.5
    %v2565 = vadd.f32 %v2053, 0.5
    %v2566 = vadd.f32 %v2054, 0.5
    %v2567 = vadd.f32 %v2055, 0.5
    %v2568 = vadd.f32 %v2056, 0.5
    %v2569 = vadd.f32 %v2057, 0.5
    %v2570 = vadd.f32 %v2058, 0.5
    %v2571 = vadd.f32 %v2059, 0.5
    %v2572 = vadd.f32 %v2060, 0.5
    %v2573 = vadd.f32 %v2061, 0.5
    %v2574 = vadd.f32 %v2062, 0.5
    %v2575 = vadd.f32 %v2063, 0.5
    %v2576 = vadd.f32 %v2064, 0.5
    %v2577 = vadd.f32 %v2065, 0.5
    %v2578 = vadd.f32 %v2066, 0.5
    %v2579 = vadd.f32 %v2067, 0.5
    %v2580 = vadd.f32 %v2068, 0.5
    %v2581 = vadd.f32 %v2069, 0.5
    %v2582 = vadd.f32 %v2070, 0.5
    %v2583 = vadd.f32 %v2071, 0.5
    %v2584 = vadd.f32 %v2072, 0.5
    %2585 = vst [vmem:[#allocation5] sm:$0xff] %v2073
    %2586 = vst [vmem:[#allocation5 + $0x8] sm:$0xff] %v2074
    %2587 = vst [vmem:[#allocation5 + $0x10] sm:$0xff] %v2075
    %2588 = vst [vmem:[#allocation5 + $0x18] sm:$0xff] %v2076
    %2589 = vst [vmem:[#allocation5 + $0x20] sm:$0xff] %v2077
    %2590 = vst [vmem:[#allocation5 + $0x28] sm:$0xff] %v2078
    %2591 = vst [vmem:[#allocation5 + $0x30] sm:$0xff] %v2079
    %2592 = vst [vmem:[#allocation5 + $0x38] sm:$0xff] %v2080
    %2593 = vst [vmem:[#allocation5 + $0x40] sm:$0xff] %v2081
    %2594 = vst [vmem:[#allocation5 + $0x48] sm:$0xff] %v2082
    %2595 = vst [vmem:[#allocation5 + $0x50] sm:$0xff] %v2083
    %2596 = vst [vmem:[#allocation5 + $0x58] sm:$0xff] %v2084
    %2597 = vst [vmem:[#allocation5 + $0x60] sm:$0xff] %v2085
    %2598 = vst [vmem:[#allocation5 + $0x68] sm:$0xff] %v2086
    %2599 = vst [vmem:[#allocation5 + $0x70] sm:$0xff] %v2087
    %2600 = vst [vmem:[#allocation5 + $0x78] sm:$0xff] %v2088
    %2601 = vst [vmem:[#allocation5 + $0x80] sm:$0xff] %v2089
    %2602 = vst [vmem:[#allocation5 + $0x88] sm:$0xff] %v2090
    %2603 = vst [vmem:[#allocation5 + $0x90] sm:$0xff] %v2091
    %2604 = vst [vmem:[#allocation5 + $0x98] sm:$0xff] %v2092
    %2605 = vst [vmem:[#allocation5 + $0xa0] sm:$0xff] %v2093
    %2606 = vst [vmem:[#allocation5 + $0xa8] sm:$0xff] %v2094
    %2607 = vst [vmem:[#allocation5 + $0xb0] sm:$0xff] %v2095
    %2608 = vst [vmem:[#allocation5 + $0xb8] sm:$0xff] %v2096
    %2609 = vst [vmem:[#allocation5 + $0xc0] sm:$0xff] %v2097
    %2610 = vst [vmem:[#allocation5 + $0xc8] sm:$0xff] %v2098
    %2611 = vst [vmem:[#allocation5 + $0xd0] sm:$0xff] %v2099
    %2612 = vst [vmem:[#allocation5 + $0xd8] sm:$0xff] %v2100
    %2613 = vst [vmem:[#allocation5 + $0xe0] sm:$0xff] %v2101
    %2614 = vst [vmem:[#allocation5 + $0xe8] sm:$0xff] %v2102
    %2615 = vst [vmem:[#allocation5 + $0xf0] sm:$0xff] %v2103
    %2616 = vst [vmem:[#allocation5 + $0xf8] sm:$0xff] %v2104
    %2617 = vst [vmem:[#allocation5 + $0x100] sm:$0xff] %v2105
    %2618 = vst [vmem:[#allocation5 + $0x108] sm:$0xff] %v2106
    %2619 = vst [vmem:[#allocation5 + $0x110] sm:$0xff] %v2107
    %2620 = vst [vmem:[#allocation5 + $0x118] sm:$0xff] %v2108
    %2621 = vst [vmem:[#allocation5 + $0x120] sm:$0xff] %v2109
    %2622 = vst [vmem:[#allocation5 + $0x128] sm:$0xff] %v2110
    %2623 = vst [vmem:[#allocation5 + $0x130] sm:$0xff] %v2111
    %2624 = vst [vmem:[#allocation5 + $0x138] sm:$0xff] %v2112
    %2625 = vst [vmem:[#allocation5 + $0x140] sm:$0xff] %v2113
    %2626 = vst [vmem:[#allocation5 + $0x148] sm:$0xff] %v2114
    %2627 = vst [vmem:[#allocation5 + $0x150] sm:$0xff] %v2115
    %2628 = vst [vmem:[#allocation5 + $0x158] sm:$0xff] %v2116
    %2629 = vst [vmem:[#allocation5 + $0x160] sm:$0xff] %v2117
    %2630 = vst [vmem:[#allocation5 + $0x168] sm:$0xff] %v2118
    %2631 = vst [vmem:[#allocation5 + $0x170] sm:$0xff] %v2119
    %2632 = vst [vmem:[#allocation5 + $0x178] sm:$0xff] %v2120
    %2633 = vst [vmem:[#allocation5 + $0x180] sm:$0xff] %v2121
    %2634 = vst [vmem:[#allocation5 + $0x188] sm:$0xff] %v2122
    %2635 = vst [vmem:[#allocation5 + $0x190] sm:$0xff] %v2123
    %2636 = vst [vmem:[#allocation5 + $0x198] sm:$0xff] %v2124
    %2637 = vst [vmem:[#allocation5 + $0x1a0] sm:$0xff] %v2125
    %2638 = vst [vmem:[#allocation5 + $0x1a8] sm:$0xff] %v2126
    %2639 = vst [vmem:[#allocation5 + $0x1b0] sm:$0xff] %v2127
    %2640 = vst [vmem:[#allocation5 + $0x1b8] sm:$0xff] %v2128
    %2641 = vst [vmem:[#allocation5 + $0x1c0] sm:$0xff] %v2129
    %2642 = vst [vmem:[#allocation5 + $0x1c8] sm:$0xff] %v2130
    %2643 = vst [vmem:[#allocation5 + $0x1d0] sm:$0xff] %v2131
    %2644 = vst [vmem:[#allocation5 + $0x1d8] sm:$0xff] %v2132
    %2645 = vst [vmem:[#allocation5 + $0x1e0] sm:$0xff] %v2133
    %2646 = vst [vmem:[#allocation5 + $0x1e8] sm:$0xff] %v2134
    %2647 = vst [vmem:[#allocation5 + $0x1f0] sm:$0xff] %v2135
    %2648 = vst [vmem:[#allocation5 + $0x1f8] sm:$0xff] %v2136
    %2649 = vst [vmem:[#allocation5 + $0x200] sm:$0xff] %v2137
    %2650 = vst [vmem:[#allocation5 + $0x208] sm:$0xff] %v2138
    %2651 = vst [vmem:[#allocation5 + $0x210] sm:$0xff] %v2139
    %2652 = vst [vmem:[#allocation5 + $0x218] sm:$0xff] %v2140
    %2653 = vst [vmem:[#allocation5 + $0x220] sm:$0xff] %v2141
    %2654 = vst [vmem:[#allocation5 + $0x228] sm:$0xff] %v2142
    %2655 = vst [vmem:[#allocation5 + $0x230] sm:$0xff] %v2143
    %2656 = vst [vmem:[#allocation5 + $0x238] sm:$0xff] %v2144
    %2657 = vst [vmem:[#allocation5 + $0x240] sm:$0xff] %v2145
    %2658 = vst [vmem:[#allocation5 + $0x248] sm:$0xff] %v2146
    %2659 = vst [vmem:[#allocation5 + $0x250] sm:$0xff] %v2147
    %2660 = vst [vmem:[#allocation5 + $0x258] sm:$0xff] %v2148
    %2661 = vst [vmem:[#allocation5 + $0x260] sm:$0xff] %v2149
    %2662 = vst [vmem:[#allocation5 + $0x268] sm:$0xff] %v2150
    %2663 = vst [vmem:[#allocation5 + $0x270] sm:$0xff] %v2151
    %2664 = vst [vmem:[#allocation5 + $0x278] sm:$0xff] %v2152
    %2665 = vst [vmem:[#allocation5 + $0x280] sm:$0xff] %v2153
    %2666 = vst [vmem:[#allocation5 + $0x288] sm:$0xff] %v2154
    %2667 = vst [vmem:[#allocation5 + $0x290] sm:$0xff] %v2155
    %2668 = vst [vmem:[#allocation5 + $0x298] sm:$0xff] %v2156
    %2669 = vst [vmem:[#allocation5 + $0x2a0] sm:$0xff] %v2157
    %2670 = vst [vmem:[#allocation5 + $0x2a8] sm:$0xff] %v2158
    %2671 = vst [vmem:[#allocation5 + $0x2b0] sm:$0xff] %v2159
    %2672 = vst [vmem:[#allocation5 + $0x2b8] sm:$0xff] %v2160
    %2673 = vst [vmem:[#allocation5 + $0x2c0] sm:$0xff] %v2161
    %2674 = vst [vmem:[#allocation5 + $0x2c8] sm:$0xff] %v2162
    %2675 = vst [vmem:[#allocation5 + $0x2d0] sm:$0xff] %v2163
    %2676 = vst [vmem:[#allocation5 + $0x2d8] sm:$0xff] %v2164
    %2677 = vst [vmem:[#allocation5 + $0x2e0] sm:$0xff] %v2165
    %2678 = vst [vmem:[#allocation5 + $0x2e8] sm:$0xff] %v2166
    %2679 = vst [vmem:[#allocation5 + $0x2f0] sm:$0xff] %v2167
    %2680 = vst [vmem:[#allocation5 + $0x2f8] sm:$0xff] %v2168
    %2681 = vst [vmem:[#allocation5 + $0x300] sm:$0xff] %v2169
    %2682 = vst [vmem:[#allocation5 + $0x308] sm:$0xff] %v2170
    %2683 = vst [vmem:[#allocation5 + $0x310] sm:$0xff] %v2171
    %2684 = vst [vmem:[#allocation5 + $0x318] sm:$0xff] %v2172
    %2685 = vst [vmem:[#allocation5 + $0x320] sm:$0xff] %v2173
    %2686 = vst [vmem:[#allocation5 + $0x328] sm:$0xff] %v2174
    %2687 = vst [vmem:[#allocation5 + $0x330] sm:$0xff] %v2175
    %2688 = vst [vmem:[#allocation5 + $0x338] sm:$0xff] %v2176
    %2689 = vst [vmem:[#allocation5 + $0x340] sm:$0xff] %v2177
    %2690 = vst [vmem:[#allocation5 + $0x348] sm:$0xff] %v2178
    %2691 = vst [vmem:[#allocation5 + $0x350] sm:$0xff] %v2179
    %2692 = vst [vmem:[#allocation5 + $0x358] sm:$0xff] %v2180
    %2693 = vst [vmem:[#allocation5 + $0x360] sm:$0xff] %v2181
    %2694 = vst [vmem:[#allocation5 + $0x368] sm:$0xff] %v2182
    %2695 = vst [vmem:[#allocation5 + $0x370] sm:$0xff] %v2183
    %2696 = vst [vmem:[#allocation5 + $0x378] sm:$0xff] %v2184
    %2697 = vst [vmem:[#allocation5 + $0x380] sm:$0xff] %v2185
    %2698 = vst [vmem:[#allocation5 + $0x388] sm:$0xff] %v2186
    %2699 = vst [vmem:[#allocation5 + $0x390] sm:$0xff] %v2187
    %2700 = vst [vmem:[#allocation5 + $0x398] sm:$0xff] %v2188
    %2701 = vst [vmem:[#allocation5 + $0x3a0] sm:$0xff] %v2189
    %2702 = vst [vmem:[#allocation5 + $0x3a8] sm:$0xff] %v2190
    %2703 = vst [vmem:[#allocation5 + $0x3b0] sm:$0xff] %v2191
    %2704 = vst [vmem:[#allocation5 + $0x3b8] sm:$0xff] %v2192
    %2705 = vst [vmem:[#allocation5 + $0x3c0] sm:$0xff] %v2193
    %2706 = vst [vmem:[#allocation5 + $0x3c8] sm:$0xff] %v2194
    %2707 = vst [vmem:[#allocation5 + $0x3d0] sm:$0xff] %v2195
    %2708 = vst [vmem:[#allocation5 + $0x3d8] sm:$0xff] %v2196
    %2709 = vst [vmem:[#allocation5 + $0x3e0] sm:$0xff] %v2197
    %2710 = vst [vmem:[#allocation5 + $0x3e8] sm:$0xff] %v2198
    %2711 = vst [vmem:[#allocation5 + $0x3f0] sm:$0xff] %v2199
    %2712 = vst [vmem:[#allocation5 + $0x3f8] sm:$0xff] %v2200
    %2713 = vst [vmem:[#allocation5 + $0x400] sm:$0xff] %v2201
    %2714 = vst [vmem:[#allocation5 + $0x408] sm:$0xff] %v2202
    %2715 = vst [vmem:[#allocation5 + $0x410] sm:$0xff] %v2203
    %2716 = vst [vmem:[#allocation5 + $0x418] sm:$0xff] %v2204
    %2717 = vst [vmem:[#allocation5 + $0x420] sm:$0xff] %v2205
    %2718 = vst [vmem:[#allocation5 + $0x428] sm:$0xff] %v2206
    %2719 = vst [vmem:[#allocation5 + $0x430] sm:$0xff] %v2207
    %2720 = vst [vmem:[#allocation5 + $0x438] sm:$0xff] %v2208
    %2721 = vst [vmem:[#allocation5 + $0x440] sm:$0xff] %v2209
    %2722 = vst [vmem:[#allocation5 + $0x448] sm:$0xff] %v2210
    %2723 = vst [vmem:[#allocation5 + $0x450] sm:$0xff] %v2211
    %2724 = vst [vmem:[#allocation5 + $0x458] sm:$0xff] %v2212
    %2725 = vst [vmem:[#allocation5 + $0x460] sm:$0xff] %v2213
    %2726 = vst [vmem:[#allocation5 + $0x468] sm:$0xff] %v2214
    %2727 = vst [vmem:[#allocation5 + $0x470] sm:$0xff] %v2215
    %2728 = vst [vmem:[#allocation5 + $0x478] sm:$0xff] %v2216
    %2729 = vst [vmem:[#allocation5 + $0x480] sm:$0xff] %v2217
    %2730 = vst [vmem:[#allocation5 + $0x488] sm:$0xff] %v2218
    %2731 = vst [vmem:[#allocation5 + $0x490] sm:$0xff] %v2219
    %2732 = vst [vmem:[#allocation5 + $0x498] sm:$0xff] %v2220
    %2733 = vst [vmem:[#allocation5 + $0x4a0] sm:$0xff] %v2221
    %2734 = vst [vmem:[#allocation5 + $0x4a8] sm:$0xff] %v2222
    %2735 = vst [vmem:[#allocation5 + $0x4b0] sm:$0xff] %v2223
    %2736 = vst [vmem:[#allocation5 + $0x4b8] sm:$0xff] %v2224
    %2737 = vst [vmem:[#allocation5 + $0x4c0] sm:$0xff] %v2225
    %2738 = vst [vmem:[#allocation5 + $0x4c8] sm:$0xff] %v2226
    %2739 = vst [vmem:[#allocation5 + $0x4d0] sm:$0xff] %v2227
    %2740 = vst [vmem:[#allocation5 + $0x4d8] sm:$0xff] %v2228
    %2741 = vst [vmem:[#allocation5 + $0x4e0] sm:$0xff] %v2229
    %2742 = vst [vmem:[#allocation5 + $0x4e8] sm:$0xff] %v2230
    %2743 = vst [vmem:[#allocation5 + $0x4f0] sm:$0xff] %v2231
    %2744 = vst [vmem:[#allocation5 + $0x4f8] sm:$0xff] %v2232
    %2745 = vst [vmem:[#allocation5 + $0x500] sm:$0xff] %v2233
    %2746 = vst [vmem:[#allocation5 + $0x508] sm:$0xff] %v2234
    %2747 = vst [vmem:[#allocation5 + $0x510] sm:$0xff] %v2235
    %2748 = vst [vmem:[#allocation5 + $0x518] sm:$0xff] %v2236
    %2749 = vst [vmem:[#allocation5 + $0x520] sm:$0xff] %v2237
    %2750 = vst [vmem:[#allocation5 + $0x528] sm:$0xff] %v2238
    %2751 = vst [vmem:[#allocation5 + $0x530] sm:$0xff] %v2239
    %2752 = vst [vmem:[#allocation5 + $0x538] sm:$0xff] %v2240
    %2753 = vst [vmem:[#allocation5 + $0x540] sm:$0xff] %v2241
    %2754 = vst [vmem:[#allocation5 + $0x548] sm:$0xff] %v2242
    %2755 = vst [vmem:[#allocation5 + $0x550] sm:$0xff] %v2243
    %2756 = vst [vmem:[#allocation5 + $0x558] sm:$0xff] %v2244
    %2757 = vst [vmem:[#allocation5 + $0x560] sm:$0xff] %v2245
    %2758 = vst [vmem:[#allocation5 + $0x568] sm:$0xff] %v2246
    %2759 = vst [vmem:[#allocation5 + $0x570] sm:$0xff] %v2247
    %2760 = vst [vmem:[#allocation5 + $0x578] sm:$0xff] %v2248
    %2761 = vst [vmem:[#allocation5 + $0x580] sm:$0xff] %v2249
    %2762 = vst [vmem:[#allocation5 + $0x588] sm:$0xff] %v2250
    %2763 = vst [vmem:[#allocation5 + $0x590] sm:$0xff] %v2251
    %2764 = vst [vmem:[#allocation5 + $0x598] sm:$0xff] %v2252
    %2765 = vst [vmem:[#allocation5 + $0x5a0] sm:$0xff] %v2253
    %2766 = vst [vmem:[#allocation5 + $0x5a8] sm:$0xff] %v2254
    %2767 = vst [vmem:[#allocation5 + $0x5b0] sm:$0xff] %v2255
    %2768 = vst [vmem:[#allocation5 + $0x5b8] sm:$0xff] %v2256
    %2769 = vst [vmem:[#allocation5 + $0x5c0] sm:$0xff] %v2257
    %2770 = vst [vmem:[#allocation5 + $0x5c8] sm:$0xff] %v2258
    %2771 = vst [vmem:[#allocation5 + $0x5d0] sm:$0xff] %v2259
    %2772 = vst [vmem:[#allocation5 + $0x5d8] sm:$0xff] %v2260
    %2773 = vst [vmem:[#allocation5 + $0x5e0] sm:$0xff] %v2261
    %2774 = vst [vmem:[#allocation5 + $0x5e8] sm:$0xff] %v2262
    %2775 = vst [vmem:[#allocation5 + $0x5f0] sm:$0xff] %v2263
    %2776 = vst [vmem:[#allocation5 + $0x5f8] sm:$0xff] %v2264
    %2777 = vst [vmem:[#allocation5 + $0x600] sm:$0xff] %v2265
    %2778 = vst [vmem:[#allocation5 + $0x608] sm:$0xff] %v2266
    %2779 = vst [vmem:[#allocation5 + $0x610] sm:$0xff] %v2267
    %2780 = vst [vmem:[#allocation5 + $0x618] sm:$0xff] %v2268
    %2781 = vst [vmem:[#allocation5 + $0x620] sm:$0xff] %v2269
    %2782 = vst [vmem:[#allocation5 + $0x628] sm:$0xff] %v2270
    %2783 = vst [vmem:[#allocation5 + $0x630] sm:$0xff] %v2271
    %2784 = vst [vmem:[#allocation5 + $0x638] sm:$0xff] %v2272
    %2785 = vst [vmem:[#allocation5 + $0x640] sm:$0xff] %v2273
    %2786 = vst [vmem:[#allocation5 + $0x648] sm:$0xff] %v2274
    %2787 = vst [vmem:[#allocation5 + $0x650] sm:$0xff] %v2275
    %2788 = vst [vmem:[#allocation5 + $0x658] sm:$0xff] %v2276
    %2789 = vst [vmem:[#allocation5 + $0x660] sm:$0xff] %v2277
    %2790 = vst [vmem:[#allocation5 + $0x668] sm:$0xff] %v2278
    %2791 = vst [vmem:[#allocation5 + $0x670] sm:$0xff] %v2279
    %2792 = vst [vmem:[#allocation5 + $0x678] sm:$0xff] %v2280
    %2793 = vst [vmem:[#allocation5 + $0x680] sm:$0xff] %v2281
    %2794 = vst [vmem:[#allocation5 + $0x688] sm:$0xff] %v2282
    %2795 = vst [vmem:[#allocation5 + $0x690] sm:$0xff] %v2283
    %2796 = vst [vmem:[#allocation5 + $0x698] sm:$0xff] %v2284
    %2797 = vst [vmem:[#allocation5 + $0x6a0] sm:$0xff] %v2285
    %2798 = vst [vmem:[#allocation5 + $0x6a8] sm:$0xff] %v2286
    %2799 = vst [vmem:[#allocation5 + $0x6b0] sm:$0xff] %v2287
    %2800 = vst [vmem:[#allocation5 + $0x6b8] sm:$0xff] %v2288
    %2801 = vst [vmem:[#allocation5 + $0x6c0] sm:$0xff] %v2289
    %2802 = vst [vmem:[#allocation5 + $0x6c8] sm:$0xff] %v2290
    %2803 = vst [vmem:[#allocation5 + $0x6d0] sm:$0xff] %v2291
    %2804 = vst [vmem:[#allocation5 + $0x6d8] sm:$0xff] %v2292
    %2805 = vst [vmem:[#allocation5 + $0x6e0] sm:$0xff] %v2293
    %2806 = vst [vmem:[#allocation5 + $0x6e8] sm:$0xff] %v2294
    %2807 = vst [vmem:[#allocation5 + $0x6f0] sm:$0xff] %v2295
    %2808 = vst [vmem:[#allocation5 + $0x6f8] sm:$0xff] %v2296
    %2809 = vst [vmem:[#allocation5 + $0x700] sm:$0xff] %v2297
    %2810 = vst [vmem:[#allocation5 + $0x708] sm:$0xff] %v2298
    %2811 = vst [vmem:[#allocation5 + $0x710] sm:$0xff] %v2299
    %2812 = vst [vmem:[#allocation5 + $0x718] sm:$0xff] %v2300
    %2813 = vst [vmem:[#allocation5 + $0x720] sm:$0xff] %v2301
    %2814 = vst [vmem:[#allocation5 + $0x728] sm:$0xff] %v2302
    %2815 = vst [vmem:[#allocation5 + $0x730] sm:$0xff] %v2303
    %2816 = vst [vmem:[#allocation5 + $0x738] sm:$0xff] %v2304
    %2817 = vst [vmem:[#allocation5 + $0x740] sm:$0xff] %v2305
    %2818 = vst [vmem:[#allocation5 + $0x748] sm:$0xff] %v2306
    %2819 = vst [vmem:[#allocation5 + $0x750] sm:$0xff] %v2307
    %2820 = vst [vmem:[#allocation5 + $0x758] sm:$0xff] %v2308
    %2821 = vst [vmem:[#allocation5 + $0x760] sm:$0xff] %v2309
    %2822 = vst [vmem:[#allocation5 + $0x768] sm:$0xff] %v2310
    %2823 = vst [vmem:[#allocation5 + $0x770] sm:$0xff] %v2311
    %2824 = vst [vmem:[#allocation5 + $0x778] sm:$0xff] %v2312
    %2825 = vst [vmem:[#allocation5 + $0x780] sm:$0xff] %v2313
    %2826 = vst [vmem:[#allocation5 + $0x788] sm:$0xff] %v2314
    %2827 = vst [vmem:[#allocation5 + $0x790] sm:$0xff] %v2315
    %2828 = vst [vmem:[#allocation5 + $0x798] sm:$0xff] %v2316
    %2829 = vst [vmem:[#allocation5 + $0x7a0] sm:$0xff] %v2317
    %2830 = vst [vmem:[#allocation5 + $0x7a8] sm:$0xff] %v2318
    %2831 = vst [vmem:[#allocation5 + $0x7b0] sm:$0xff] %v2319
    %2832 = vst [vmem:[#allocation5 + $0x7b8] sm:$0xff] %v2320
    %2833 = vst [vmem:[#allocation5 + $0x7c0] sm:$0xff] %v2321
    %2834 = vst [vmem:[#allocation5 + $0x7c8] sm:$0xff] %v2322
    %2835 = vst [vmem:[#allocation5 + $0x7d0] sm:$0xff] %v2323
    %2836 = vst [vmem:[#allocation5 + $0x7d8] sm:$0xff] %v2324
    %2837 = vst [vmem:[#allocation5 + $0x7e0] sm:$0xff] %v2325
    %2838 = vst [vmem:[#allocation5 + $0x7e8] sm:$0xff] %v2326
    %2839 = vst [vmem:[#allocation5 + $0x7f0] sm:$0xff] %v2327
    %2840 = vst [vmem:[#allocation5 + $0x7f8] sm:$0xff] %v2328
    %2841 = vst [vmem:[#allocation5 + $0x800] sm:$0xff] %v2329
    %2842 = vst [vmem:[#allocation5 + $0x808] sm:$0xff] %v2330
    %2843 = vst [vmem:[#allocation5 + $0x810] sm:$0xff] %v2331
    %2844 = vst [vmem:[#allocation5 + $0x818] sm:$0xff] %v2332
    %2845 = vst [vmem:[#allocation5 + $0x820] sm:$0xff] %v2333
    %2846 = vst [vmem:[#allocation5 + $0x828] sm:$0xff] %v2334
    %2847 = vst [vmem:[#allocation5 + $0x830] sm:$0xff] %v2335
    %2848 = vst [vmem:[#allocation5 + $0x838] sm:$0xff] %v2336
    %2849 = vst [vmem:[#allocation5 + $0x840] sm:$0xff] %v2337
    %2850 = vst [vmem:[#allocation5 + $0x848] sm:$0xff] %v2338
    %2851 = vst [vmem:[#allocation5 + $0x850] sm:$0xff] %v2339
    %2852 = vst [vmem:[#allocation5 + $0x858] sm:$0xff] %v2340
    %2853 = vst [vmem:[#allocation5 + $0x860] sm:$0xff] %v2341
    %2854 = vst [vmem:[#allocation5 + $0x868] sm:$0xff] %v2342
    %2855 = vst [vmem:[#allocation5 + $0x870] sm:$0xff] %v2343
    %2856 = vst [vmem:[#allocation5 + $0x878] sm:$0xff] %v2344
    %2857 = vst [vmem:[#allocation5 + $0x880] sm:$0xff] %v2345
    %2858 = vst [vmem:[#allocation5 + $0x888] sm:$0xff] %v2346
    %2859 = vst [vmem:[#allocation5 + $0x890] sm:$0xff] %v2347
    %2860 = vst [vmem:[#allocation5 + $0x898] sm:$0xff] %v2348
    %2861 = vst [vmem:[#allocation5 + $0x8a0] sm:$0xff] %v2349
    %2862 = vst [vmem:[#allocation5 + $0x8a8] sm:$0xff] %v2350
    %2863 = vst [vmem:[#allocation5 + $0x8b0] sm:$0xff] %v2351
    %2864 = vst [vmem:[#allocation5 + $0x8b8] sm:$0xff] %v2352
    %2865 = vst [vmem:[#allocation5 + $0x8c0] sm:$0xff] %v2353
    %2866 = vst [vmem:[#allocation5 + $0x8c8] sm:$0xff] %v2354
    %2867 = vst [vmem:[#allocation5 + $0x8d0] sm:$0xff] %v2355
    %2868 = vst [vmem:[#allocation5 + $0x8d8] sm:$0xff] %v2356
    %2869 = vst [vmem:[#allocation5 + $0x8e0] sm:$0xff] %v2357
    %2870 = vst [vmem:[#allocation5 + $0x8e8] sm:$0xff] %v2358
    %2871 = vst [vmem:[#allocation5 + $0x8f0] sm:$0xff] %v2359
    %2872 = vst [vmem:[#allocation5 + $0x8f8] sm:$0xff] %v2360
    %2873 = vst [vmem:[#allocation5 + $0x900] sm:$0xff] %v2361
    %2874 = vst [vmem:[#allocation5 + $0x908] sm:$0xff] %v2362
    %2875 = vst [vmem:[#allocation5 + $0x910] sm:$0xff] %v2363
    %2876 = vst [vmem:[#allocation5 + $0x918] sm:$0xff] %v2364
    %2877 = vst [vmem:[#allocation5 + $0x920] sm:$0xff] %v2365
    %2878 = vst [vmem:[#allocation5 + $0x928] sm:$0xff] %v2366
    %2879 = vst [vmem:[#allocation5 + $0x930] sm:$0xff] %v2367
    %2880 = vst [vmem:[#allocation5 + $0x938] sm:$0xff] %v2368
    %2881 = vst [vmem:[#allocation5 + $0x940] sm:$0xff] %v2369
    %2882 = vst [vmem:[#allocation5 + $0x948] sm:$0xff] %v2370
    %2883 = vst [vmem:[#allocation5 + $0x950] sm:$0xff] %v2371
    %2884 = vst [vmem:[#allocation5 + $0x958] sm:$0xff] %v2372
    %2885 = vst [vmem:[#allocation5 + $0x960] sm:$0xff] %v2373
    %2886 = vst [vmem:[#allocation5 + $0x968] sm:$0xff] %v2374
    %2887 = vst [vmem:[#allocation5 + $0x970] sm:$0xff] %v2375
    %2888 = vst [vmem:[#allocation5 + $0x978] sm:$0xff] %v2376
    %2889 = vst [vmem:[#allocation5 + $0x980] sm:$0xff] %v2377
    %2890 = vst [vmem:[#allocation5 + $0x988] sm:$0xff] %v2378
    %2891 = vst [vmem:[#allocation5 + $0x990] sm:$0xff] %v2379
    %2892 = vst [vmem:[#allocation5 + $0x998] sm:$0xff] %v2380
    %2893 = vst [vmem:[#allocation5 + $0x9a0] sm:$0xff] %v2381
    %2894 = vst [vmem:[#allocation5 + $0x9a8] sm:$0xff] %v2382
    %2895 = vst [vmem:[#allocation5 + $0x9b0] sm:$0xff] %v2383
    %2896 = vst [vmem:[#allocation5 + $0x9b8] sm:$0xff] %v2384
    %2897 = vst [vmem:[#allocation5 + $0x9c0] sm:$0xff] %v2385
    %2898 = vst [vmem:[#allocation5 + $0x9c8] sm:$0xff] %v2386
    %2899 = vst [vmem:[#allocation5 + $0x9d0] sm:$0xff] %v2387
    %2900 = vst [vmem:[#allocation5 + $0x9d8] sm:$0xff] %v2388
    %2901 = vst [vmem:[#allocation5 + $0x9e0] sm:$0xff] %v2389
    %2902 = vst [vmem:[#allocation5 + $0x9e8] sm:$0xff] %v2390
    %2903 = vst [vmem:[#allocation5 + $0x9f0] sm:$0xff] %v2391
    %2904 = vst [vmem:[#allocation5 + $0x9f8] sm:$0xff] %v2392
    %2905 = vst [vmem:[#allocation5 + $0xa00] sm:$0xff] %v2393
    %2906 = vst [vmem:[#allocation5 + $0xa08] sm:$0xff] %v2394
    %2907 = vst [vmem:[#allocation5 + $0xa10] sm:$0xff] %v2395
    %2908 = vst [vmem:[#allocation5 + $0xa18] sm:$0xff] %v2396
    %2909 = vst [vmem:[#allocation5 + $0xa20] sm:$0xff] %v2397
    %2910 = vst [vmem:[#allocation5 + $0xa28] sm:$0xff] %v2398
    %2911 = vst [vmem:[#allocation5 + $0xa30] sm:$0xff] %v2399
    %2912 = vst [vmem:[#allocation5 + $0xa38] sm:$0xff] %v2400
    %2913 = vst [vmem:[#allocation5 + $0xa40] sm:$0xff] %v2401
    %2914 = vst [vmem:[#allocation5 + $0xa48] sm:$0xff] %v2402
    %2915 = vst [vmem:[#allocation5 + $0xa50] sm:$0xff] %v2403
    %2916 = vst [vmem:[#allocation5 + $0xa58] sm:$0xff] %v2404
    %2917 = vst [vmem:[#allocation5 + $0xa60] sm:$0xff] %v2405
    %2918 = vst [vmem:[#allocation5 + $0xa68] sm:$0xff] %v2406
    %2919 = vst [vmem:[#allocation5 + $0xa70] sm:$0xff] %v2407
    %2920 = vst [vmem:[#allocation5 + $0xa78] sm:$0xff] %v2408
    %2921 = vst [vmem:[#allocation5 + $0xa80] sm:$0xff] %v2409
    %2922 = vst [vmem:[#allocation5 + $0xa88] sm:$0xff] %v2410
    %2923 = vst [vmem:[#allocation5 + $0xa90] sm:$0xff] %v2411
    %2924 = vst [vmem:[#allocation5 + $0xa98] sm:$0xff] %v2412
    %2925 = vst [vmem:[#allocation5 + $0xaa0] sm:$0xff] %v2413
    %2926 = vst [vmem:[#allocation5 + $0xaa8] sm:$0xff] %v2414
    %2927 = vst [vmem:[#allocation5 + $0xab0] sm:$0xff] %v2415
    %2928 = vst [vmem:[#allocation5 + $0xab8] sm:$0xff] %v2416
    %2929 = vst [vmem:[#allocation5 + $0xac0] sm:$0xff] %v2417
    %2930 = vst [vmem:[#allocation5 + $0xac8] sm:$0xff] %v2418
    %2931 = vst [vmem:[#allocation5 + $0xad0] sm:$0xff] %v2419
    %2932 = vst [vmem:[#allocation5 + $0xad8] sm:$0xff] %v2420
    %2933 = vst [vmem:[#allocation5 + $0xae0] sm:$0xff] %v2421
    %2934 = vst [vmem:[#allocation5 + $0xae8] sm:$0xff] %v2422
    %2935 = vst [vmem:[#allocation5 + $0xaf0] sm:$0xff] %v2423
    %2936 = vst [vmem:[#allocation5 + $0xaf8] sm:$0xff] %v2424
    %2937 = vst [vmem:[#allocation5 + $0xb00] sm:$0xff] %v2425
    %2938 = vst [vmem:[#allocation5 + $0xb08] sm:$0xff] %v2426
    %2939 = vst [vmem:[#allocation5 + $0xb10] sm:$0xff] %v2427
    %2940 = vst [vmem:[#allocation5 + $0xb18] sm:$0xff] %v2428
    %2941 = vst [vmem:[#allocation5 + $0xb20] sm:$0xff] %v2429
    %2942 = vst [vmem:[#allocation5 + $0xb28] sm:$0xff] %v2430
    %2943 = vst [vmem:[#allocation5 + $0xb30] sm:$0xff] %v2431
    %2944 = vst [vmem:[#allocation5 + $0xb38] sm:$0xff] %v2432
    %2945 = vst [vmem:[#allocation5 + $0xb40] sm:$0xff] %v2433
    %2946 = vst [vmem:[#allocation5 + $0xb48] sm:$0xff] %v2434
    %2947 = vst [vmem:[#allocation5 + $0xb50] sm:$0xff] %v2435
    %2948 = vst [vmem:[#allocation5 + $0xb58] sm:$0xff] %v2436
    %2949 = vst [vmem:[#allocation5 + $0xb60] sm:$0xff] %v2437
    %2950 = vst [vmem:[#allocation5 + $0xb68] sm:$0xff] %v2438
    %2951 = vst [vmem:[#allocation5 + $0xb70] sm:$0xff] %v2439
    %2952 = vst [vmem:[#allocation5 + $0xb78] sm:$0xff] %v2440
    %2953 = vst [vmem:[#allocation5 + $0xb80] sm:$0xff] %v2441
    %2954 = vst [vmem:[#allocation5 + $0xb88] sm:$0xff] %v2442
    %2955 = vst [vmem:[#allocation5 + $0xb90] sm:$0xff] %v2443
    %2956 = vst [vmem:[#allocation5 + $0xb98] sm:$0xff] %v2444
    %2957 = vst [vmem:[#allocation5 + $0xba0] sm:$0xff] %v2445
    %2958 = vst [vmem:[#allocation5 + $0xba8] sm:$0xff] %v2446
    %2959 = vst [vmem:[#allocation5 + $0xbb0] sm:$0xff] %v2447
    %2960 = vst [vmem:[#allocation5 + $0xbb8] sm:$0xff] %v2448
    %2961 = vst [vmem:[#allocation5 + $0xbc0] sm:$0xff] %v2449
    %2962 = vst [vmem:[#allocation5 + $0xbc8] sm:$0xff] %v2450
    %2963 = vst [vmem:[#allocation5 + $0xbd0] sm:$0xff] %v2451
    %2964 = vst [vmem:[#allocation5 + $0xbd8] sm:$0xff] %v2452
    %2965 = vst [vmem:[#allocation5 + $0xbe0] sm:$0xff] %v2453
    %2966 = vst [vmem:[#allocation5 + $0xbe8] sm:$0xff] %v2454
    %2967 = vst [vmem:[#allocation5 + $0xbf0] sm:$0xff] %v2455
    %2968 = vst [vmem:[#allocation5 + $0xbf8] sm:$0xff] %v2456
    %2969 = vst [vmem:[#allocation5 + $0xc00] sm:$0xff] %v2457
    %2970 = vst [vmem:[#allocation5 + $0xc08] sm:$0xff] %v2458
    %2971 = vst [vmem:[#allocation5 + $0xc10] sm:$0xff] %v2459
    %2972 = vst [vmem:[#allocation5 + $0xc18] sm:$0xff] %v2460
    %2973 = vst [vmem:[#allocation5 + $0xc20] sm:$0xff] %v2461
    %2974 = vst [vmem:[#allocation5 + $0xc28] sm:$0xff] %v2462
    %2975 = vst [vmem:[#allocation5 + $0xc30] sm:$0xff] %v2463
    %2976 = vst [vmem:[#allocation5 + $0xc38] sm:$0xff] %v2464
    %2977 = vst [vmem:[#allocation5 + $0xc40] sm:$0xff] %v2465
    %2978 = vst [vmem:[#allocation5 + $0xc48] sm:$0xff] %v2466
    %2979 = vst [vmem:[#allocation5 + $0xc50] sm:$0xff] %v2467
    %2980 = vst [vmem:[#allocation5 + $0xc58] sm:$0xff] %v2468
    %2981 = vst [vmem:[#allocation5 + $0xc60] sm:$0xff] %v2469
    %2982 = vst [vmem:[#allocation5 + $0xc68] sm:$0xff] %v2470
    %2983 = vst [vmem:[#allocation5 + $0xc70] sm:$0xff] %v2471
    %2984 = vst [vmem:[#allocation5 + $0xc78] sm:$0xff] %v2472
    %2985 = vst [vmem:[#allocation5 + $0xc80] sm:$0xff] %v2473
    %2986 = vst [vmem:[#allocation5 + $0xc88] sm:$0xff] %v2474
    %2987 = vst [vmem:[#allocation5 + $0xc90] sm:$0xff] %v2475
    %2988 = vst [vmem:[#allocation5 + $0xc98] sm:$0xff] %v2476
    %2989 = vst [vmem:[#allocation5 + $0xca0] sm:$0xff] %v2477
    %2990 = vst [vmem:[#allocation5 + $0xca8] sm:$0xff] %v2478
    %2991 = vst [vmem:[#allocation5 + $0xcb0] sm:$0xff] %v2479
    %2992 = vst [vmem:[#allocation5 + $0xcb8] sm:$0xff] %v2480
    %2993 = vst [vmem:[#allocation5 + $0xcc0] sm:$0xff] %v2481
    %2994 = vst [vmem:[#allocation5 + $0xcc8] sm:$0xff] %v2482
    %2995 = vst [vmem:[#allocation5 + $0xcd0] sm:$0xff] %v2483
    %2996 = vst [vmem:[#allocation5 + $0xcd8] sm:$0xff] %v2484
    %2997 = vst [vmem:[#allocation5 + $0xce0] sm:$0xff] %v2485
    %2998 = vst [vmem:[#allocation5 + $0xce8] sm:$0xff] %v2486
    %2999 = vst [vmem:[#allocation5 + $0xcf0] sm:$0xff] %v2487
    %3000 = vst [vmem:[#allocation5 + $0xcf8] sm:$0xff] %v2488
    %3001 = vst [vmem:[#allocation5 + $0xd00] sm:$0xff] %v2489
    %3002 = vst [vmem:[#allocation5 + $0xd08] sm:$0xff] %v2490
    %3003 = vst [vmem:[#allocation5 + $0xd10] sm:$0xff] %v2491
    %3004 = vst [vmem:[#allocation5 + $0xd18] sm:$0xff] %v2492
    %3005 = vst [vmem:[#allocation5 + $0xd20] sm:$0xff] %v2493
    %3006 = vst [vmem:[#allocation5 + $0xd28] sm:$0xff] %v2494
    %3007 = vst [vmem:[#allocation5 + $0xd30] sm:$0xff] %v2495
    %3008 = vst [vmem:[#allocation5 + $0xd38] sm:$0xff] %v2496
    %3009 = vst [vmem:[#allocation5 + $0xd40] sm:$0xff] %v2497
    %3010 = vst [vmem:[#allocation5 + $0xd48] sm:$0xff] %v2498
    %3011 = vst [vmem:[#allocation5 + $0xd50] sm:$0xff] %v2499
    %3012 = vst [vmem:[#allocation5 + $0xd58] sm:$0xff] %v2500
    %3013 = vst [vmem:[#allocation5 + $0xd60] sm:$0xff] %v2501
    %3014 = vst [vmem:[#allocation5 + $0xd68] sm:$0xff] %v2502
    %3015 = vst [vmem:[#allocation5 + $0xd70] sm:$0xff] %v2503
    %3016 = vst [vmem:[#allocation5 + $0xd78] sm:$0xff] %v2504
    %3017 = vst [vmem:[#allocation5 + $0xd80] sm:$0xff] %v2505
    %3018 = vst [vmem:[#allocation5 + $0xd88] sm:$0xff] %v2506
    %3019 = vst [vmem:[#allocation5 + $0xd90] sm:$0xff] %v2507
    %3020 = vst [vmem:[#allocation5 + $0xd98] sm:$0xff] %v2508
    %3021 = vst [vmem:[#allocation5 + $0xda0] sm:$0xff] %v2509
    %3022 = vst [vmem:[#allocation5 + $0xda8] sm:$0xff] %v2510
    %3023 = vst [vmem:[#allocation5 + $0xdb0] sm:$0xff] %v2511
    %3024 = vst [vmem:[#allocation5 + $0xdb8] sm:$0xff] %v2512
    %3025 = vst [vmem:[#allocation5 + $0xdc0] sm:$0xff] %v2513
    %3026 = vst [vmem:[#allocation5 + $0xdc8] sm:$0xff] %v2514
    %3027 = vst [vmem:[#allocation5 + $0xdd0] sm:$0xff] %v2515
    %3028 = vst [vmem:[#allocation5 + $0xdd8] sm:$0xff] %v2516
    %3029 = vst [vmem:[#allocation5 + $0xde0] sm:$0xff] %v2517
    %3030 = vst [vmem:[#allocation5 + $0xde8] sm:$0xff] %v2518
    %3031 = vst [vmem:[#allocation5 + $0xdf0] sm:$0xff] %v2519
    %3032 = vst [vmem:[#allocation5 + $0xdf8] sm:$0xff] %v2520
    %3033 = vst [vmem:[#allocation5 + $0xe00] sm:$0xff] %v2521
    %3034 = vst [vmem:[#allocation5 + $0xe08] sm:$0xff] %v2522
    %3035 = vst [vmem:[#allocation5 + $0xe10] sm:$0xff] %v2523
    %3036 = vst [vmem:[#allocation5 + $0xe18] sm:$0xff] %v2524
    %3037 = vst [vmem:[#allocation5 + $0xe20] sm:$0xff] %v2525
    %3038 = vst [vmem:[#allocation5 + $0xe28] sm:$0xff] %v2526
    %3039 = vst [vmem:[#allocation5 + $0xe30] sm:$0xff] %v2527
    %3040 = vst [vmem:[#allocation5 + $0xe38] sm:$0xff] %v2528
    %3041 = vst [vmem:[#allocation5 + $0xe40] sm:$0xff] %v2529
    %3042 = vst [vmem:[#allocation5 + $0xe48] sm:$0xff] %v2530
    %3043 = vst [vmem:[#allocation5 + $0xe50] sm:$0xff] %v2531
    %3044 = vst [vmem:[#allocation5 + $0xe58] sm:$0xff] %v2532
    %3045 = vst [vmem:[#allocation5 + $0xe60] sm:$0xff] %v2533
    %3046 = vst [vmem:[#allocation5 + $0xe68] sm:$0xff] %v2534
    %3047 = vst [vmem:[#allocation5 + $0xe70] sm:$0xff] %v2535
    %3048 = vst [vmem:[#allocation5 + $0xe78] sm:$0xff] %v2536
    %3049 = vst [vmem:[#allocation5 + $0xe80] sm:$0xff] %v2537
    %3050 = vst [vmem:[#allocation5 + $0xe88] sm:$0xff] %v2538
    %3051 = vst [vmem:[#allocation5 + $0xe90] sm:$0xff] %v2539
    %3052 = vst [vmem:[#allocation5 + $0xe98] sm:$0xff] %v2540
    %3053 = vst [vmem:[#allocation5 + $0xea0] sm:$0xff] %v2541
    %3054 = vst [vmem:[#allocation5 + $0xea8] sm:$0xff] %v2542
    %3055 = vst [vmem:[#allocation5 + $0xeb0] sm:$0xff] %v2543
    %3056 = vst [vmem:[#allocation5 + $0xeb8] sm:$0xff] %v2544
    %3057 = vst [vmem:[#allocation5 + $0xec0] sm:$0xff] %v2545
    %3058 = vst [vmem:[#allocation5 + $0xec8] sm:$0xff] %v2546
    %3059 = vst [vmem:[#allocation5 + $0xed0] sm:$0xff] %v2547
    %3060 = vst [vmem:[#allocation5 + $0xed8] sm:$0xff] %v2548
    %3061 = vst [vmem:[#allocation5 + $0xee0] sm:$0xff] %v2549
    %3062 = vst [vmem:[#allocation5 + $0xee8] sm:$0xff] %v2550
    %3063 = vst [vmem:[#allocation5 + $0xef0] sm:$0xff] %v2551
    %3064 = vst [vmem:[#allocation5 + $0xef8] sm:$0xff] %v2552
    %3065 = vst [vmem:[#allocation5 + $0xf00] sm:$0xff] %v2553
    %3066 = vst [vmem:[#allocation5 + $0xf08] sm:$0xff] %v2554
    %3067 = vst [vmem:[#allocation5 + $0xf10] sm:$0xff] %v2555
    %3068 = vst [vmem:[#allocation5 + $0xf18] sm:$0xff] %v2556
    %3069 = vst [vmem:[#allocation5 + $0xf20] sm:$0xff] %v2557
    %3070 = vst [vmem:[#allocation5 + $0xf28] sm:$0xff] %v2558
    %3071 = vst [vmem:[#allocation5 + $0xf30] sm:$0xff] %v2559
    %3072 = vst [vmem:[#allocation5 + $0xf38] sm:$0xff] %v2560
    %3073 = vst [vmem:[#allocation5 + $0xf40] sm:$0xff] %v2561
    %3074 = vst [vmem:[#allocation5 + $0xf48] sm:$0xff] %v2562
    %3075 = vst [vmem:[#allocation5 + $0xf50] sm:$0xff] %v2563
    %3076 = vst [vmem:[#allocation5 + $0xf58] sm:$0xff] %v2564
    %3077 = vst [vmem:[#allocation5 + $0xf60] sm:$0xff] %v2565
    %3078 = vst [vmem:[#allocation5 + $0xf68] sm:$0xff] %v2566
    %3079 = vst [vmem:[#allocation5 + $0xf70] sm:$0xff] %v2567
    %3080 = vst [vmem:[#allocation5 + $0xf78] sm:$0xff] %v2568
    %3081 = vst [vmem:[#allocation5 + $0xf80] sm:$0xff] %v2569
    %3082 = vst [vmem:[#allocation5 + $0xf88] sm:$0xff] %v2570
    %3083 = vst [vmem:[#allocation5 + $0xf90] sm:$0xff] %v2571
    %3084 = vst [vmem:[#allocation5 + $0xf98] sm:$0xff] %v2572
    %3085 = vst [vmem:[#allocation5 + $0xfa0] sm:$0xff] %v2573
    %3086 = vst [vmem:[#allocation5 + $0xfa8] sm:$0xff] %v2574
    %3087 = vst [vmem:[#allocation5 + $0xfb0] sm:$0xff] %v2575
    %3088 = vst [vmem:[#allocation5 + $0xfb8] sm:$0xff] %v2576
    %3089 = vst [vmem:[#allocation5 + $0xfc0] sm:$0xff] %v2577
    %3090 = vst [vmem:[#allocation5 + $0xfc8] sm:$0xff] %v2578
    %3091 = vst [vmem:[#allocation5 + $0xfd0] sm:$0xff] %v2579
    %3092 = vst [vmem:[#allocation5 + $0xfd8] sm:$0xff] %v2580
    %3093 = vst [vmem:[#allocation5 + $0xfe0] sm:$0xff] %v2581
    %3094 = vst [vmem:[#allocation5 + $0xfe8] sm:$0xff] %v2582
    %3095 = vst [vmem:[#allocation5 + $0xff0] sm:$0xff] %v2583
    %3096 = vst [vmem:[#allocation5 + $0xff8] sm:$0xff] %v2584
    // Predicated region
    $region10: #{tpu_custom_call.1} parent=1 // pred_check
      _
    $region11: #{tpu_custom_call.1} parent=1 // pred_check_branch
      %3098 = sbr.rel (0) target = $region13
    $region12: #{tpu_custom_call.1} parent=1 // pred_region
      %3100 = vsyncadd [#allocation4], 0
      %s3101 = sshll.u32 [#allocation5], 4
      %s3102 = int_to_ptr.vmem [resolvable:$true] %s3101
      %s3103 = sshll.u32 %s1, 4
      %s3104 = int_to_ptr.hbm [resolvable:$true] %s3103
      %3109 = dma.vmem_to_hbm [thread:$0]  %s3102, 65536, %s3104, [#allocation4], 1024, 1024, 64
    $region13: #{tpu_custom_call.1} parent=1 // pred_fallthru
      _
    // Predicated region
    $region14: #{tpu_custom_call.1} parent=1 // pred_check
      _
    $region15: #{tpu_custom_call.1} parent=1 // pred_check_branch
      %3111 = sbr.rel (0) target = $region17
    $region16: #{tpu_custom_call.1} parent=1 // pred_region
      %3113 = dma.done [#allocation4], 65536
    $region17: #{tpu_custom_call.1} parent=1 // pred_fallthru
      _
    %3114 = vsyncpa [#allocation3], 1
    %3115 = vsyncpa [#allocation4], 1

</llo_original>
